<compile_context>
chip_gen: v5e
topology: v5e:2x2
jax: 0.10.0
libtpu: 0.0.40
codegen_flags: <defaults>
</compile_context>

<pallas_src>
import functools

import jax
import jax.numpy as jnp
from jax import lax
from jax.experimental import pallas as pl
from jax.experimental.pallas import tpu as pltpu


# ------------------------------- Pallas kernel --------------------------------


def hopfield_kernel(emb_ref, bias_ref,
                    g_st_ref, b_st_ref, g_qu_ref, b_qu_ref, g_va_ref, b_va_ref,
                    wq_ref, wk_ref, wv_ref, bq_ref, bk_ref, bv_ref,
                    wo_ref, bo_ref,
                    out_ref, s_scratch, o_scratch,
                    *, num_heads, head_dim, n_active_slots, beta_scale, eps):
    """One grid step processes `Bb` batch elements (full sequence slab each).

    emb_ref  : (Bb, L, d)     raw [query | actives | inactives] embeddings
    bias_ref : (Bb, 1, L)     additive stored-pattern mask (0 = real, -1e30 = padding slot)
    out_ref  : (Bb, L, d+64)  S_updated = S + Hopfield(S)   (lane-dense, 128-wide store)
    s_scratch: (L, d+64)      padded pattern slab S built in VMEM
    o_scratch: (L, H*dh)      concatenated per-head attention outputs
    """
    Bb, L, d = emb_ref.shape
    d_total = out_ref.shape[-1]
    pad_w = d_total - d
    H, dh = num_heads, head_dim

    # Constant pad columns (identical for every batch element): row 0 (query) -> 0,
    # rows 1..n_active_slots (actives) -> +1, remaining rows (inactives) -> -1.
    row = lax.broadcasted_iota(jnp.int32, (L, pad_w), 0)
    pad_cols = jnp.where(row == 0, 0.0,
                         jnp.where(row <= n_active_slots, 1.0, -1.0)).astype(jnp.float32)
    s_scratch[:, d:] = pad_cols

    wq = wq_ref[...]
    wk = wk_ref[...]
    wv = wv_ref[...]
    wo = wo_ref[...]

    for b in range(Bb):                                   # static, unrolled
        s_scratch[:, :d] = emb_ref[b].astype(jnp.float32)
        s_b = s_scratch[...]                              # (L, d_total) padded S

        # The three LayerNorms (stored / state / value) all see the same S, so the
        # normalization statistics are shared; only the affine parameters differ.
        mean = jnp.mean(s_b, axis=-1, keepdims=True)
        var = jnp.mean((s_b - mean) ** 2, axis=-1, keepdims=True)
        xn = (s_b - mean) * lax.rsqrt(var + eps)

        # Fused-across-heads projections: one (L, d_total) @ (d_total, H*dh) matmul each.
        q_all = jnp.dot(xn * g_qu_ref[...] + b_qu_ref[...], wq,
                        preferred_element_type=jnp.float32) + bq_ref[...]
        k_all = jnp.dot(xn * g_st_ref[...] + b_st_ref[...], wk,
                        preferred_element_type=jnp.float32) + bk_ref[...]
        v_all = jnp.dot(xn * g_va_ref[...] + b_va_ref[...], wv,
                        preferred_element_type=jnp.float32) + bv_ref[...]

        bias_b = bias_ref[b]                              # (1, L)

        for h in range(H):                                # static, unrolled
            c = h * dh
            qh = q_all[:, c:c + dh]
            kh = k_all[:, c:c + dh]
            vh = v_all[:, c:c + dh]
            s = beta_scale * lax.dot_general(
                qh, kh, (((1,), (1,)), ((), ())), preferred_element_type=jnp.float32)
            s = s + bias_b                                # mask padded stored patterns
            s = s - jnp.max(s, axis=-1, keepdims=True)
            e = jnp.exp(s)
            attn = e * pl.reciprocal(jnp.sum(e, axis=-1, keepdims=True), approx=True)
            o_scratch[:, c:c + dh] = jnp.dot(attn, vh, preferred_element_type=jnp.float32)

        # Fused output projection over the concatenated heads + residual (S_updated = S + S_h).
        s_h = jnp.dot(o_scratch[...], wo, preferred_element_type=jnp.float32) + bo_ref[...]
        out_ref[b] = (s_b + s_h).astype(out_ref.dtype)


def hopfield_pallas(emb, bias, params, *, num_heads, head_dim, n_active_slots,
                    beta_scale, eps=1e-5, block_b=2):
    B, L, d = emb.shape
    d_total = params["wq"].shape[0]
    bb = block_b if B % block_b == 0 else 1

    const_names = ("g_st", "b_st", "g_qu", "b_qu", "g_va", "b_va",
                   "wq", "wk", "wv", "bq", "bk", "bv", "wo", "bo")
    consts = [params[k] for k in const_names]

    def const_spec(a):
        return pl.BlockSpec(a.shape, lambda b, _n=a.ndim: (0,) * _n)

    kern = functools.partial(
        hopfield_kernel, num_heads=num_heads, head_dim=head_dim,
        n_active_slots=n_active_slots, beta_scale=float(beta_scale), eps=eps)

    return pl.pallas_call(
        kern,
        out_shape=jax.ShapeDtypeStruct((B, L, d_total), emb.dtype),
        grid_spec=pltpu.PrefetchScalarGridSpec(
            num_scalar_prefetch=0,
            grid=(B // bb,),
            in_specs=[pl.BlockSpec((bb, L, d), lambda b: (b, 0, 0)),
                      pl.BlockSpec((bb, 1, L), lambda b: (b, 0, 0))]
                     + [const_spec(a) for a in consts],
            out_specs=pl.BlockSpec((bb, L, d_total), lambda b: (b, 0, 0)),
            scratch_shapes=[pltpu.VMEM((L, d_total), jnp.float32),
                            pltpu.VMEM((L, num_heads * head_dim), jnp.float32)],
        ),
        # Batch blocks are independent -> "parallel" lets Mosaic shard them across v7x's
        # two TensorCores (harmless no-op on v5e/v6e).
        compiler_params=pltpu.CompilerParams(dimension_semantics=("parallel",)),
        # TODO(synk): add a sequence-tiled online-softmax path + vmem_limit_bytes before
        # scaling L / d far beyond these shapes (v7x has half the VMEM of v5e/v6e).
    )(emb, bias, *consts)


# ------------------------- HopfieldBlock forward (wrapper) ---------------------


def build_mask_bias(actives_size, inactives_size, seq_len, n_active_slots):
    """Vectorized version of the module's src_key_padding_mask double loop.

    Slot 0 (query) and the first actives_size[i] / inactives_size[i] slots of the active /
    inactive sections are real stored patterns; the rest are padding.
    Returns an additive attention bias (B, 1, L): 0 for real patterns, -1e30 for padding.
    """
    # TODO(synk): hflayers feeds this mask to torch-MHA masked_fill (True == dropped), which with
    # the module's "1 == real" convention would drop the real patterns; we implement the evident
    # intent (attend only to real stored patterns).
    j = jnp.arange(seq_len)[None, :]
    a = actives_size[:, None]
    i = inactives_size[:, None]
    valid = ((j == 0)
             | ((j >= 1) & (j < 1 + n_active_slots) & (j < a + 1))
             | ((j >= 1 + n_active_slots) & (j < i + 1 + n_active_slots)))
    return jnp.where(valid, 0.0, -1e30).astype(jnp.float32)[:, None, :]


def hopfield_block_forward(query_emb, support_actives, support_inactives,
                           actives_size, inactives_size, params,
                           *, num_heads, head_dim, beta_scale, block_b=2):
    """Pallas-backed HopfieldBlock.forward (eval mode)."""
    d = support_actives.shape[2]
    n_act = support_actives.shape[1]           # module hard-codes 12 (mask uses `j < 13`)
    emb = jnp.concatenate([query_emb, support_actives, support_inactives], axis=1)  # (B, L, d)
    L = emb.shape[1]
    bias = build_mask_bias(actives_size, inactives_size, L, n_act)
    s_updated = hopfield_pallas(emb, bias, params, num_heads=num_heads, head_dim=head_dim,
                                n_active_slots=n_act, beta_scale=beta_scale, block_b=block_b)
    return (s_updated[:, 0:1, :d],             # query      (B, 1,  d)
            s_updated[:, 1:1 + n_act, :d],     # actives    (B, 12, d)
            s_updated[:, 1 + n_act:, :d])      # inactives  (B, *,  d)


# ------------------------------ pure-JAX reference -----------------------------


def hopfield_reference(S, bias, p, *, num_heads, head_dim, beta_scale, eps=1e-5):
    def ln(x, g, b):
        m = x.mean(-1, keepdims=True)
        v = ((x - m) ** 2).mean(-1, keepdims=True)
        return (x - m) / jnp.sqrt(v + eps) * g + b

    B, L, _ = S.shape
    H, dh = num_heads, head_dim
    q = ln(S, p["g_qu"], p["b_qu"]) @ p["wq"] + p["bq"]
    k = ln(S, p["g_st"], p["b_st"]) @ p["wk"] + p["bk"]
    v = ln(S, p["g_va"], p["b_va"]) @ p["wv"] + p["bv"]
    qh = q.reshape(B, L, H, dh)
    kh = k.reshape(B, L, H, dh)
    vh = v.reshape(B, L, H, dh)
    scores = beta_scale * jnp.einsum("blhe,bmhe->bhlm", qh, kh) + bias[:, None, :, :]
    attn = jax.nn.softmax(scores, axis=-1)
    o = jnp.einsum("bhlm,bmhe->blhe", attn, vh).reshape(B, L, H * dh)
    return S + (o @ p["wo"] + p["bo"])


def reference_forward(query_emb, support_actives, support_inactives,
                      actives_size, inactives_size, params,
                      *, num_heads, head_dim, beta_scale):
    d = support_actives.shape[2]
    n_act = support_actives.shape[1]
    q_pad = jnp.concatenate([query_emb, jnp.zeros_like(query_emb[:, :, :64])], axis=2)
    a_pad = jnp.concatenate([support_actives, jnp.ones_like(support_actives[:, :, :64])], axis=2)
    i_pad = jnp.concatenate([support_inactives,
                             -1.0 * jnp.ones_like(support_inactives[:, :, :64])], axis=2)
    S = jnp.concatenate([q_pad, a_pad, i_pad], axis=1)
    bias = build_mask_bias(actives_size, inactives_size, S.shape[1], n_act)
    s_updated = hopfield_reference(S, bias, params, num_heads=num_heads,
                                   head_dim=head_dim, beta_scale=beta_scale)
    return (s_updated[:, 0:1, :d],
            s_updated[:, 1:1 + n_act, :d],
            s_updated[:, 1 + n_act:, :d])


# ------------------------------- parameter init --------------------------------


def init_params(key, d_total, num_heads, head_dim):
    E = num_heads * head_dim
    ks = jax.random.split(key, 14)
    s = 0.05
    return dict(
        wq=s * jax.random.normal(ks[0], (d_total, E), jnp.float32),
        wk=s * jax.random.normal(ks[1], (d_total, E), jnp.float32),
        wv=s * jax.random.normal(ks[2], (d_total, E), jnp.float32),
        bq=0.01 * jax.random.normal(ks[3], (1, E), jnp.float32),
        bk=0.01 * jax.random.normal(ks[4], (1, E), jnp.float32),
        bv=0.01 * jax.random.normal(ks[5], (1, E), jnp.float32),
        wo=s * jax.random.normal(ks[6], (E, d_total), jnp.float32),
        bo=0.01 * jax.random.normal(ks[7], (1, d_total), jnp.float32),
        g_st=1.0 + 0.01 * jax.random.normal(ks[8], (1, d_total), jnp.float32),
        b_st=0.01 * jax.random.normal(ks[9], (1, d_total), jnp.float32),
        g_qu=1.0 + 0.01 * jax.random.normal(ks[10], (1, d_total), jnp.float32),
        b_qu=0.01 * jax.random.normal(ks[11], (1, d_total), jnp.float32),
        g_va=1.0 + 0.01 * jax.random.normal(ks[12], (1, d_total), jnp.float32),
        b_va=0.01 * jax.random.normal(ks[13], (1, d_total), jnp.float32),
    )


# ------------------------------------ main --------------------------------------


if __name__ == "__main__":
    # Small shapes consistent with the module: embedding_dim = 64 so the 64-wide 0/+1/-1
    # pads give associationSpace_dim = 128; 12 active + 12 inactive slots (the module's
    # mask hard-codes 12 active slots) + 1 query row -> sequence length L = 25.
    B = 4
    d = 64
    n_act_slots, n_inact_slots = 12, 12
    H, dh = 8, 16                      # hopfield.heads, hopfield.dim_QK
    beta = 1.0 / (dh ** 0.5)           # hopfield.beta
    d_total = d + 64                   # associationSpace_dim

    key = jax.random.PRNGKey(0)
    kp, kq, ka, ki = jax.random.split(key, 4)
    params = init_params(kp, d_total, H, dh)

    query_emb = jax.random.normal(kq, (B, 1, d), jnp.float32)
    support_actives = jax.random.normal(ka, (B, n_act_slots, d), jnp.float32)
    support_inactives = jax.random.normal(ki, (B, n_inact_slots, d), jnp.float32)
    actives_size = jnp.array([12, 7, 3, 9], jnp.int32)
    inactives_size = jnp.array([12, 5, 1, 8], jnp.int32)

    out_q, out_a, out_i = hopfield_block_forward(
        query_emb, support_actives, support_inactives, actives_size, inactives_size,
        params, num_heads=H, head_dim=dh, beta_scale=beta, block_b=2)
    out_q, out_a, out_i = jax.block_until_ready((out_q, out_a, out_i))

    ref_q, ref_a, ref_i = reference_forward(
        query_emb, support_actives, support_inactives, actives_size, inactives_size,
        params, num_heads=H, head_dim=dh, beta_scale=beta)

    assert out_q.shape == (B, 1, d)
    assert out_a.shape == (B, n_act_slots, d)
    assert out_i.shape == (B, n_inact_slots, d)
    # pl.reciprocal(approx=True) in the softmax -> slightly looser tolerance than 1e-4.
    assert jnp.allclose(out_q, ref_q, rtol=2e-3, atol=2e-3)
    assert jnp.allclose(out_a, ref_a, rtol=2e-3, atol=2e-3)
    assert jnp.allclose(out_i, ref_i, rtol=2e-3, atol=2e-3)
    print("KERNEL_OK")
</pallas_src>

<mosaic_0001>
module attributes {stable_mosaic.version = 11 : i64} {
  func.func @hopfield_kernel(%arg0: i32, %arg1: memref<2x25x64xf32, #tpu.memory_space<vmem>>, %arg2: memref<2x1x25xf32, #tpu.memory_space<vmem>>, %arg3: memref<1x128xf32, #tpu.memory_space<vmem>>, %arg4: memref<1x128xf32, #tpu.memory_space<vmem>>, %arg5: memref<1x128xf32, #tpu.memory_space<vmem>>, %arg6: memref<1x128xf32, #tpu.memory_space<vmem>>, %arg7: memref<1x128xf32, #tpu.memory_space<vmem>>, %arg8: memref<1x128xf32, #tpu.memory_space<vmem>>, %arg9: memref<128x128xf32, #tpu.memory_space<vmem>>, %arg10: memref<128x128xf32, #tpu.memory_space<vmem>>, %arg11: memref<128x128xf32, #tpu.memory_space<vmem>>, %arg12: memref<1x128xf32, #tpu.memory_space<vmem>>, %arg13: memref<1x128xf32, #tpu.memory_space<vmem>>, %arg14: memref<1x128xf32, #tpu.memory_space<vmem>>, %arg15: memref<128x128xf32, #tpu.memory_space<vmem>>, %arg16: memref<1x128xf32, #tpu.memory_space<vmem>>, %arg17: memref<2x25x128xf32, #tpu.memory_space<vmem>>, %arg18: memref<25x128xf32, #tpu.memory_space<vmem>>, %arg19: memref<25x128xf32, #tpu.memory_space<vmem>>) attributes {dimension_semantics = [#tpu.dimension_semantics<parallel>], iteration_bounds = array<i64: 2>, scalar_prefetch = 0 : i64, scratch_operands = 2 : i64, tpu.core_type = #tpu.core_type<tc>, window_params = [{transform_indices = @transform_0, window_bounds = array<i64: 2, 25, 64>}, {transform_indices = @transform_1, window_bounds = array<i64: 2, 1, 25>}, {pipeline_mode = #tpu.pipeline_mode<synchronous>, transform_indices = @transform_2, window_bounds = array<i64: 1, 128>}, {pipeline_mode = #tpu.pipeline_mode<synchronous>, transform_indices = @transform_3, window_bounds = array<i64: 1, 128>}, {pipeline_mode = #tpu.pipeline_mode<synchronous>, transform_indices = @transform_4, window_bounds = array<i64: 1, 128>}, {pipeline_mode = #tpu.pipeline_mode<synchronous>, transform_indices = @transform_5, window_bounds = array<i64: 1, 128>}, {pipeline_mode = #tpu.pipeline_mode<synchronous>, transform_indices = @transform_6, window_bounds = array<i64: 1, 128>}, {pipeline_mode = #tpu.pipeline_mode<synchronous>, transform_indices = @transform_7, window_bounds = array<i64: 1, 128>}, {pipeline_mode = #tpu.pipeline_mode<synchronous>, transform_indices = @transform_8, window_bounds = array<i64: 128, 128>}, {pipeline_mode = #tpu.pipeline_mode<synchronous>, transform_indices = @transform_9, window_bounds = array<i64: 128, 128>}, {pipeline_mode = #tpu.pipeline_mode<synchronous>, transform_indices = @transform_10, window_bounds = array<i64: 128, 128>}, {pipeline_mode = #tpu.pipeline_mode<synchronous>, transform_indices = @transform_11, window_bounds = array<i64: 1, 128>}, {pipeline_mode = #tpu.pipeline_mode<synchronous>, transform_indices = @transform_12, window_bounds = array<i64: 1, 128>}, {pipeline_mode = #tpu.pipeline_mode<synchronous>, transform_indices = @transform_13, window_bounds = array<i64: 1, 128>}, {pipeline_mode = #tpu.pipeline_mode<synchronous>, transform_indices = @transform_14, window_bounds = array<i64: 128, 128>}, {pipeline_mode = #tpu.pipeline_mode<synchronous>, transform_indices = @transform_15, window_bounds = array<i64: 1, 128>}, {transform_indices = @transform_16, window_bounds = array<i64: 2, 25, 128>}]} {
    %0 = tpu.iota {dimensions = array<i32: 0>} : vector<25x64xi32>
    %c0_i32 = arith.constant 0 : i32
    %1 = vector.broadcast %c0_i32 : i32 to vector<25x64xi32>
    %2 = arith.cmpi eq, %0, %1 : vector<25x64xi32>
    %c12_i32 = arith.constant 12 : i32
    %3 = vector.broadcast %c12_i32 : i32 to vector<25x64xi32>
    %4 = arith.cmpi sle, %0, %3 : vector<25x64xi32>
    %cst = arith.constant 1.000000e+00 : f32
    %cst_0 = arith.constant -1.000000e+00 : f32
    %5 = vector.broadcast %cst : f32 to vector<25x64xf32>
    %6 = vector.broadcast %cst_0 : f32 to vector<25x64xf32>
    %7 = arith.select %4, %5, %6 : vector<25x64xi1>, vector<25x64xf32>
    %cst_1 = arith.constant 0.000000e+00 : f32
    %8 = vector.broadcast %cst_1 : f32 to vector<25x64xf32>
    %9 = arith.select %2, %8, %7 : vector<25x64xi1>, vector<25x64xf32>
    %c0 = arith.constant 0 : index
    %c64 = arith.constant 64 : index
    %10 = vector.load %arg18[%c0, %c64] : memref<25x128xf32, #tpu.memory_space<vmem>>, vector<25x64xf32>
    tpu.vector_store %arg18[%c0, %c64], %9 {strides = array<i32>} : memref<25x128xf32, #tpu.memory_space<vmem>>, vector<25x64xf32>,
    %c0_2 = arith.constant 0 : index
    %c0_3 = arith.constant 0 : index
    %11 = vector.load %arg9[%c0_2, %c0_3] : memref<128x128xf32, #tpu.memory_space<vmem>>, vector<128x128xf32>
    %c0_4 = arith.constant 0 : index
    %c0_5 = arith.constant 0 : index
    %12 = vector.load %arg10[%c0_4, %c0_5] : memref<128x128xf32, #tpu.memory_space<vmem>>, vector<128x128xf32>
    %c0_6 = arith.constant 0 : index
    %c0_7 = arith.constant 0 : index
    %13 = vector.load %arg11[%c0_6, %c0_7] : memref<128x128xf32, #tpu.memory_space<vmem>>, vector<128x128xf32>
    %c0_8 = arith.constant 0 : index
    %c0_9 = arith.constant 0 : index
    %14 = vector.load %arg15[%c0_8, %c0_9] : memref<128x128xf32, #tpu.memory_space<vmem>>, vector<128x128xf32>
    %c0_10 = arith.constant 0 : index
    %c0_11 = arith.constant 0 : index
    %c0_12 = arith.constant 0 : index
    %15 = vector.load %arg1[%c0_10, %c0_11, %c0_12] : memref<2x25x64xf32, #tpu.memory_space<vmem>>, vector<1x25x64xf32>
    %16 = vector.shape_cast %15 : vector<1x25x64xf32> to vector<25x64xf32>
    %c0_13 = arith.constant 0 : index
    %c0_14 = arith.constant 0 : index
    %17 = vector.load %arg18[%c0_13, %c0_14] : memref<25x128xf32, #tpu.memory_space<vmem>>, vector<25x64xf32>
    tpu.vector_store %arg18[%c0_13, %c0_14], %16 {strides = array<i32>} : memref<25x128xf32, #tpu.memory_space<vmem>>, vector<25x64xf32>,
    %c0_15 = arith.constant 0 : index
    %c0_16 = arith.constant 0 : index
    %18 = vector.load %arg18[%c0_15, %c0_16] : memref<25x128xf32, #tpu.memory_space<vmem>>, vector<25x128xf32>
    %cst_17 = arith.constant dense<0.000000e+00> : vector<25xf32>
    %19 = vector.multi_reduction <add>, %18, %cst_17 [1] : vector<25x128xf32> to vector<25xf32>
    %20 = vector.shape_cast %19 : vector<25xf32> to vector<25x1xf32>
    %cst_18 = arith.constant 1.280000e+02 : f32
    %21 = vector.broadcast %cst_18 : f32 to vector<25x1xf32>
    %22 = arith.divf %20, %21 : vector<25x1xf32>
    %23 = vector.broadcast %22 : vector<25x1xf32> to vector<25x128xf32>
    %24 = arith.subf %18, %23 : vector<25x128xf32>
    %25 = arith.mulf %24, %24 : vector<25x128xf32>
    %cst_19 = arith.constant dense<0.000000e+00> : vector<25xf32>
    %26 = vector.multi_reduction <add>, %25, %cst_19 [1] : vector<25x128xf32> to vector<25xf32>
    %27 = vector.shape_cast %26 : vector<25xf32> to vector<25x1xf32>
    %cst_20 = arith.constant 1.280000e+02 : f32
    %28 = vector.broadcast %cst_20 : f32 to vector<25x1xf32>
    %29 = arith.divf %27, %28 : vector<25x1xf32>
    %30 = vector.broadcast %22 : vector<25x1xf32> to vector<25x128xf32>
    %31 = arith.subf %18, %30 : vector<25x128xf32>
    %cst_21 = arith.constant 9.99999974E-6 : f32
    %32 = vector.broadcast %cst_21 : f32 to vector<25x1xf32>
    %33 = arith.addf %29, %32 : vector<25x1xf32>
    %34 = math.rsqrt %33 : vector<25x1xf32>
    %35 = vector.broadcast %34 : vector<25x1xf32> to vector<25x128xf32>
    %36 = arith.mulf %31, %35 : vector<25x128xf32>
    %c0_22 = arith.constant 0 : index
    %c0_23 = arith.constant 0 : index
    %37 = vector.load %arg5[%c0_22, %c0_23] : memref<1x128xf32, #tpu.memory_space<vmem>>, vector<1x128xf32>
    %38 = vector.broadcast %37 : vector<1x128xf32> to vector<25x128xf32>
    %39 = arith.mulf %36, %38 : vector<25x128xf32>
    %c0_24 = arith.constant 0 : index
    %c0_25 = arith.constant 0 : index
    %40 = vector.load %arg6[%c0_24, %c0_25] : memref<1x128xf32, #tpu.memory_space<vmem>>, vector<1x128xf32>
    %41 = vector.broadcast %40 : vector<1x128xf32> to vector<25x128xf32>
    %42 = arith.addf %39, %41 : vector<25x128xf32>
    %cst_26 = arith.constant dense<0.000000e+00> : vector<25x128xf32>
    %43 = tpu.matmul %42, %11, %cst_26 {dimension_numbers = #tpu.dot_dimension_numbers<[1], [0], [0], [1], [0, 0, 1, 1], [], []>} : vector<25x128xf32>, vector<128x128xf32>, vector<25x128xf32> -> vector<25x128xf32>
    %c0_27 = arith.constant 0 : index
    %c0_28 = arith.constant 0 : index
    %44 = vector.load %arg12[%c0_27, %c0_28] : memref<1x128xf32, #tpu.memory_space<vmem>>, vector<1x128xf32>
    %45 = vector.broadcast %44 : vector<1x128xf32> to vector<25x128xf32>
    %46 = arith.addf %43, %45 : vector<25x128xf32>
    %c0_29 = arith.constant 0 : index
    %c0_30 = arith.constant 0 : index
    %47 = vector.load %arg3[%c0_29, %c0_30] : memref<1x128xf32, #tpu.memory_space<vmem>>, vector<1x128xf32>
    %48 = vector.broadcast %47 : vector<1x128xf32> to vector<25x128xf32>
    %49 = arith.mulf %36, %48 : vector<25x128xf32>
    %c0_31 = arith.constant 0 : index
    %c0_32 = arith.constant 0 : index
    %50 = vector.load %arg4[%c0_31, %c0_32] : memref<1x128xf32, #tpu.memory_space<vmem>>, vector<1x128xf32>
    %51 = vector.broadcast %50 : vector<1x128xf32> to vector<25x128xf32>
    %52 = arith.addf %49, %51 : vector<25x128xf32>
    %cst_33 = arith.constant dense<0.000000e+00> : vector<25x128xf32>
    %53 = tpu.matmul %52, %12, %cst_33 {dimension_numbers = #tpu.dot_dimension_numbers<[1], [0], [0], [1], [0, 0, 1, 1], [], []>} : vector<25x128xf32>, vector<128x128xf32>, vector<25x128xf32> -> vector<25x128xf32>
    %c0_34 = arith.constant 0 : index
    %c0_35 = arith.constant 0 : index
    %54 = vector.load %arg13[%c0_34, %c0_35] : memref<1x128xf32, #tpu.memory_space<vmem>>, vector<1x128xf32>
    %55 = vector.broadcast %54 : vector<1x128xf32> to vector<25x128xf32>
    %56 = arith.addf %53, %55 : vector<25x128xf32>
    %c0_36 = arith.constant 0 : index
    %c0_37 = arith.constant 0 : index
    %57 = vector.load %arg7[%c0_36, %c0_37] : memref<1x128xf32, #tpu.memory_space<vmem>>, vector<1x128xf32>
    %58 = vector.broadcast %57 : vector<1x128xf32> to vector<25x128xf32>
    %59 = arith.mulf %36, %58 : vector<25x128xf32>
    %c0_38 = arith.constant 0 : index
    %c0_39 = arith.constant 0 : index
    %60 = vector.load %arg8[%c0_38, %c0_39] : memref<1x128xf32, #tpu.memory_space<vmem>>, vector<1x128xf32>
    %61 = vector.broadcast %60 : vector<1x128xf32> to vector<25x128xf32>
    %62 = arith.addf %59, %61 : vector<25x128xf32>
    %cst_40 = arith.constant dense<0.000000e+00> : vector<25x128xf32>
    %63 = tpu.matmul %62, %13, %cst_40 {dimension_numbers = #tpu.dot_dimension_numbers<[1], [0], [0], [1], [0, 0, 1, 1], [], []>} : vector<25x128xf32>, vector<128x128xf32>, vector<25x128xf32> -> vector<25x128xf32>
    %c0_41 = arith.constant 0 : index
    %c0_42 = arith.constant 0 : index
    %64 = vector.load %arg14[%c0_41, %c0_42] : memref<1x128xf32, #tpu.memory_space<vmem>>, vector<1x128xf32>
    %65 = vector.broadcast %64 : vector<1x128xf32> to vector<25x128xf32>
    %66 = arith.addf %63, %65 : vector<25x128xf32>
    %c0_43 = arith.constant 0 : index
    %c0_44 = arith.constant 0 : index
    %c0_45 = arith.constant 0 : index
    %67 = vector.load %arg2[%c0_43, %c0_44, %c0_45] : memref<2x1x25xf32, #tpu.memory_space<vmem>>, vector<1x1x25xf32>
    %68 = vector.shape_cast %67 : vector<1x1x25xf32> to vector<1x25xf32>
    %69 = vector.extract_strided_slice %46 {offsets = [0, 0], sizes = [25, 16], strides = [1, 1]} : vector<25x128xf32> to vector<25x16xf32>
    %70 = vector.extract_strided_slice %56 {offsets = [0, 0], sizes = [25, 16], strides = [1, 1]} : vector<25x128xf32> to vector<25x16xf32>
    %71 = vector.extract_strided_slice %66 {offsets = [0, 0], sizes = [25, 16], strides = [1, 1]} : vector<25x128xf32> to vector<25x16xf32>
    %cst_46 = arith.constant dense<0.000000e+00> : vector<25x25xf32>
    %72 = tpu.matmul %69, %70, %cst_46 {dimension_numbers = #tpu.dot_dimension_numbers<[1], [1], [0], [0], [0, 0, 1, 0], [], []>} : vector<25x16xf32>, vector<25x16xf32>, vector<25x25xf32> -> vector<25x25xf32>
    %cst_47 = arith.constant 2.500000e-01 : f32
    %73 = vector.broadcast %cst_47 : f32 to vector<25x25xf32>
    %74 = arith.mulf %73, %72 : vector<25x25xf32>
    %75 = vector.broadcast %68 : vector<1x25xf32> to vector<25x25xf32>
    %76 = arith.addf %74, %75 : vector<25x25xf32>
    %cst_48 = arith.constant dense<0xFF800000> : vector<25xf32>
    %77 = vector.multi_reduction <maximumf>, %76, %cst_48 [1] : vector<25x25xf32> to vector<25xf32>
    %78 = vector.shape_cast %77 : vector<25xf32> to vector<25x1xf32>
    %79 = vector.broadcast %78 : vector<25x1xf32> to vector<25x25xf32>
    %80 = arith.subf %76, %79 : vector<25x25xf32>
    %81 = math.exp %80 : vector<25x25xf32>
    %cst_49 = arith.constant dense<0.000000e+00> : vector<25xf32>
    %82 = vector.multi_reduction <add>, %81, %cst_49 [1] : vector<25x25xf32> to vector<25xf32>
    %83 = vector.shape_cast %82 : vector<25xf32> to vector<25x1xf32>
    %84 = tpu.reciprocal %83 {approx = true} : vector<25x1xf32> -> vector<25x1xf32>
    %85 = vector.broadcast %84 : vector<25x1xf32> to vector<25x25xf32>
    %86 = arith.mulf %81, %85 : vector<25x25xf32>
    %cst_50 = arith.constant dense<0.000000e+00> : vector<25x16xf32>
    %87 = tpu.matmul %86, %71, %cst_50 {dimension_numbers = #tpu.dot_dimension_numbers<[1], [0], [0], [1], [0, 0, 1, 1], [], []>} : vector<25x25xf32>, vector<25x16xf32>, vector<25x16xf32> -> vector<25x16xf32>
    %c0_51 = arith.constant 0 : index
    %c0_52 = arith.constant 0 : index
    %88 = vector.load %arg19[%c0_51, %c0_52] : memref<25x128xf32, #tpu.memory_space<vmem>>, vector<25x16xf32>
    tpu.vector_store %arg19[%c0_51, %c0_52], %87 {strides = array<i32>} : memref<25x128xf32, #tpu.memory_space<vmem>>, vector<25x16xf32>,
    %89 = vector.extract_strided_slice %46 {offsets = [0, 16], sizes = [25, 16], strides = [1, 1]} : vector<25x128xf32> to vector<25x16xf32>
    %90 = vector.extract_strided_slice %56 {offsets = [0, 16], sizes = [25, 16], strides = [1, 1]} : vector<25x128xf32> to vector<25x16xf32>
    %91 = vector.extract_strided_slice %66 {offsets = [0, 16], sizes = [25, 16], strides = [1, 1]} : vector<25x128xf32> to vector<25x16xf32>
    %cst_53 = arith.constant dense<0.000000e+00> : vector<25x25xf32>
    %92 = tpu.matmul %89, %90, %cst_53 {dimension_numbers = #tpu.dot_dimension_numbers<[1], [1], [0], [0], [0, 0, 1, 0], [], []>} : vector<25x16xf32>, vector<25x16xf32>, vector<25x25xf32> -> vector<25x25xf32>
    %cst_54 = arith.constant 2.500000e-01 : f32
    %93 = vector.broadcast %cst_54 : f32 to vector<25x25xf32>
    %94 = arith.mulf %93, %92 : vector<25x25xf32>
    %95 = vector.broadcast %68 : vector<1x25xf32> to vector<25x25xf32>
    %96 = arith.addf %94, %95 : vector<25x25xf32>
    %cst_55 = arith.constant dense<0xFF800000> : vector<25xf32>
    %97 = vector.multi_reduction <maximumf>, %96, %cst_55 [1] : vector<25x25xf32> to vector<25xf32>
    %98 = vector.shape_cast %97 : vector<25xf32> to vector<25x1xf32>
    %99 = vector.broadcast %98 : vector<25x1xf32> to vector<25x25xf32>
    %100 = arith.subf %96, %99 : vector<25x25xf32>
    %101 = math.exp %100 : vector<25x25xf32>
    %cst_56 = arith.constant dense<0.000000e+00> : vector<25xf32>
    %102 = vector.multi_reduction <add>, %101, %cst_56 [1] : vector<25x25xf32> to vector<25xf32>
    %103 = vector.shape_cast %102 : vector<25xf32> to vector<25x1xf32>
    %104 = tpu.reciprocal %103 {approx = true} : vector<25x1xf32> -> vector<25x1xf32>
    %105 = vector.broadcast %104 : vector<25x1xf32> to vector<25x25xf32>
    %106 = arith.mulf %101, %105 : vector<25x25xf32>
    %cst_57 = arith.constant dense<0.000000e+00> : vector<25x16xf32>
    %107 = tpu.matmul %106, %91, %cst_57 {dimension_numbers = #tpu.dot_dimension_numbers<[1], [0], [0], [1], [0, 0, 1, 1], [], []>} : vector<25x25xf32>, vector<25x16xf32>, vector<25x16xf32> -> vector<25x16xf32>
    %c0_58 = arith.constant 0 : index
    %c16 = arith.constant 16 : index
    %108 = vector.load %arg19[%c0_58, %c16] : memref<25x128xf32, #tpu.memory_space<vmem>>, vector<25x16xf32>
    tpu.vector_store %arg19[%c0_58, %c16], %107 {strides = array<i32>} : memref<25x128xf32, #tpu.memory_space<vmem>>, vector<25x16xf32>,
    %109 = vector.extract_strided_slice %46 {offsets = [0, 32], sizes = [25, 16], strides = [1, 1]} : vector<25x128xf32> to vector<25x16xf32>
    %110 = vector.extract_strided_slice %56 {offsets = [0, 32], sizes = [25, 16], strides = [1, 1]} : vector<25x128xf32> to vector<25x16xf32>
    %111 = vector.extract_strided_slice %66 {offsets = [0, 32], sizes = [25, 16], strides = [1, 1]} : vector<25x128xf32> to vector<25x16xf32>
    %cst_59 = arith.constant dense<0.000000e+00> : vector<25x25xf32>
    %112 = tpu.matmul %109, %110, %cst_59 {dimension_numbers = #tpu.dot_dimension_numbers<[1], [1], [0], [0], [0, 0, 1, 0], [], []>} : vector<25x16xf32>, vector<25x16xf32>, vector<25x25xf32> -> vector<25x25xf32>
    %cst_60 = arith.constant 2.500000e-01 : f32
    %113 = vector.broadcast %cst_60 : f32 to vector<25x25xf32>
    %114 = arith.mulf %113, %112 : vector<25x25xf32>
    %115 = vector.broadcast %68 : vector<1x25xf32> to vector<25x25xf32>
    %116 = arith.addf %114, %115 : vector<25x25xf32>
    %cst_61 = arith.constant dense<0xFF800000> : vector<25xf32>
    %117 = vector.multi_reduction <maximumf>, %116, %cst_61 [1] : vector<25x25xf32> to vector<25xf32>
    %118 = vector.shape_cast %117 : vector<25xf32> to vector<25x1xf32>
    %119 = vector.broadcast %118 : vector<25x1xf32> to vector<25x25xf32>
    %120 = arith.subf %116, %119 : vector<25x25xf32>
    %121 = math.exp %120 : vector<25x25xf32>
    %cst_62 = arith.constant dense<0.000000e+00> : vector<25xf32>
    %122 = vector.multi_reduction <add>, %121, %cst_62 [1] : vector<25x25xf32> to vector<25xf32>
    %123 = vector.shape_cast %122 : vector<25xf32> to vector<25x1xf32>
    %124 = tpu.reciprocal %123 {approx = true} : vector<25x1xf32> -> vector<25x1xf32>
    %125 = vector.broadcast %124 : vector<25x1xf32> to vector<25x25xf32>
    %126 = arith.mulf %121, %125 : vector<25x25xf32>
    %cst_63 = arith.constant dense<0.000000e+00> : vector<25x16xf32>
    %127 = tpu.matmul %126, %111, %cst_63 {dimension_numbers = #tpu.dot_dimension_numbers<[1], [0], [0], [1], [0, 0, 1, 1], [], []>} : vector<25x25xf32>, vector<25x16xf32>, vector<25x16xf32> -> vector<25x16xf32>
    %c0_64 = arith.constant 0 : index
    %c32 = arith.constant 32 : index
    %128 = vector.load %arg19[%c0_64, %c32] : memref<25x128xf32, #tpu.memory_space<vmem>>, vector<25x16xf32>
    tpu.vector_store %arg19[%c0_64, %c32], %127 {strides = array<i32>} : memref<25x128xf32, #tpu.memory_space<vmem>>, vector<25x16xf32>,
    %129 = vector.extract_strided_slice %46 {offsets = [0, 48], sizes = [25, 16], strides = [1, 1]} : vector<25x128xf32> to vector<25x16xf32>
    %130 = vector.extract_strided_slice %56 {offsets = [0, 48], sizes = [25, 16], strides = [1, 1]} : vector<25x128xf32> to vector<25x16xf32>
    %131 = vector.extract_strided_slice %66 {offsets = [0, 48], sizes = [25, 16], strides = [1, 1]} : vector<25x128xf32> to vector<25x16xf32>
    %cst_65 = arith.constant dense<0.000000e+00> : vector<25x25xf32>
    %132 = tpu.matmul %129, %130, %cst_65 {dimension_numbers = #tpu.dot_dimension_numbers<[1], [1], [0], [0], [0, 0, 1, 0], [], []>} : vector<25x16xf32>, vector<25x16xf32>, vector<25x25xf32> -> vector<25x25xf32>
    %cst_66 = arith.constant 2.500000e-01 : f32
    %133 = vector.broadcast %cst_66 : f32 to vector<25x25xf32>
    %134 = arith.mulf %133, %132 : vector<25x25xf32>
    %135 = vector.broadcast %68 : vector<1x25xf32> to vector<25x25xf32>
    %136 = arith.addf %134, %135 : vector<25x25xf32>
    %cst_67 = arith.constant dense<0xFF800000> : vector<25xf32>
    %137 = vector.multi_reduction <maximumf>, %136, %cst_67 [1] : vector<25x25xf32> to vector<25xf32>
    %138 = vector.shape_cast %137 : vector<25xf32> to vector<25x1xf32>
    %139 = vector.broadcast %138 : vector<25x1xf32> to vector<25x25xf32>
    %140 = arith.subf %136, %139 : vector<25x25xf32>
    %141 = math.exp %140 : vector<25x25xf32>
    %cst_68 = arith.constant dense<0.000000e+00> : vector<25xf32>
    %142 = vector.multi_reduction <add>, %141, %cst_68 [1] : vector<25x25xf32> to vector<25xf32>
    %143 = vector.shape_cast %142 : vector<25xf32> to vector<25x1xf32>
    %144 = tpu.reciprocal %143 {approx = true} : vector<25x1xf32> -> vector<25x1xf32>
    %145 = vector.broadcast %144 : vector<25x1xf32> to vector<25x25xf32>
    %146 = arith.mulf %141, %145 : vector<25x25xf32>
    %cst_69 = arith.constant dense<0.000000e+00> : vector<25x16xf32>
    %147 = tpu.matmul %146, %131, %cst_69 {dimension_numbers = #tpu.dot_dimension_numbers<[1], [0], [0], [1], [0, 0, 1, 1], [], []>} : vector<25x25xf32>, vector<25x16xf32>, vector<25x16xf32> -> vector<25x16xf32>
    %c0_70 = arith.constant 0 : index
    %c48 = arith.constant 48 : index
    %148 = vector.load %arg19[%c0_70, %c48] : memref<25x128xf32, #tpu.memory_space<vmem>>, vector<25x16xf32>
    tpu.vector_store %arg19[%c0_70, %c48], %147 {strides = array<i32>} : memref<25x128xf32, #tpu.memory_space<vmem>>, vector<25x16xf32>,
    %149 = vector.extract_strided_slice %46 {offsets = [0, 64], sizes = [25, 16], strides = [1, 1]} : vector<25x128xf32> to vector<25x16xf32>
    %150 = vector.extract_strided_slice %56 {offsets = [0, 64], sizes = [25, 16], strides = [1, 1]} : vector<25x128xf32> to vector<25x16xf32>
    %151 = vector.extract_strided_slice %66 {offsets = [0, 64], sizes = [25, 16], strides = [1, 1]} : vector<25x128xf32> to vector<25x16xf32>
    %cst_71 = arith.constant dense<0.000000e+00> : vector<25x25xf32>
    %152 = tpu.matmul %149, %150, %cst_71 {dimension_numbers = #tpu.dot_dimension_numbers<[1], [1], [0], [0], [0, 0, 1, 0], [], []>} : vector<25x16xf32>, vector<25x16xf32>, vector<25x25xf32> -> vector<25x25xf32>
    %cst_72 = arith.constant 2.500000e-01 : f32
    %153 = vector.broadcast %cst_72 : f32 to vector<25x25xf32>
    %154 = arith.mulf %153, %152 : vector<25x25xf32>
    %155 = vector.broadcast %68 : vector<1x25xf32> to vector<25x25xf32>
    %156 = arith.addf %154, %155 : vector<25x25xf32>
    %cst_73 = arith.constant dense<0xFF800000> : vector<25xf32>
    %157 = vector.multi_reduction <maximumf>, %156, %cst_73 [1] : vector<25x25xf32> to vector<25xf32>
    %158 = vector.shape_cast %157 : vector<25xf32> to vector<25x1xf32>
    %159 = vector.broadcast %158 : vector<25x1xf32> to vector<25x25xf32>
    %160 = arith.subf %156, %159 : vector<25x25xf32>
    %161 = math.exp %160 : vector<25x25xf32>
    %cst_74 = arith.constant dense<0.000000e+00> : vector<25xf32>
    %162 = vector.multi_reduction <add>, %161, %cst_74 [1] : vector<25x25xf32> to vector<25xf32>
    %163 = vector.shape_cast %162 : vector<25xf32> to vector<25x1xf32>
    %164 = tpu.reciprocal %163 {approx = true} : vector<25x1xf32> -> vector<25x1xf32>
    %165 = vector.broadcast %164 : vector<25x1xf32> to vector<25x25xf32>
    %166 = arith.mulf %161, %165 : vector<25x25xf32>
    %cst_75 = arith.constant dense<0.000000e+00> : vector<25x16xf32>
    %167 = tpu.matmul %166, %151, %cst_75 {dimension_numbers = #tpu.dot_dimension_numbers<[1], [0], [0], [1], [0, 0, 1, 1], [], []>} : vector<25x25xf32>, vector<25x16xf32>, vector<25x16xf32> -> vector<25x16xf32>
    %c0_76 = arith.constant 0 : index
    %c64_77 = arith.constant 64 : index
    %168 = vector.load %arg19[%c0_76, %c64_77] : memref<25x128xf32, #tpu.memory_space<vmem>>, vector<25x16xf32>
    tpu.vector_store %arg19[%c0_76, %c64_77], %167 {strides = array<i32>} : memref<25x128xf32, #tpu.memory_space<vmem>>, vector<25x16xf32>,
    %169 = vector.extract_strided_slice %46 {offsets = [0, 80], sizes = [25, 16], strides = [1, 1]} : vector<25x128xf32> to vector<25x16xf32>
    %170 = vector.extract_strided_slice %56 {offsets = [0, 80], sizes = [25, 16], strides = [1, 1]} : vector<25x128xf32> to vector<25x16xf32>
    %171 = vector.extract_strided_slice %66 {offsets = [0, 80], sizes = [25, 16], strides = [1, 1]} : vector<25x128xf32> to vector<25x16xf32>
    %cst_78 = arith.constant dense<0.000000e+00> : vector<25x25xf32>
    %172 = tpu.matmul %169, %170, %cst_78 {dimension_numbers = #tpu.dot_dimension_numbers<[1], [1], [0], [0], [0, 0, 1, 0], [], []>} : vector<25x16xf32>, vector<25x16xf32>, vector<25x25xf32> -> vector<25x25xf32>
    %cst_79 = arith.constant 2.500000e-01 : f32
    %173 = vector.broadcast %cst_79 : f32 to vector<25x25xf32>
    %174 = arith.mulf %173, %172 : vector<25x25xf32>
    %175 = vector.broadcast %68 : vector<1x25xf32> to vector<25x25xf32>
    %176 = arith.addf %174, %175 : vector<25x25xf32>
    %cst_80 = arith.constant dense<0xFF800000> : vector<25xf32>
    %177 = vector.multi_reduction <maximumf>, %176, %cst_80 [1] : vector<25x25xf32> to vector<25xf32>
    %178 = vector.shape_cast %177 : vector<25xf32> to vector<25x1xf32>
    %179 = vector.broadcast %178 : vector<25x1xf32> to vector<25x25xf32>
    %180 = arith.subf %176, %179 : vector<25x25xf32>
    %181 = math.exp %180 : vector<25x25xf32>
    %cst_81 = arith.constant dense<0.000000e+00> : vector<25xf32>
    %182 = vector.multi_reduction <add>, %181, %cst_81 [1] : vector<25x25xf32> to vector<25xf32>
    %183 = vector.shape_cast %182 : vector<25xf32> to vector<25x1xf32>
    %184 = tpu.reciprocal %183 {approx = true} : vector<25x1xf32> -> vector<25x1xf32>
    %185 = vector.broadcast %184 : vector<25x1xf32> to vector<25x25xf32>
    %186 = arith.mulf %181, %185 : vector<25x25xf32>
    %cst_82 = arith.constant dense<0.000000e+00> : vector<25x16xf32>
    %187 = tpu.matmul %186, %171, %cst_82 {dimension_numbers = #tpu.dot_dimension_numbers<[1], [0], [0], [1], [0, 0, 1, 1], [], []>} : vector<25x25xf32>, vector<25x16xf32>, vector<25x16xf32> -> vector<25x16xf32>
    %c0_83 = arith.constant 0 : index
    %c80 = arith.constant 80 : index
    %188 = vector.load %arg19[%c0_83, %c80] : memref<25x128xf32, #tpu.memory_space<vmem>>, vector<25x16xf32>
    tpu.vector_store %arg19[%c0_83, %c80], %187 {strides = array<i32>} : memref<25x128xf32, #tpu.memory_space<vmem>>, vector<25x16xf32>,
    %189 = vector.extract_strided_slice %46 {offsets = [0, 96], sizes = [25, 16], strides = [1, 1]} : vector<25x128xf32> to vector<25x16xf32>
    %190 = vector.extract_strided_slice %56 {offsets = [0, 96], sizes = [25, 16], strides = [1, 1]} : vector<25x128xf32> to vector<25x16xf32>
    %191 = vector.extract_strided_slice %66 {offsets = [0, 96], sizes = [25, 16], strides = [1, 1]} : vector<25x128xf32> to vector<25x16xf32>
    %cst_84 = arith.constant dense<0.000000e+00> : vector<25x25xf32>
    %192 = tpu.matmul %189, %190, %cst_84 {dimension_numbers = #tpu.dot_dimension_numbers<[1], [1], [0], [0], [0, 0, 1, 0], [], []>} : vector<25x16xf32>, vector<25x16xf32>, vector<25x25xf32> -> vector<25x25xf32>
    %cst_85 = arith.constant 2.500000e-01 : f32
    %193 = vector.broadcast %cst_85 : f32 to vector<25x25xf32>
    %194 = arith.mulf %193, %192 : vector<25x25xf32>
    %195 = vector.broadcast %68 : vector<1x25xf32> to vector<25x25xf32>
    %196 = arith.addf %194, %195 : vector<25x25xf32>
    %cst_86 = arith.constant dense<0xFF800000> : vector<25xf32>
    %197 = vector.multi_reduction <maximumf>, %196, %cst_86 [1] : vector<25x25xf32> to vector<25xf32>
    %198 = vector.shape_cast %197 : vector<25xf32> to vector<25x1xf32>
    %199 = vector.broadcast %198 : vector<25x1xf32> to vector<25x25xf32>
    %200 = arith.subf %196, %199 : vector<25x25xf32>
    %201 = math.exp %200 : vector<25x25xf32>
    %cst_87 = arith.constant dense<0.000000e+00> : vector<25xf32>
    %202 = vector.multi_reduction <add>, %201, %cst_87 [1] : vector<25x25xf32> to vector<25xf32>
    %203 = vector.shape_cast %202 : vector<25xf32> to vector<25x1xf32>
    %204 = tpu.reciprocal %203 {approx = true} : vector<25x1xf32> -> vector<25x1xf32>
    %205 = vector.broadcast %204 : vector<25x1xf32> to vector<25x25xf32>
    %206 = arith.mulf %201, %205 : vector<25x25xf32>
    %cst_88 = arith.constant dense<0.000000e+00> : vector<25x16xf32>
    %207 = tpu.matmul %206, %191, %cst_88 {dimension_numbers = #tpu.dot_dimension_numbers<[1], [0], [0], [1], [0, 0, 1, 1], [], []>} : vector<25x25xf32>, vector<25x16xf32>, vector<25x16xf32> -> vector<25x16xf32>
    %c0_89 = arith.constant 0 : index
    %c96 = arith.constant 96 : index
    %208 = vector.load %arg19[%c0_89, %c96] : memref<25x128xf32, #tpu.memory_space<vmem>>, vector<25x16xf32>
    tpu.vector_store %arg19[%c0_89, %c96], %207 {strides = array<i32>} : memref<25x128xf32, #tpu.memory_space<vmem>>, vector<25x16xf32>,
    %209 = vector.extract_strided_slice %46 {offsets = [0, 112], sizes = [25, 16], strides = [1, 1]} : vector<25x128xf32> to vector<25x16xf32>
    %210 = vector.extract_strided_slice %56 {offsets = [0, 112], sizes = [25, 16], strides = [1, 1]} : vector<25x128xf32> to vector<25x16xf32>
    %211 = vector.extract_strided_slice %66 {offsets = [0, 112], sizes = [25, 16], strides = [1, 1]} : vector<25x128xf32> to vector<25x16xf32>
    %cst_90 = arith.constant dense<0.000000e+00> : vector<25x25xf32>
    %212 = tpu.matmul %209, %210, %cst_90 {dimension_numbers = #tpu.dot_dimension_numbers<[1], [1], [0], [0], [0, 0, 1, 0], [], []>} : vector<25x16xf32>, vector<25x16xf32>, vector<25x25xf32> -> vector<25x25xf32>
    %cst_91 = arith.constant 2.500000e-01 : f32
    %213 = vector.broadcast %cst_91 : f32 to vector<25x25xf32>
    %214 = arith.mulf %213, %212 : vector<25x25xf32>
    %215 = vector.broadcast %68 : vector<1x25xf32> to vector<25x25xf32>
    %216 = arith.addf %214, %215 : vector<25x25xf32>
    %cst_92 = arith.constant dense<0xFF800000> : vector<25xf32>
    %217 = vector.multi_reduction <maximumf>, %216, %cst_92 [1] : vector<25x25xf32> to vector<25xf32>
    %218 = vector.shape_cast %217 : vector<25xf32> to vector<25x1xf32>
    %219 = vector.broadcast %218 : vector<25x1xf32> to vector<25x25xf32>
    %220 = arith.subf %216, %219 : vector<25x25xf32>
    %221 = math.exp %220 : vector<25x25xf32>
    %cst_93 = arith.constant dense<0.000000e+00> : vector<25xf32>
    %222 = vector.multi_reduction <add>, %221, %cst_93 [1] : vector<25x25xf32> to vector<25xf32>
    %223 = vector.shape_cast %222 : vector<25xf32> to vector<25x1xf32>
    %224 = tpu.reciprocal %223 {approx = true} : vector<25x1xf32> -> vector<25x1xf32>
    %225 = vector.broadcast %224 : vector<25x1xf32> to vector<25x25xf32>
    %226 = arith.mulf %221, %225 : vector<25x25xf32>
    %cst_94 = arith.constant dense<0.000000e+00> : vector<25x16xf32>
    %227 = tpu.matmul %226, %211, %cst_94 {dimension_numbers = #tpu.dot_dimension_numbers<[1], [0], [0], [1], [0, 0, 1, 1], [], []>} : vector<25x25xf32>, vector<25x16xf32>, vector<25x16xf32> -> vector<25x16xf32>
    %c0_95 = arith.constant 0 : index
    %c112 = arith.constant 112 : index
    %228 = vector.load %arg19[%c0_95, %c112] : memref<25x128xf32, #tpu.memory_space<vmem>>, vector<25x16xf32>
    tpu.vector_store %arg19[%c0_95, %c112], %227 {strides = array<i32>} : memref<25x128xf32, #tpu.memory_space<vmem>>, vector<25x16xf32>,
    %c0_96 = arith.constant 0 : index
    %c0_97 = arith.constant 0 : index
    %229 = vector.load %arg19[%c0_96, %c0_97] : memref<25x128xf32, #tpu.memory_space<vmem>>, vector<25x128xf32>
    %cst_98 = arith.constant dense<0.000000e+00> : vector<25x128xf32>
    %230 = tpu.matmul %229, %14, %cst_98 {dimension_numbers = #tpu.dot_dimension_numbers<[1], [0], [0], [1], [0, 0, 1, 1], [], []>} : vector<25x128xf32>, vector<128x128xf32>, vector<25x128xf32> -> vector<25x128xf32>
    %c0_99 = arith.constant 0 : index
    %c0_100 = arith.constant 0 : index
    %231 = vector.load %arg16[%c0_99, %c0_100] : memref<1x128xf32, #tpu.memory_space<vmem>>, vector<1x128xf32>
    %232 = vector.broadcast %231 : vector<1x128xf32> to vector<25x128xf32>
    %233 = arith.addf %230, %232 : vector<25x128xf32>
    %234 = arith.addf %18, %233 : vector<25x128xf32>
    %c0_101 = arith.constant 0 : index
    %c0_102 = arith.constant 0 : index
    %c0_103 = arith.constant 0 : index
    %235 = vector.load %arg17[%c0_101, %c0_102, %c0_103] : memref<2x25x128xf32, #tpu.memory_space<vmem>>, vector<1x25x128xf32>
    %236 = vector.shape_cast %235 : vector<1x25x128xf32> to vector<25x128xf32>
    %237 = vector.shape_cast %234 : vector<25x128xf32> to vector<1x25x128xf32>
    tpu.vector_store %arg17[%c0_101, %c0_102, %c0_103], %237 {strides = array<i32>} : memref<2x25x128xf32, #tpu.memory_space<vmem>>, vector<1x25x128xf32>,
    %c1 = arith.constant 1 : index
    %c0_104 = arith.constant 0 : index
    %c0_105 = arith.constant 0 : index
    %238 = vector.load %arg1[%c1, %c0_104, %c0_105] : memref<2x25x64xf32, #tpu.memory_space<vmem>>, vector<1x25x64xf32>
    %239 = vector.shape_cast %238 : vector<1x25x64xf32> to vector<25x64xf32>
    %c0_106 = arith.constant 0 : index
    %c0_107 = arith.constant 0 : index
    %240 = vector.load %arg18[%c0_106, %c0_107] : memref<25x128xf32, #tpu.memory_space<vmem>>, vector<25x64xf32>
    tpu.vector_store %arg18[%c0_106, %c0_107], %239 {strides = array<i32>} : memref<25x128xf32, #tpu.memory_space<vmem>>, vector<25x64xf32>,
    %c0_108 = arith.constant 0 : index
    %c0_109 = arith.constant 0 : index
    %241 = vector.load %arg18[%c0_108, %c0_109] : memref<25x128xf32, #tpu.memory_space<vmem>>, vector<25x128xf32>
    %cst_110 = arith.constant dense<0.000000e+00> : vector<25xf32>
    %242 = vector.multi_reduction <add>, %241, %cst_110 [1] : vector<25x128xf32> to vector<25xf32>
    %243 = vector.shape_cast %242 : vector<25xf32> to vector<25x1xf32>
    %cst_111 = arith.constant 1.280000e+02 : f32
    %244 = vector.broadcast %cst_111 : f32 to vector<25x1xf32>
    %245 = arith.divf %243, %244 : vector<25x1xf32>
    %246 = vector.broadcast %245 : vector<25x1xf32> to vector<25x128xf32>
    %247 = arith.subf %241, %246 : vector<25x128xf32>
    %248 = arith.mulf %247, %247 : vector<25x128xf32>
    %cst_112 = arith.constant dense<0.000000e+00> : vector<25xf32>
    %249 = vector.multi_reduction <add>, %248, %cst_112 [1] : vector<25x128xf32> to vector<25xf32>
    %250 = vector.shape_cast %249 : vector<25xf32> to vector<25x1xf32>
    %cst_113 = arith.constant 1.280000e+02 : f32
    %251 = vector.broadcast %cst_113 : f32 to vector<25x1xf32>
    %252 = arith.divf %250, %251 : vector<25x1xf32>
    %253 = vector.broadcast %245 : vector<25x1xf32> to vector<25x128xf32>
    %254 = arith.subf %241, %253 : vector<25x128xf32>
    %cst_114 = arith.constant 9.99999974E-6 : f32
    %255 = vector.broadcast %cst_114 : f32 to vector<25x1xf32>
    %256 = arith.addf %252, %255 : vector<25x1xf32>
    %257 = math.rsqrt %256 : vector<25x1xf32>
    %258 = vector.broadcast %257 : vector<25x1xf32> to vector<25x128xf32>
    %259 = arith.mulf %254, %258 : vector<25x128xf32>
    %c0_115 = arith.constant 0 : index
    %c0_116 = arith.constant 0 : index
    %260 = vector.load %arg5[%c0_115, %c0_116] : memref<1x128xf32, #tpu.memory_space<vmem>>, vector<1x128xf32>
    %261 = vector.broadcast %260 : vector<1x128xf32> to vector<25x128xf32>
    %262 = arith.mulf %259, %261 : vector<25x128xf32>
    %c0_117 = arith.constant 0 : index
    %c0_118 = arith.constant 0 : index
    %263 = vector.load %arg6[%c0_117, %c0_118] : memref<1x128xf32, #tpu.memory_space<vmem>>, vector<1x128xf32>
    %264 = vector.broadcast %263 : vector<1x128xf32> to vector<25x128xf32>
    %265 = arith.addf %262, %264 : vector<25x128xf32>
    %cst_119 = arith.constant dense<0.000000e+00> : vector<25x128xf32>
    %266 = tpu.matmul %265, %11, %cst_119 {dimension_numbers = #tpu.dot_dimension_numbers<[1], [0], [0], [1], [0, 0, 1, 1], [], []>} : vector<25x128xf32>, vector<128x128xf32>, vector<25x128xf32> -> vector<25x128xf32>
    %c0_120 = arith.constant 0 : index
    %c0_121 = arith.constant 0 : index
    %267 = vector.load %arg12[%c0_120, %c0_121] : memref<1x128xf32, #tpu.memory_space<vmem>>, vector<1x128xf32>
    %268 = vector.broadcast %267 : vector<1x128xf32> to vector<25x128xf32>
    %269 = arith.addf %266, %268 : vector<25x128xf32>
    %c0_122 = arith.constant 0 : index
    %c0_123 = arith.constant 0 : index
    %270 = vector.load %arg3[%c0_122, %c0_123] : memref<1x128xf32, #tpu.memory_space<vmem>>, vector<1x128xf32>
    %271 = vector.broadcast %270 : vector<1x128xf32> to vector<25x128xf32>
    %272 = arith.mulf %259, %271 : vector<25x128xf32>
    %c0_124 = arith.constant 0 : index
    %c0_125 = arith.constant 0 : index
    %273 = vector.load %arg4[%c0_124, %c0_125] : memref<1x128xf32, #tpu.memory_space<vmem>>, vector<1x128xf32>
    %274 = vector.broadcast %273 : vector<1x128xf32> to vector<25x128xf32>
    %275 = arith.addf %272, %274 : vector<25x128xf32>
    %cst_126 = arith.constant dense<0.000000e+00> : vector<25x128xf32>
    %276 = tpu.matmul %275, %12, %cst_126 {dimension_numbers = #tpu.dot_dimension_numbers<[1], [0], [0], [1], [0, 0, 1, 1], [], []>} : vector<25x128xf32>, vector<128x128xf32>, vector<25x128xf32> -> vector<25x128xf32>
    %c0_127 = arith.constant 0 : index
    %c0_128 = arith.constant 0 : index
    %277 = vector.load %arg13[%c0_127, %c0_128] : memref<1x128xf32, #tpu.memory_space<vmem>>, vector<1x128xf32>
    %278 = vector.broadcast %277 : vector<1x128xf32> to vector<25x128xf32>
    %279 = arith.addf %276, %278 : vector<25x128xf32>
    %c0_129 = arith.constant 0 : index
    %c0_130 = arith.constant 0 : index
    %280 = vector.load %arg7[%c0_129, %c0_130] : memref<1x128xf32, #tpu.memory_space<vmem>>, vector<1x128xf32>
    %281 = vector.broadcast %280 : vector<1x128xf32> to vector<25x128xf32>
    %282 = arith.mulf %259, %281 : vector<25x128xf32>
    %c0_131 = arith.constant 0 : index
    %c0_132 = arith.constant 0 : index
    %283 = vector.load %arg8[%c0_131, %c0_132] : memref<1x128xf32, #tpu.memory_space<vmem>>, vector<1x128xf32>
    %284 = vector.broadcast %283 : vector<1x128xf32> to vector<25x128xf32>
    %285 = arith.addf %282, %284 : vector<25x128xf32>
    %cst_133 = arith.constant dense<0.000000e+00> : vector<25x128xf32>
    %286 = tpu.matmul %285, %13, %cst_133 {dimension_numbers = #tpu.dot_dimension_numbers<[1], [0], [0], [1], [0, 0, 1, 1], [], []>} : vector<25x128xf32>, vector<128x128xf32>, vector<25x128xf32> -> vector<25x128xf32>
    %c0_134 = arith.constant 0 : index
    %c0_135 = arith.constant 0 : index
    %287 = vector.load %arg14[%c0_134, %c0_135] : memref<1x128xf32, #tpu.memory_space<vmem>>, vector<1x128xf32>
    %288 = vector.broadcast %287 : vector<1x128xf32> to vector<25x128xf32>
    %289 = arith.addf %286, %288 : vector<25x128xf32>
    %c1_136 = arith.constant 1 : index
    %c0_137 = arith.constant 0 : index
    %c0_138 = arith.constant 0 : index
    %290 = vector.load %arg2[%c1_136, %c0_137, %c0_138] : memref<2x1x25xf32, #tpu.memory_space<vmem>>, vector<1x1x25xf32>
    %291 = vector.shape_cast %290 : vector<1x1x25xf32> to vector<1x25xf32>
    %292 = vector.extract_strided_slice %269 {offsets = [0, 0], sizes = [25, 16], strides = [1, 1]} : vector<25x128xf32> to vector<25x16xf32>
    %293 = vector.extract_strided_slice %279 {offsets = [0, 0], sizes = [25, 16], strides = [1, 1]} : vector<25x128xf32> to vector<25x16xf32>
    %294 = vector.extract_strided_slice %289 {offsets = [0, 0], sizes = [25, 16], strides = [1, 1]} : vector<25x128xf32> to vector<25x16xf32>
    %cst_139 = arith.constant dense<0.000000e+00> : vector<25x25xf32>
    %295 = tpu.matmul %292, %293, %cst_139 {dimension_numbers = #tpu.dot_dimension_numbers<[1], [1], [0], [0], [0, 0, 1, 0], [], []>} : vector<25x16xf32>, vector<25x16xf32>, vector<25x25xf32> -> vector<25x25xf32>
    %cst_140 = arith.constant 2.500000e-01 : f32
    %296 = vector.broadcast %cst_140 : f32 to vector<25x25xf32>
    %297 = arith.mulf %296, %295 : vector<25x25xf32>
    %298 = vector.broadcast %291 : vector<1x25xf32> to vector<25x25xf32>
    %299 = arith.addf %297, %298 : vector<25x25xf32>
    %cst_141 = arith.constant dense<0xFF800000> : vector<25xf32>
    %300 = vector.multi_reduction <maximumf>, %299, %cst_141 [1] : vector<25x25xf32> to vector<25xf32>
    %301 = vector.shape_cast %300 : vector<25xf32> to vector<25x1xf32>
    %302 = vector.broadcast %301 : vector<25x1xf32> to vector<25x25xf32>
    %303 = arith.subf %299, %302 : vector<25x25xf32>
    %304 = math.exp %303 : vector<25x25xf32>
    %cst_142 = arith.constant dense<0.000000e+00> : vector<25xf32>
    %305 = vector.multi_reduction <add>, %304, %cst_142 [1] : vector<25x25xf32> to vector<25xf32>
    %306 = vector.shape_cast %305 : vector<25xf32> to vector<25x1xf32>
    %307 = tpu.reciprocal %306 {approx = true} : vector<25x1xf32> -> vector<25x1xf32>
    %308 = vector.broadcast %307 : vector<25x1xf32> to vector<25x25xf32>
    %309 = arith.mulf %304, %308 : vector<25x25xf32>
    %cst_143 = arith.constant dense<0.000000e+00> : vector<25x16xf32>
    %310 = tpu.matmul %309, %294, %cst_143 {dimension_numbers = #tpu.dot_dimension_numbers<[1], [0], [0], [1], [0, 0, 1, 1], [], []>} : vector<25x25xf32>, vector<25x16xf32>, vector<25x16xf32> -> vector<25x16xf32>
    %c0_144 = arith.constant 0 : index
    %c0_145 = arith.constant 0 : index
    %311 = vector.load %arg19[%c0_144, %c0_145] : memref<25x128xf32, #tpu.memory_space<vmem>>, vector<25x16xf32>
    tpu.vector_store %arg19[%c0_144, %c0_145], %310 {strides = array<i32>} : memref<25x128xf32, #tpu.memory_space<vmem>>, vector<25x16xf32>,
    %312 = vector.extract_strided_slice %269 {offsets = [0, 16], sizes = [25, 16], strides = [1, 1]} : vector<25x128xf32> to vector<25x16xf32>
    %313 = vector.extract_strided_slice %279 {offsets = [0, 16], sizes = [25, 16], strides = [1, 1]} : vector<25x128xf32> to vector<25x16xf32>
    %314 = vector.extract_strided_slice %289 {offsets = [0, 16], sizes = [25, 16], strides = [1, 1]} : vector<25x128xf32> to vector<25x16xf32>
    %cst_146 = arith.constant dense<0.000000e+00> : vector<25x25xf32>
    %315 = tpu.matmul %312, %313, %cst_146 {dimension_numbers = #tpu.dot_dimension_numbers<[1], [1], [0], [0], [0, 0, 1, 0], [], []>} : vector<25x16xf32>, vector<25x16xf32>, vector<25x25xf32> -> vector<25x25xf32>
    %cst_147 = arith.constant 2.500000e-01 : f32
    %316 = vector.broadcast %cst_147 : f32 to vector<25x25xf32>
    %317 = arith.mulf %316, %315 : vector<25x25xf32>
    %318 = vector.broadcast %291 : vector<1x25xf32> to vector<25x25xf32>
    %319 = arith.addf %317, %318 : vector<25x25xf32>
    %cst_148 = arith.constant dense<0xFF800000> : vector<25xf32>
    %320 = vector.multi_reduction <maximumf>, %319, %cst_148 [1] : vector<25x25xf32> to vector<25xf32>
    %321 = vector.shape_cast %320 : vector<25xf32> to vector<25x1xf32>
    %322 = vector.broadcast %321 : vector<25x1xf32> to vector<25x25xf32>
    %323 = arith.subf %319, %322 : vector<25x25xf32>
    %324 = math.exp %323 : vector<25x25xf32>
    %cst_149 = arith.constant dense<0.000000e+00> : vector<25xf32>
    %325 = vector.multi_reduction <add>, %324, %cst_149 [1] : vector<25x25xf32> to vector<25xf32>
    %326 = vector.shape_cast %325 : vector<25xf32> to vector<25x1xf32>
    %327 = tpu.reciprocal %326 {approx = true} : vector<25x1xf32> -> vector<25x1xf32>
    %328 = vector.broadcast %327 : vector<25x1xf32> to vector<25x25xf32>
    %329 = arith.mulf %324, %328 : vector<25x25xf32>
    %cst_150 = arith.constant dense<0.000000e+00> : vector<25x16xf32>
    %330 = tpu.matmul %329, %314, %cst_150 {dimension_numbers = #tpu.dot_dimension_numbers<[1], [0], [0], [1], [0, 0, 1, 1], [], []>} : vector<25x25xf32>, vector<25x16xf32>, vector<25x16xf32> -> vector<25x16xf32>
    %c0_151 = arith.constant 0 : index
    %c16_152 = arith.constant 16 : index
    %331 = vector.load %arg19[%c0_151, %c16_152] : memref<25x128xf32, #tpu.memory_space<vmem>>, vector<25x16xf32>
    tpu.vector_store %arg19[%c0_151, %c16_152], %330 {strides = array<i32>} : memref<25x128xf32, #tpu.memory_space<vmem>>, vector<25x16xf32>,
    %332 = vector.extract_strided_slice %269 {offsets = [0, 32], sizes = [25, 16], strides = [1, 1]} : vector<25x128xf32> to vector<25x16xf32>
    %333 = vector.extract_strided_slice %279 {offsets = [0, 32], sizes = [25, 16], strides = [1, 1]} : vector<25x128xf32> to vector<25x16xf32>
    %334 = vector.extract_strided_slice %289 {offsets = [0, 32], sizes = [25, 16], strides = [1, 1]} : vector<25x128xf32> to vector<25x16xf32>
    %cst_153 = arith.constant dense<0.000000e+00> : vector<25x25xf32>
    %335 = tpu.matmul %332, %333, %cst_153 {dimension_numbers = #tpu.dot_dimension_numbers<[1], [1], [0], [0], [0, 0, 1, 0], [], []>} : vector<25x16xf32>, vector<25x16xf32>, vector<25x25xf32> -> vector<25x25xf32>
    %cst_154 = arith.constant 2.500000e-01 : f32
    %336 = vector.broadcast %cst_154 : f32 to vector<25x25xf32>
    %337 = arith.mulf %336, %335 : vector<25x25xf32>
    %338 = vector.broadcast %291 : vector<1x25xf32> to vector<25x25xf32>
    %339 = arith.addf %337, %338 : vector<25x25xf32>
    %cst_155 = arith.constant dense<0xFF800000> : vector<25xf32>
    %340 = vector.multi_reduction <maximumf>, %339, %cst_155 [1] : vector<25x25xf32> to vector<25xf32>
    %341 = vector.shape_cast %340 : vector<25xf32> to vector<25x1xf32>
    %342 = vector.broadcast %341 : vector<25x1xf32> to vector<25x25xf32>
    %343 = arith.subf %339, %342 : vector<25x25xf32>
    %344 = math.exp %343 : vector<25x25xf32>
    %cst_156 = arith.constant dense<0.000000e+00> : vector<25xf32>
    %345 = vector.multi_reduction <add>, %344, %cst_156 [1] : vector<25x25xf32> to vector<25xf32>
    %346 = vector.shape_cast %345 : vector<25xf32> to vector<25x1xf32>
    %347 = tpu.reciprocal %346 {approx = true} : vector<25x1xf32> -> vector<25x1xf32>
    %348 = vector.broadcast %347 : vector<25x1xf32> to vector<25x25xf32>
    %349 = arith.mulf %344, %348 : vector<25x25xf32>
    %cst_157 = arith.constant dense<0.000000e+00> : vector<25x16xf32>
    %350 = tpu.matmul %349, %334, %cst_157 {dimension_numbers = #tpu.dot_dimension_numbers<[1], [0], [0], [1], [0, 0, 1, 1], [], []>} : vector<25x25xf32>, vector<25x16xf32>, vector<25x16xf32> -> vector<25x16xf32>
    %c0_158 = arith.constant 0 : index
    %c32_159 = arith.constant 32 : index
    %351 = vector.load %arg19[%c0_158, %c32_159] : memref<25x128xf32, #tpu.memory_space<vmem>>, vector<25x16xf32>
    tpu.vector_store %arg19[%c0_158, %c32_159], %350 {strides = array<i32>} : memref<25x128xf32, #tpu.memory_space<vmem>>, vector<25x16xf32>,
    %352 = vector.extract_strided_slice %269 {offsets = [0, 48], sizes = [25, 16], strides = [1, 1]} : vector<25x128xf32> to vector<25x16xf32>
    %353 = vector.extract_strided_slice %279 {offsets = [0, 48], sizes = [25, 16], strides = [1, 1]} : vector<25x128xf32> to vector<25x16xf32>
    %354 = vector.extract_strided_slice %289 {offsets = [0, 48], sizes = [25, 16], strides = [1, 1]} : vector<25x128xf32> to vector<25x16xf32>
    %cst_160 = arith.constant dense<0.000000e+00> : vector<25x25xf32>
    %355 = tpu.matmul %352, %353, %cst_160 {dimension_numbers = #tpu.dot_dimension_numbers<[1], [1], [0], [0], [0, 0, 1, 0], [], []>} : vector<25x16xf32>, vector<25x16xf32>, vector<25x25xf32> -> vector<25x25xf32>
    %cst_161 = arith.constant 2.500000e-01 : f32
    %356 = vector.broadcast %cst_161 : f32 to vector<25x25xf32>
    %357 = arith.mulf %356, %355 : vector<25x25xf32>
    %358 = vector.broadcast %291 : vector<1x25xf32> to vector<25x25xf32>
    %359 = arith.addf %357, %358 : vector<25x25xf32>
    %cst_162 = arith.constant dense<0xFF800000> : vector<25xf32>
    %360 = vector.multi_reduction <maximumf>, %359, %cst_162 [1] : vector<25x25xf32> to vector<25xf32>
    %361 = vector.shape_cast %360 : vector<25xf32> to vector<25x1xf32>
    %362 = vector.broadcast %361 : vector<25x1xf32> to vector<25x25xf32>
    %363 = arith.subf %359, %362 : vector<25x25xf32>
    %364 = math.exp %363 : vector<25x25xf32>
    %cst_163 = arith.constant dense<0.000000e+00> : vector<25xf32>
    %365 = vector.multi_reduction <add>, %364, %cst_163 [1] : vector<25x25xf32> to vector<25xf32>
    %366 = vector.shape_cast %365 : vector<25xf32> to vector<25x1xf32>
    %367 = tpu.reciprocal %366 {approx = true} : vector<25x1xf32> -> vector<25x1xf32>
    %368 = vector.broadcast %367 : vector<25x1xf32> to vector<25x25xf32>
    %369 = arith.mulf %364, %368 : vector<25x25xf32>
    %cst_164 = arith.constant dense<0.000000e+00> : vector<25x16xf32>
    %370 = tpu.matmul %369, %354, %cst_164 {dimension_numbers = #tpu.dot_dimension_numbers<[1], [0], [0], [1], [0, 0, 1, 1], [], []>} : vector<25x25xf32>, vector<25x16xf32>, vector<25x16xf32> -> vector<25x16xf32>
    %c0_165 = arith.constant 0 : index
    %c48_166 = arith.constant 48 : index
    %371 = vector.load %arg19[%c0_165, %c48_166] : memref<25x128xf32, #tpu.memory_space<vmem>>, vector<25x16xf32>
    tpu.vector_store %arg19[%c0_165, %c48_166], %370 {strides = array<i32>} : memref<25x128xf32, #tpu.memory_space<vmem>>, vector<25x16xf32>,
    %372 = vector.extract_strided_slice %269 {offsets = [0, 64], sizes = [25, 16], strides = [1, 1]} : vector<25x128xf32> to vector<25x16xf32>
    %373 = vector.extract_strided_slice %279 {offsets = [0, 64], sizes = [25, 16], strides = [1, 1]} : vector<25x128xf32> to vector<25x16xf32>
    %374 = vector.extract_strided_slice %289 {offsets = [0, 64], sizes = [25, 16], strides = [1, 1]} : vector<25x128xf32> to vector<25x16xf32>
    %cst_167 = arith.constant dense<0.000000e+00> : vector<25x25xf32>
    %375 = tpu.matmul %372, %373, %cst_167 {dimension_numbers = #tpu.dot_dimension_numbers<[1], [1], [0], [0], [0, 0, 1, 0], [], []>} : vector<25x16xf32>, vector<25x16xf32>, vector<25x25xf32> -> vector<25x25xf32>
    %cst_168 = arith.constant 2.500000e-01 : f32
    %376 = vector.broadcast %cst_168 : f32 to vector<25x25xf32>
    %377 = arith.mulf %376, %375 : vector<25x25xf32>
    %378 = vector.broadcast %291 : vector<1x25xf32> to vector<25x25xf32>
    %379 = arith.addf %377, %378 : vector<25x25xf32>
    %cst_169 = arith.constant dense<0xFF800000> : vector<25xf32>
    %380 = vector.multi_reduction <maximumf>, %379, %cst_169 [1] : vector<25x25xf32> to vector<25xf32>
    %381 = vector.shape_cast %380 : vector<25xf32> to vector<25x1xf32>
    %382 = vector.broadcast %381 : vector<25x1xf32> to vector<25x25xf32>
    %383 = arith.subf %379, %382 : vector<25x25xf32>
    %384 = math.exp %383 : vector<25x25xf32>
    %cst_170 = arith.constant dense<0.000000e+00> : vector<25xf32>
    %385 = vector.multi_reduction <add>, %384, %cst_170 [1] : vector<25x25xf32> to vector<25xf32>
    %386 = vector.shape_cast %385 : vector<25xf32> to vector<25x1xf32>
    %387 = tpu.reciprocal %386 {approx = true} : vector<25x1xf32> -> vector<25x1xf32>
    %388 = vector.broadcast %387 : vector<25x1xf32> to vector<25x25xf32>
    %389 = arith.mulf %384, %388 : vector<25x25xf32>
    %cst_171 = arith.constant dense<0.000000e+00> : vector<25x16xf32>
    %390 = tpu.matmul %389, %374, %cst_171 {dimension_numbers = #tpu.dot_dimension_numbers<[1], [0], [0], [1], [0, 0, 1, 1], [], []>} : vector<25x25xf32>, vector<25x16xf32>, vector<25x16xf32> -> vector<25x16xf32>
    %c0_172 = arith.constant 0 : index
    %c64_173 = arith.constant 64 : index
    %391 = vector.load %arg19[%c0_172, %c64_173] : memref<25x128xf32, #tpu.memory_space<vmem>>, vector<25x16xf32>
    tpu.vector_store %arg19[%c0_172, %c64_173], %390 {strides = array<i32>} : memref<25x128xf32, #tpu.memory_space<vmem>>, vector<25x16xf32>,
    %392 = vector.extract_strided_slice %269 {offsets = [0, 80], sizes = [25, 16], strides = [1, 1]} : vector<25x128xf32> to vector<25x16xf32>
    %393 = vector.extract_strided_slice %279 {offsets = [0, 80], sizes = [25, 16], strides = [1, 1]} : vector<25x128xf32> to vector<25x16xf32>
    %394 = vector.extract_strided_slice %289 {offsets = [0, 80], sizes = [25, 16], strides = [1, 1]} : vector<25x128xf32> to vector<25x16xf32>
    %cst_174 = arith.constant dense<0.000000e+00> : vector<25x25xf32>
    %395 = tpu.matmul %392, %393, %cst_174 {dimension_numbers = #tpu.dot_dimension_numbers<[1], [1], [0], [0], [0, 0, 1, 0], [], []>} : vector<25x16xf32>, vector<25x16xf32>, vector<25x25xf32> -> vector<25x25xf32>
    %cst_175 = arith.constant 2.500000e-01 : f32
    %396 = vector.broadcast %cst_175 : f32 to vector<25x25xf32>
    %397 = arith.mulf %396, %395 : vector<25x25xf32>
    %398 = vector.broadcast %291 : vector<1x25xf32> to vector<25x25xf32>
    %399 = arith.addf %397, %398 : vector<25x25xf32>
    %cst_176 = arith.constant dense<0xFF800000> : vector<25xf32>
    %400 = vector.multi_reduction <maximumf>, %399, %cst_176 [1] : vector<25x25xf32> to vector<25xf32>
    %401 = vector.shape_cast %400 : vector<25xf32> to vector<25x1xf32>
    %402 = vector.broadcast %401 : vector<25x1xf32> to vector<25x25xf32>
    %403 = arith.subf %399, %402 : vector<25x25xf32>
    %404 = math.exp %403 : vector<25x25xf32>
    %cst_177 = arith.constant dense<0.000000e+00> : vector<25xf32>
    %405 = vector.multi_reduction <add>, %404, %cst_177 [1] : vector<25x25xf32> to vector<25xf32>
    %406 = vector.shape_cast %405 : vector<25xf32> to vector<25x1xf32>
    %407 = tpu.reciprocal %406 {approx = true} : vector<25x1xf32> -> vector<25x1xf32>
    %408 = vector.broadcast %407 : vector<25x1xf32> to vector<25x25xf32>
    %409 = arith.mulf %404, %408 : vector<25x25xf32>
    %cst_178 = arith.constant dense<0.000000e+00> : vector<25x16xf32>
    %410 = tpu.matmul %409, %394, %cst_178 {dimension_numbers = #tpu.dot_dimension_numbers<[1], [0], [0], [1], [0, 0, 1, 1], [], []>} : vector<25x25xf32>, vector<25x16xf32>, vector<25x16xf32> -> vector<25x16xf32>
    %c0_179 = arith.constant 0 : index
    %c80_180 = arith.constant 80 : index
    %411 = vector.load %arg19[%c0_179, %c80_180] : memref<25x128xf32, #tpu.memory_space<vmem>>, vector<25x16xf32>
    tpu.vector_store %arg19[%c0_179, %c80_180], %410 {strides = array<i32>} : memref<25x128xf32, #tpu.memory_space<vmem>>, vector<25x16xf32>,
    %412 = vector.extract_strided_slice %269 {offsets = [0, 96], sizes = [25, 16], strides = [1, 1]} : vector<25x128xf32> to vector<25x16xf32>
    %413 = vector.extract_strided_slice %279 {offsets = [0, 96], sizes = [25, 16], strides = [1, 1]} : vector<25x128xf32> to vector<25x16xf32>
    %414 = vector.extract_strided_slice %289 {offsets = [0, 96], sizes = [25, 16], strides = [1, 1]} : vector<25x128xf32> to vector<25x16xf32>
    %cst_181 = arith.constant dense<0.000000e+00> : vector<25x25xf32>
    %415 = tpu.matmul %412, %413, %cst_181 {dimension_numbers = #tpu.dot_dimension_numbers<[1], [1], [0], [0], [0, 0, 1, 0], [], []>} : vector<25x16xf32>, vector<25x16xf32>, vector<25x25xf32> -> vector<25x25xf32>
    %cst_182 = arith.constant 2.500000e-01 : f32
    %416 = vector.broadcast %cst_182 : f32 to vector<25x25xf32>
    %417 = arith.mulf %416, %415 : vector<25x25xf32>
    %418 = vector.broadcast %291 : vector<1x25xf32> to vector<25x25xf32>
    %419 = arith.addf %417, %418 : vector<25x25xf32>
    %cst_183 = arith.constant dense<0xFF800000> : vector<25xf32>
    %420 = vector.multi_reduction <maximumf>, %419, %cst_183 [1] : vector<25x25xf32> to vector<25xf32>
    %421 = vector.shape_cast %420 : vector<25xf32> to vector<25x1xf32>
    %422 = vector.broadcast %421 : vector<25x1xf32> to vector<25x25xf32>
    %423 = arith.subf %419, %422 : vector<25x25xf32>
    %424 = math.exp %423 : vector<25x25xf32>
    %cst_184 = arith.constant dense<0.000000e+00> : vector<25xf32>
    %425 = vector.multi_reduction <add>, %424, %cst_184 [1] : vector<25x25xf32> to vector<25xf32>
    %426 = vector.shape_cast %425 : vector<25xf32> to vector<25x1xf32>
    %427 = tpu.reciprocal %426 {approx = true} : vector<25x1xf32> -> vector<25x1xf32>
    %428 = vector.broadcast %427 : vector<25x1xf32> to vector<25x25xf32>
    %429 = arith.mulf %424, %428 : vector<25x25xf32>
    %cst_185 = arith.constant dense<0.000000e+00> : vector<25x16xf32>
    %430 = tpu.matmul %429, %414, %cst_185 {dimension_numbers = #tpu.dot_dimension_numbers<[1], [0], [0], [1], [0, 0, 1, 1], [], []>} : vector<25x25xf32>, vector<25x16xf32>, vector<25x16xf32> -> vector<25x16xf32>
    %c0_186 = arith.constant 0 : index
    %c96_187 = arith.constant 96 : index
    %431 = vector.load %arg19[%c0_186, %c96_187] : memref<25x128xf32, #tpu.memory_space<vmem>>, vector<25x16xf32>
    tpu.vector_store %arg19[%c0_186, %c96_187], %430 {strides = array<i32>} : memref<25x128xf32, #tpu.memory_space<vmem>>, vector<25x16xf32>,
    %432 = vector.extract_strided_slice %269 {offsets = [0, 112], sizes = [25, 16], strides = [1, 1]} : vector<25x128xf32> to vector<25x16xf32>
    %433 = vector.extract_strided_slice %279 {offsets = [0, 112], sizes = [25, 16], strides = [1, 1]} : vector<25x128xf32> to vector<25x16xf32>
    %434 = vector.extract_strided_slice %289 {offsets = [0, 112], sizes = [25, 16], strides = [1, 1]} : vector<25x128xf32> to vector<25x16xf32>
    %cst_188 = arith.constant dense<0.000000e+00> : vector<25x25xf32>
    %435 = tpu.matmul %432, %433, %cst_188 {dimension_numbers = #tpu.dot_dimension_numbers<[1], [1], [0], [0], [0, 0, 1, 0], [], []>} : vector<25x16xf32>, vector<25x16xf32>, vector<25x25xf32> -> vector<25x25xf32>
    %cst_189 = arith.constant 2.500000e-01 : f32
    %436 = vector.broadcast %cst_189 : f32 to vector<25x25xf32>
    %437 = arith.mulf %436, %435 : vector<25x25xf32>
    %438 = vector.broadcast %291 : vector<1x25xf32> to vector<25x25xf32>
    %439 = arith.addf %437, %438 : vector<25x25xf32>
    %cst_190 = arith.constant dense<0xFF800000> : vector<25xf32>
    %440 = vector.multi_reduction <maximumf>, %439, %cst_190 [1] : vector<25x25xf32> to vector<25xf32>
    %441 = vector.shape_cast %440 : vector<25xf32> to vector<25x1xf32>
    %442 = vector.broadcast %441 : vector<25x1xf32> to vector<25x25xf32>
    %443 = arith.subf %439, %442 : vector<25x25xf32>
    %444 = math.exp %443 : vector<25x25xf32>
    %cst_191 = arith.constant dense<0.000000e+00> : vector<25xf32>
    %445 = vector.multi_reduction <add>, %444, %cst_191 [1] : vector<25x25xf32> to vector<25xf32>
    %446 = vector.shape_cast %445 : vector<25xf32> to vector<25x1xf32>
    %447 = tpu.reciprocal %446 {approx = true} : vector<25x1xf32> -> vector<25x1xf32>
    %448 = vector.broadcast %447 : vector<25x1xf32> to vector<25x25xf32>
    %449 = arith.mulf %444, %448 : vector<25x25xf32>
    %cst_192 = arith.constant dense<0.000000e+00> : vector<25x16xf32>
    %450 = tpu.matmul %449, %434, %cst_192 {dimension_numbers = #tpu.dot_dimension_numbers<[1], [0], [0], [1], [0, 0, 1, 1], [], []>} : vector<25x25xf32>, vector<25x16xf32>, vector<25x16xf32> -> vector<25x16xf32>
    %c0_193 = arith.constant 0 : index
    %c112_194 = arith.constant 112 : index
    %451 = vector.load %arg19[%c0_193, %c112_194] : memref<25x128xf32, #tpu.memory_space<vmem>>, vector<25x16xf32>
    tpu.vector_store %arg19[%c0_193, %c112_194], %450 {strides = array<i32>} : memref<25x128xf32, #tpu.memory_space<vmem>>, vector<25x16xf32>,
    %c0_195 = arith.constant 0 : index
    %c0_196 = arith.constant 0 : index
    %452 = vector.load %arg19[%c0_195, %c0_196] : memref<25x128xf32, #tpu.memory_space<vmem>>, vector<25x128xf32>
    %cst_197 = arith.constant dense<0.000000e+00> : vector<25x128xf32>
    %453 = tpu.matmul %452, %14, %cst_197 {dimension_numbers = #tpu.dot_dimension_numbers<[1], [0], [0], [1], [0, 0, 1, 1], [], []>} : vector<25x128xf32>, vector<128x128xf32>, vector<25x128xf32> -> vector<25x128xf32>
    %c0_198 = arith.constant 0 : index
    %c0_199 = arith.constant 0 : index
    %454 = vector.load %arg16[%c0_198, %c0_199] : memref<1x128xf32, #tpu.memory_space<vmem>>, vector<1x128xf32>
    %455 = vector.broadcast %454 : vector<1x128xf32> to vector<25x128xf32>
    %456 = arith.addf %453, %455 : vector<25x128xf32>
    %457 = arith.addf %241, %456 : vector<25x128xf32>
    %c1_200 = arith.constant 1 : index
    %c0_201 = arith.constant 0 : index
    %c0_202 = arith.constant 0 : index
    %458 = vector.load %arg17[%c1_200, %c0_201, %c0_202] : memref<2x25x128xf32, #tpu.memory_space<vmem>>, vector<1x25x128xf32>
    %459 = vector.shape_cast %458 : vector<1x25x128xf32> to vector<25x128xf32>
    %460 = vector.shape_cast %457 : vector<25x128xf32> to vector<1x25x128xf32>
    tpu.vector_store %arg17[%c1_200, %c0_201, %c0_202], %460 {strides = array<i32>} : memref<2x25x128xf32, #tpu.memory_space<vmem>>, vector<1x25x128xf32>,
    return
  }
  func.func @transform_0(%arg0: i32) -> (i32, i32, i32) {
    %c0_i32 = arith.constant 0 : i32
    %c0_i32_0 = arith.constant 0 : i32
    %c0_i32_1 = arith.constant 0 : i32
    return %arg0, %c0_i32, %c0_i32_0 : i32, i32, i32
  }
  func.func @transform_1(%arg0: i32) -> (i32, i32, i32) {
    %c0_i32 = arith.constant 0 : i32
    %c0_i32_0 = arith.constant 0 : i32
    %c0_i32_1 = arith.constant 0 : i32
    return %arg0, %c0_i32, %c0_i32_0 : i32, i32, i32
  }
  func.func @transform_2(%arg0: i32) -> (i32, i32) {
    %c0_i32 = arith.constant 0 : i32
    %c0_i32_0 = arith.constant 0 : i32
    %c0_i32_1 = arith.constant 0 : i32
    return %c0_i32, %c0_i32_0 : i32, i32
  }
  func.func @transform_3(%arg0: i32) -> (i32, i32) {
    %c0_i32 = arith.constant 0 : i32
    %c0_i32_0 = arith.constant 0 : i32
    %c0_i32_1 = arith.constant 0 : i32
    return %c0_i32, %c0_i32_0 : i32, i32
  }
  func.func @transform_4(%arg0: i32) -> (i32, i32) {
    %c0_i32 = arith.constant 0 : i32
    %c0_i32_0 = arith.constant 0 : i32
    %c0_i32_1 = arith.constant 0 : i32
    return %c0_i32, %c0_i32_0 : i32, i32
  }
  func.func @transform_5(%arg0: i32) -> (i32, i32) {
    %c0_i32 = arith.constant 0 : i32
    %c0_i32_0 = arith.constant 0 : i32
    %c0_i32_1 = arith.constant 0 : i32
    return %c0_i32, %c0_i32_0 : i32, i32
  }
  func.func @transform_6(%arg0: i32) -> (i32, i32) {
    %c0_i32 = arith.constant 0 : i32
    %c0_i32_0 = arith.constant 0 : i32
    %c0_i32_1 = arith.constant 0 : i32
    return %c0_i32, %c0_i32_0 : i32, i32
  }
  func.func @transform_7(%arg0: i32) -> (i32, i32) {
    %c0_i32 = arith.constant 0 : i32
    %c0_i32_0 = arith.constant 0 : i32
    %c0_i32_1 = arith.constant 0 : i32
    return %c0_i32, %c0_i32_0 : i32, i32
  }
  func.func @transform_8(%arg0: i32) -> (i32, i32) {
    %c0_i32 = arith.constant 0 : i32
    %c0_i32_0 = arith.constant 0 : i32
    %c0_i32_1 = arith.constant 0 : i32
    return %c0_i32, %c0_i32_0 : i32, i32
  }
  func.func @transform_9(%arg0: i32) -> (i32, i32) {
    %c0_i32 = arith.constant 0 : i32
    %c0_i32_0 = arith.constant 0 : i32
    %c0_i32_1 = arith.constant 0 : i32
    return %c0_i32, %c0_i32_0 : i32, i32
  }
  func.func @transform_10(%arg0: i32) -> (i32, i32) {
    %c0_i32 = arith.constant 0 : i32
    %c0_i32_0 = arith.constant 0 : i32
    %c0_i32_1 = arith.constant 0 : i32
    return %c0_i32, %c0_i32_0 : i32, i32
  }
  func.func @transform_11(%arg0: i32) -> (i32, i32) {
    %c0_i32 = arith.constant 0 : i32
    %c0_i32_0 = arith.constant 0 : i32
    %c0_i32_1 = arith.constant 0 : i32
    return %c0_i32, %c0_i32_0 : i32, i32
  }
  func.func @transform_12(%arg0: i32) -> (i32, i32) {
    %c0_i32 = arith.constant 0 : i32
    %c0_i32_0 = arith.constant 0 : i32
    %c0_i32_1 = arith.constant 0 : i32
    return %c0_i32, %c0_i32_0 : i32, i32
  }
  func.func @transform_13(%arg0: i32) -> (i32, i32) {
    %c0_i32 = arith.constant 0 : i32
    %c0_i32_0 = arith.constant 0 : i32
    %c0_i32_1 = arith.constant 0 : i32
    return %c0_i32, %c0_i32_0 : i32, i32
  }
  func.func @transform_14(%arg0: i32) -> (i32, i32) {
    %c0_i32 = arith.constant 0 : i32
    %c0_i32_0 = arith.constant 0 : i32
    %c0_i32_1 = arith.constant 0 : i32
    return %c0_i32, %c0_i32_0 : i32, i32
  }
  func.func @transform_15(%arg0: i32) -> (i32, i32) {
    %c0_i32 = arith.constant 0 : i32
    %c0_i32_0 = arith.constant 0 : i32
    %c0_i32_1 = arith.constant 0 : i32
    return %c0_i32, %c0_i32_0 : i32, i32
  }
  func.func @transform_16(%arg0: i32) -> (i32, i32, i32) {
    %c0_i32 = arith.constant 0 : i32
    %c0_i32_0 = arith.constant 0 : i32
    %c0_i32_1 = arith.constant 0 : i32
    return %arg0, %c0_i32, %c0_i32_0 : i32, i32, i32
  }
}

</mosaic_0001>

<llo_original>
// kernel: tpu_custom_call.1
$region0: #{tpu_custom_call.1}
  #allocation0 [shape = 'u32[]', space=smem, size = 0x4, offset = 0x4, fixed_abs, tag = 'smem constant byte address 0x4 - core index']
  #allocation1 [shape = 'u32[72,128]{1,0:T(1,128)}', space=vmem, size = 0x9000, scoped, tag = 'internal scratch']
  #allocation2 [shape = 'f32[25,128]{1,0:T(8,128)}', space=vmem, size = 0x4000, scoped, tag = 'scratch operand']
  #allocation3 [shape = 'f32[25,128]{1,0:T(8,128)}', space=vmem, size = 0x4000, scoped, tag = 'scratch operand']
  %s0 = inlined_call_operand.vmem [shape: f32[4,25,64], index: 0, kind: input, shape index: {}]
  %s1 = inlined_call_operand.vmem [shape: f32[4,1,25], index: 1, kind: input, shape index: {}]
  %s2 = inlined_call_operand.vmem [shape: f32[1,128], index: 2, kind: input, shape index: {}]
  %s3 = inlined_call_operand.vmem [shape: f32[1,128], index: 3, kind: input, shape index: {}]
  %s4 = inlined_call_operand.vmem [shape: f32[1,128], index: 4, kind: input, shape index: {}]
  %s5 = inlined_call_operand.vmem [shape: f32[1,128], index: 5, kind: input, shape index: {}]
  %s6 = inlined_call_operand.vmem [shape: f32[1,128], index: 6, kind: input, shape index: {}]
  %s7 = inlined_call_operand.vmem [shape: f32[1,128], index: 7, kind: input, shape index: {}]
  %s8 = inlined_call_operand.vmem [shape: f32[128,128], index: 8, kind: input, shape index: {}]
  %s9 = inlined_call_operand.hbm [shape: f32[128,128], index: 9, kind: input, shape index: {}]
  %s10 = inlined_call_operand.hbm [shape: f32[128,128], index: 10, kind: input, shape index: {}]
  %s11 = inlined_call_operand.vmem [shape: f32[1,128], index: 11, kind: input, shape index: {}]
  %s12 = inlined_call_operand.vmem [shape: f32[1,128], index: 12, kind: input, shape index: {}]
  %s13 = inlined_call_operand.vmem [shape: f32[1,128], index: 13, kind: input, shape index: {}]
  %s14 = inlined_call_operand.hbm [shape: f32[128,128], index: 14, kind: input, shape index: {}]
  %s15 = inlined_call_operand.vmem [shape: f32[1,128], index: 15, kind: input, shape index: {}]
  %s16 = inlined_call_operand.vmem [shape: f32[4,25,128], index: 16, kind: output, shape index: {}]
  %s17 = sld [smem:[#allocation0]]
  $region109: #{tpu_custom_call.1} parent=0
    _
  %s19 = ssub.s32 1, %s17
  %s20 = scalar_select 0, %s19, %s17
  $region1: #{tpu_custom_call.1} parent=0
    #allocation4 [shape = 'u8[65536]{0}', space=vmem, size = 0x10000, scoped, tag = 'input window, operand 9, single buffered']
    #allocation5 [shape = 's32[2]{0}', space=sflag, size = 0x8, scoped, tag = 'scoped memory for tpu_custom_call.1']
    #allocation6 [shape = 'u8[65536]{0}', space=vmem, size = 0x10000, scoped, tag = 'input window, operand 10, single buffered']
    #allocation7 [shape = 's32[1]{0}', space=sflag, size = 0x4, scoped, tag = 'scoped memory for tpu_custom_call.1']
    #allocation8 [shape = 'u8[65536]{0}', space=vmem, size = 0x10000, scoped, tag = 'input window, operand 14, single buffered']
    %21 = vsyncpa [#allocation5], 0
    %22 = vsyncpa [#allocation7], 0
    loop: start=0, step=1, limit=4
    $region2: #{tpu_custom_call.1} parent=1 // loop_pre_header
      _
    $region3: #{tpu_custom_call.1} parent=1 // loop_header
      %s24 = sphi 0, %s28
      %p25 = scmp.ge.s32.totalorder %s24, 4
      %s34 = sphi 0, %s36
      %s37 = sphi 0, %s34
      %s38 = sphi 0, %s37
      %s54 = sphi 0, %s38
      %s60 = sphi 0, %s62
      %s63 = sphi 0, %s60
      %s64 = sphi 0, %s63
      %s80 = sphi 0, %s64
      %s84 = sphi 0, %s84
      %s86 = sphi 0, %s84
      %s87 = sphi 0, %s86
      %s101 = sphi 0, %s87
      %s105 = sphi 0, %s105
      %s107 = sphi 0, %s105
      %s108 = sphi 0, %s107
      %s122 = sphi 0, %s108
      %s126 = sphi 0, %s126
      %s128 = sphi 0, %s126
      %s129 = sphi 0, %s128
      %s143 = sphi 0, %s129
      %s147 = sphi 0, %s147
      %s149 = sphi 0, %s147
      %s150 = sphi 0, %s149
      %s164 = sphi 0, %s150
      %s168 = sphi 0, %s168
      %s170 = sphi 0, %s168
      %s171 = sphi 0, %s170
      %s185 = sphi 0, %s171
      %s189 = sphi 0, %s189
      %s191 = sphi 0, %s189
      %s192 = sphi 0, %s191
      %s206 = sphi 0, %s192
      %s210 = sphi 0, %s210
      %s212 = sphi 0, %s210
      %s213 = sphi 0, %s212
      %s227 = sphi 0, %s213
      %s231 = sphi 0, %s231
      %s233 = sphi 0, %s231
      %s234 = sphi 0, %s233
      %s248 = sphi 0, %s234
      %s252 = sphi 0, %s252
      %s254 = sphi 0, %s252
      %s255 = sphi 0, %s254
      %s269 = sphi 0, %s255
      %s273 = sphi 0, %s273
      %s275 = sphi 0, %s273
      %s276 = sphi 0, %s275
      %s290 = sphi 0, %s276
      %s294 = sphi 0, %s294
      %s296 = sphi 0, %s294
      %s297 = sphi 0, %s296
      %s311 = sphi 0, %s297
      %s315 = sphi 0, %s315
      %s317 = sphi 0, %s315
      %s318 = sphi 0, %s317
      %s332 = sphi 0, %s318
      %s336 = sphi 0, %s336
      %s338 = sphi 0, %s336
      %s339 = sphi 0, %s338
      %s353 = sphi 0, %s339
      %s357 = sphi 0, %s357
      %s359 = sphi 0, %s357
      %s360 = sphi 0, %s359
      %s374 = sphi 0, %s360
      %s380 = sphi 0, %s382
      %s383 = sphi 0, %s380
      %s384 = sphi 0, %s383
      %s400 = sphi 0, %s384
    $region4: #{tpu_custom_call.1} parent=1 // loop_header_branch
      %27 = sbr.rel (%p25) target = $region8
    $region5: #{tpu_custom_call.1} parent=1 // loop_body
      %s29 = ssub.s32 %s24, 1
      %s30 = ssub.s32 %s24, 2
      %s31 = sadd.s32 %s24, 1
      %s32 = ssub.s32 %s24, %s31
      %p33 = scmp.eq.s32.totalorder %s32, 0
      %s35 = sadd.s32 %s34, 1
      %s36 = scalar_select %p33, %s34, %s35
      %p39 = pneg %p33
      %p40 = scmp.eq.s32.totalorder %s24, 1
      %p41 = por %p39, %p40
      %p42 = scmp.ne.s32.totalorder %s34, %s37
      %p43 = scmp.eq.s32.totalorder %s24, 0
      %p44 = por %p42, %p43
      %p45 = scmp.ne.s32.totalorder %s34, %s37
      %p46 = scmp.eq.s32.totalorder %s29, 1
      %p47 = por %p45, %p46
      %p48 = scmp.ne.s32.totalorder %s37, %s38
      %p49 = scmp.eq.s32.totalorder %s29, 0
      %p50 = por %p48, %p49
      %p51 = scmp.ne.s32.totalorder %s37, %s38
      %p52 = scmp.eq.s32.totalorder %s30, 1
      %p53 = por %p51, %p52
      %p55 = scmp.ne.s32.totalorder %s38, %s54
      %p56 = scmp.eq.s32.totalorder %s30, 0
      %p57 = por %p55, %p56
      %s58 = ssub.s32 %s24, %s31
      %p59 = scmp.eq.s32.totalorder %s58, 0
      %s61 = sadd.s32 %s60, 1
      %s62 = scalar_select %p59, %s60, %s61
      %p65 = pneg %p59
      %p66 = scmp.eq.s32.totalorder %s24, 1
      %p67 = por %p65, %p66
      %p68 = scmp.ne.s32.totalorder %s60, %s63
      %p69 = scmp.eq.s32.totalorder %s24, 0
      %p70 = por %p68, %p69
      %p71 = scmp.ne.s32.totalorder %s60, %s63
      %p72 = scmp.eq.s32.totalorder %s29, 1
      %p73 = por %p71, %p72
      %p74 = scmp.ne.s32.totalorder %s63, %s64
      %p75 = scmp.eq.s32.totalorder %s29, 0
      %p76 = por %p74, %p75
      %p77 = scmp.ne.s32.totalorder %s63, %s64
      %p78 = scmp.eq.s32.totalorder %s30, 1
      %p79 = por %p77, %p78
      %p81 = scmp.ne.s32.totalorder %s64, %s80
      %p82 = scmp.eq.s32.totalorder %s30, 0
      %p83 = por %p81, %p82
      %s85 = sadd.s32 %s84, 1
      %p88 = scmp.eq.s32.totalorder %s24, 1
      %p89 = scmp.ne.s32.totalorder %s84, %s86
      %p90 = scmp.eq.s32.totalorder %s24, 0
      %p91 = por %p89, %p90
      %p92 = scmp.ne.s32.totalorder %s84, %s86
      %p93 = scmp.eq.s32.totalorder %s29, 1
      %p94 = por %p92, %p93
      %p95 = scmp.ne.s32.totalorder %s86, %s87
      %p96 = scmp.eq.s32.totalorder %s29, 0
      %p97 = por %p95, %p96
      %p98 = scmp.ne.s32.totalorder %s86, %s87
      %p99 = scmp.eq.s32.totalorder %s30, 1
      %p100 = por %p98, %p99
      %p102 = scmp.ne.s32.totalorder %s87, %s101
      %p103 = scmp.eq.s32.totalorder %s30, 0
      %p104 = por %p102, %p103
      %s106 = sadd.s32 %s105, 1
      %p109 = scmp.eq.s32.totalorder %s24, 1
      %p110 = scmp.ne.s32.totalorder %s105, %s107
      %p111 = scmp.eq.s32.totalorder %s24, 0
      %p112 = por %p110, %p111
      %p113 = scmp.ne.s32.totalorder %s105, %s107
      %p114 = scmp.eq.s32.totalorder %s29, 1
      %p115 = por %p113, %p114
      %p116 = scmp.ne.s32.totalorder %s107, %s108
      %p117 = scmp.eq.s32.totalorder %s29, 0
      %p118 = por %p116, %p117
      %p119 = scmp.ne.s32.totalorder %s107, %s108
      %p120 = scmp.eq.s32.totalorder %s30, 1
      %p121 = por %p119, %p120
      %p123 = scmp.ne.s32.totalorder %s108, %s122
      %p124 = scmp.eq.s32.totalorder %s30, 0
      %p125 = por %p123, %p124
      %s127 = sadd.s32 %s126, 1
      %p130 = scmp.eq.s32.totalorder %s24, 1
      %p131 = scmp.ne.s32.totalorder %s126, %s128
      %p132 = scmp.eq.s32.totalorder %s24, 0
      %p133 = por %p131, %p132
      %p134 = scmp.ne.s32.totalorder %s126, %s128
      %p135 = scmp.eq.s32.totalorder %s29, 1
      %p136 = por %p134, %p135
      %p137 = scmp.ne.s32.totalorder %s128, %s129
      %p138 = scmp.eq.s32.totalorder %s29, 0
      %p139 = por %p137, %p138
      %p140 = scmp.ne.s32.totalorder %s128, %s129
      %p141 = scmp.eq.s32.totalorder %s30, 1
      %p142 = por %p140, %p141
      %p144 = scmp.ne.s32.totalorder %s129, %s143
      %p145 = scmp.eq.s32.totalorder %s30, 0
      %p146 = por %p144, %p145
      %s148 = sadd.s32 %s147, 1
      %p151 = scmp.eq.s32.totalorder %s24, 1
      %p152 = scmp.ne.s32.totalorder %s147, %s149
      %p153 = scmp.eq.s32.totalorder %s24, 0
      %p154 = por %p152, %p153
      %p155 = scmp.ne.s32.totalorder %s147, %s149
      %p156 = scmp.eq.s32.totalorder %s29, 1
      %p157 = por %p155, %p156
      %p158 = scmp.ne.s32.totalorder %s149, %s150
      %p159 = scmp.eq.s32.totalorder %s29, 0
      %p160 = por %p158, %p159
      %p161 = scmp.ne.s32.totalorder %s149, %s150
      %p162 = scmp.eq.s32.totalorder %s30, 1
      %p163 = por %p161, %p162
      %p165 = scmp.ne.s32.totalorder %s150, %s164
      %p166 = scmp.eq.s32.totalorder %s30, 0
      %p167 = por %p165, %p166
      %s169 = sadd.s32 %s168, 1
      %p172 = scmp.eq.s32.totalorder %s24, 1
      %p173 = scmp.ne.s32.totalorder %s168, %s170
      %p174 = scmp.eq.s32.totalorder %s24, 0
      %p175 = por %p173, %p174
      %p176 = scmp.ne.s32.totalorder %s168, %s170
      %p177 = scmp.eq.s32.totalorder %s29, 1
      %p178 = por %p176, %p177
      %p179 = scmp.ne.s32.totalorder %s170, %s171
      %p180 = scmp.eq.s32.totalorder %s29, 0
      %p181 = por %p179, %p180
      %p182 = scmp.ne.s32.totalorder %s170, %s171
      %p183 = scmp.eq.s32.totalorder %s30, 1
      %p184 = por %p182, %p183
      %p186 = scmp.ne.s32.totalorder %s171, %s185
      %p187 = scmp.eq.s32.totalorder %s30, 0
      %p188 = por %p186, %p187
      %s190 = sadd.s32 %s189, 1
      %p193 = scmp.eq.s32.totalorder %s24, 1
      %p194 = scmp.ne.s32.totalorder %s189, %s191
      %p195 = scmp.eq.s32.totalorder %s24, 0
      %p196 = por %p194, %p195
      %p197 = scmp.ne.s32.totalorder %s189, %s191
      %p198 = scmp.eq.s32.totalorder %s29, 1
      %p199 = por %p197, %p198
      %p200 = scmp.ne.s32.totalorder %s191, %s192
      %p201 = scmp.eq.s32.totalorder %s29, 0
      %p202 = por %p200, %p201
      %p203 = scmp.ne.s32.totalorder %s191, %s192
      %p204 = scmp.eq.s32.totalorder %s30, 1
      %p205 = por %p203, %p204
      %p207 = scmp.ne.s32.totalorder %s192, %s206
      %p208 = scmp.eq.s32.totalorder %s30, 0
      %p209 = por %p207, %p208
      %s211 = sadd.s32 %s210, 1
      %p214 = scmp.eq.s32.totalorder %s24, 1
      %p215 = scmp.ne.s32.totalorder %s210, %s212
      %p216 = scmp.eq.s32.totalorder %s24, 0
      %p217 = por %p215, %p216
      %p218 = scmp.ne.s32.totalorder %s210, %s212
      %p219 = scmp.eq.s32.totalorder %s29, 1
      %p220 = por %p218, %p219
      %p221 = scmp.ne.s32.totalorder %s212, %s213
      %p222 = scmp.eq.s32.totalorder %s29, 0
      %p223 = por %p221, %p222
      %p224 = scmp.ne.s32.totalorder %s212, %s213
      %p225 = scmp.eq.s32.totalorder %s30, 1
      %p226 = por %p224, %p225
      %p228 = scmp.ne.s32.totalorder %s213, %s227
      %p229 = scmp.eq.s32.totalorder %s30, 0
      %p230 = por %p228, %p229
      %s232 = sadd.s32 %s231, 1
      %p235 = scmp.eq.s32.totalorder %s24, 1
      %p236 = scmp.ne.s32.totalorder %s231, %s233
      %p237 = scmp.eq.s32.totalorder %s24, 0
      %p238 = por %p236, %p237
      %p239 = scmp.ne.s32.totalorder %s231, %s233
      %p240 = scmp.eq.s32.totalorder %s29, 1
      %p241 = por %p239, %p240
      %p242 = scmp.ne.s32.totalorder %s233, %s234
      %p243 = scmp.eq.s32.totalorder %s29, 0
      %p244 = por %p242, %p243
      %p245 = scmp.ne.s32.totalorder %s233, %s234
      %p246 = scmp.eq.s32.totalorder %s30, 1
      %p247 = por %p245, %p246
      %p249 = scmp.ne.s32.totalorder %s234, %s248
      %p250 = scmp.eq.s32.totalorder %s30, 0
      %p251 = por %p249, %p250
      %s253 = sadd.s32 %s252, 1
      %p256 = scmp.eq.s32.totalorder %s24, 1
      %p257 = scmp.ne.s32.totalorder %s252, %s254
      %p258 = scmp.eq.s32.totalorder %s24, 0
      %p259 = por %p257, %p258
      %p260 = scmp.ne.s32.totalorder %s252, %s254
      %p261 = scmp.eq.s32.totalorder %s29, 1
      %p262 = por %p260, %p261
      %p263 = scmp.ne.s32.totalorder %s254, %s255
      %p264 = scmp.eq.s32.totalorder %s29, 0
      %p265 = por %p263, %p264
      %p266 = scmp.ne.s32.totalorder %s254, %s255
      %p267 = scmp.eq.s32.totalorder %s30, 1
      %p268 = por %p266, %p267
      %p270 = scmp.ne.s32.totalorder %s255, %s269
      %p271 = scmp.eq.s32.totalorder %s30, 0
      %p272 = por %p270, %p271
      %s274 = sadd.s32 %s273, 1
      %p277 = scmp.eq.s32.totalorder %s24, 1
      %p278 = scmp.ne.s32.totalorder %s273, %s275
      %p279 = scmp.eq.s32.totalorder %s24, 0
      %p280 = por %p278, %p279
      %p281 = scmp.ne.s32.totalorder %s273, %s275
      %p282 = scmp.eq.s32.totalorder %s29, 1
      %p283 = por %p281, %p282
      %p284 = scmp.ne.s32.totalorder %s275, %s276
      %p285 = scmp.eq.s32.totalorder %s29, 0
      %p286 = por %p284, %p285
      %p287 = scmp.ne.s32.totalorder %s275, %s276
      %p288 = scmp.eq.s32.totalorder %s30, 1
      %p289 = por %p287, %p288
      %p291 = scmp.ne.s32.totalorder %s276, %s290
      %p292 = scmp.eq.s32.totalorder %s30, 0
      %p293 = por %p291, %p292
      %s295 = sadd.s32 %s294, 1
      %p298 = scmp.eq.s32.totalorder %s24, 1
      %p299 = scmp.ne.s32.totalorder %s294, %s296
      %p300 = scmp.eq.s32.totalorder %s24, 0
      %p301 = por %p299, %p300
      %p302 = scmp.ne.s32.totalorder %s294, %s296
      %p303 = scmp.eq.s32.totalorder %s29, 1
      %p304 = por %p302, %p303
      %p305 = scmp.ne.s32.totalorder %s296, %s297
      %p306 = scmp.eq.s32.totalorder %s29, 0
      %p307 = por %p305, %p306
      %p308 = scmp.ne.s32.totalorder %s296, %s297
      %p309 = scmp.eq.s32.totalorder %s30, 1
      %p310 = por %p308, %p309
      %p312 = scmp.ne.s32.totalorder %s297, %s311
      %p313 = scmp.eq.s32.totalorder %s30, 0
      %p314 = por %p312, %p313
      %s316 = sadd.s32 %s315, 1
      %p319 = scmp.eq.s32.totalorder %s24, 1
      %p320 = scmp.ne.s32.totalorder %s315, %s317
      %p321 = scmp.eq.s32.totalorder %s24, 0
      %p322 = por %p320, %p321
      %p323 = scmp.ne.s32.totalorder %s315, %s317
      %p324 = scmp.eq.s32.totalorder %s29, 1
      %p325 = por %p323, %p324
      %p326 = scmp.ne.s32.totalorder %s317, %s318
      %p327 = scmp.eq.s32.totalorder %s29, 0
      %p328 = por %p326, %p327
      %p329 = scmp.ne.s32.totalorder %s317, %s318
      %p330 = scmp.eq.s32.totalorder %s30, 1
      %p331 = por %p329, %p330
      %p333 = scmp.ne.s32.totalorder %s318, %s332
      %p334 = scmp.eq.s32.totalorder %s30, 0
      %p335 = por %p333, %p334
      %s337 = sadd.s32 %s336, 1
      %p340 = scmp.eq.s32.totalorder %s24, 1
      %p341 = scmp.ne.s32.totalorder %s336, %s338
      %p342 = scmp.eq.s32.totalorder %s24, 0
      %p343 = por %p341, %p342
      %p344 = scmp.ne.s32.totalorder %s336, %s338
      %p345 = scmp.eq.s32.totalorder %s29, 1
      %p346 = por %p344, %p345
      %p347 = scmp.ne.s32.totalorder %s338, %s339
      %p348 = scmp.eq.s32.totalorder %s29, 0
      %p349 = por %p347, %p348
      %p350 = scmp.ne.s32.totalorder %s338, %s339
      %p351 = scmp.eq.s32.totalorder %s30, 1
      %p352 = por %p350, %p351
      %p354 = scmp.ne.s32.totalorder %s339, %s353
      %p355 = scmp.eq.s32.totalorder %s30, 0
      %p356 = por %p354, %p355
      %s358 = sadd.s32 %s357, 1
      %p361 = scmp.eq.s32.totalorder %s24, 1
      %p362 = scmp.ne.s32.totalorder %s357, %s359
      %p363 = scmp.eq.s32.totalorder %s24, 0
      %p364 = por %p362, %p363
      %p365 = scmp.ne.s32.totalorder %s357, %s359
      %p366 = scmp.eq.s32.totalorder %s29, 1
      %p367 = por %p365, %p366
      %p368 = scmp.ne.s32.totalorder %s359, %s360
      %p369 = scmp.eq.s32.totalorder %s29, 0
      %p370 = por %p368, %p369
      %p371 = scmp.ne.s32.totalorder %s359, %s360
      %p372 = scmp.eq.s32.totalorder %s30, 1
      %p373 = por %p371, %p372
      %p375 = scmp.ne.s32.totalorder %s360, %s374
      %p376 = scmp.eq.s32.totalorder %s30, 0
      %p377 = por %p375, %p376
      %s378 = ssub.s32 %s24, %s31
      %p379 = scmp.eq.s32.totalorder %s378, 0
      %s381 = sadd.s32 %s380, 1
      %s382 = scalar_select %p379, %s380, %s381
      %p385 = pneg %p379
      %p386 = scmp.eq.s32.totalorder %s24, 1
      %p387 = por %p385, %p386
      %p388 = scmp.ne.s32.totalorder %s380, %s383
      %p389 = scmp.eq.s32.totalorder %s24, 0
      %p390 = por %p388, %p389
      %p391 = scmp.ne.s32.totalorder %s380, %s383
      %p392 = scmp.eq.s32.totalorder %s29, 1
      %p393 = por %p391, %p392
      %p394 = scmp.ne.s32.totalorder %s383, %s384
      %p395 = scmp.eq.s32.totalorder %s29, 0
      %p396 = por %p394, %p395
      %p397 = scmp.ne.s32.totalorder %s383, %s384
      %p398 = scmp.eq.s32.totalorder %s30, 1
      %p399 = por %p397, %p398
      %p401 = scmp.ne.s32.totalorder %s384, %s400
      %p402 = scmp.eq.s32.totalorder %s30, 0
      %p403 = por %p401, %p402
      %p404 = scmp.le.s32.totalorder 1, %s24
      %p405 = scmp.lt.s32.totalorder %s24, 3
      %p406 = pnand %p404, %p405
      %p407 = pneg %p406
      // Predicated region
      $region9: #{tpu_custom_call.1} parent=5 // pred_check
        _
      $region10: #{tpu_custom_call.1} parent=5 // pred_check_branch
        %409 = sbr.rel (%p406) target = $region12
      $region11: #{tpu_custom_call.1} parent=5 // pred_region
        %s410 = ssub.s32 %s24, 1
        // Predicated region
        $region13: #{tpu_custom_call.1} parent=11 // pred_check
          %p411 = pneg %p97
        $region14: #{tpu_custom_call.1} parent=11 // pred_check_branch
          %413 = sbr.rel (%p411) target = $region16
        $region15: #{tpu_custom_call.1} parent=11 // pred_region
          _
        $region16: #{tpu_custom_call.1} parent=11 // pred_fallthru
          _
        // Predicated region
        $region17: #{tpu_custom_call.1} parent=11 // pred_check
          %p414 = pneg %p118
        $region18: #{tpu_custom_call.1} parent=11 // pred_check_branch
          %416 = sbr.rel (%p414) target = $region20
        $region19: #{tpu_custom_call.1} parent=11 // pred_region
          _
        $region20: #{tpu_custom_call.1} parent=11 // pred_fallthru
          _
        // Predicated region
        $region21: #{tpu_custom_call.1} parent=11 // pred_check
          %p417 = pneg %p139
        $region22: #{tpu_custom_call.1} parent=11 // pred_check_branch
          %419 = sbr.rel (%p417) target = $region24
        $region23: #{tpu_custom_call.1} parent=11 // pred_region
          _
        $region24: #{tpu_custom_call.1} parent=11 // pred_fallthru
          _
        // Predicated region
        $region25: #{tpu_custom_call.1} parent=11 // pred_check
          %p420 = pneg %p160
        $region26: #{tpu_custom_call.1} parent=11 // pred_check_branch
          %422 = sbr.rel (%p420) target = $region28
        $region27: #{tpu_custom_call.1} parent=11 // pred_region
          _
        $region28: #{tpu_custom_call.1} parent=11 // pred_fallthru
          _
        // Predicated region
        $region29: #{tpu_custom_call.1} parent=11 // pred_check
          %p423 = pneg %p181
        $region30: #{tpu_custom_call.1} parent=11 // pred_check_branch
          %425 = sbr.rel (%p423) target = $region32
        $region31: #{tpu_custom_call.1} parent=11 // pred_region
          _
        $region32: #{tpu_custom_call.1} parent=11 // pred_fallthru
          _
        // Predicated region
        $region33: #{tpu_custom_call.1} parent=11 // pred_check
          %p426 = pneg %p202
        $region34: #{tpu_custom_call.1} parent=11 // pred_check_branch
          %428 = sbr.rel (%p426) target = $region36
        $region35: #{tpu_custom_call.1} parent=11 // pred_region
          _
        $region36: #{tpu_custom_call.1} parent=11 // pred_fallthru
          _
        // Predicated region
        $region37: #{tpu_custom_call.1} parent=11 // pred_check
          %p429 = pneg %p223
        $region38: #{tpu_custom_call.1} parent=11 // pred_check_branch
          %431 = sbr.rel (%p429) target = $region40
        $region39: #{tpu_custom_call.1} parent=11 // pred_region
          _
        $region40: #{tpu_custom_call.1} parent=11 // pred_fallthru
          _
        // Predicated region
        $region41: #{tpu_custom_call.1} parent=11 // pred_check
          %p432 = pneg %p244
        $region42: #{tpu_custom_call.1} parent=11 // pred_check_branch
          %434 = sbr.rel (%p432) target = $region44
        $region43: #{tpu_custom_call.1} parent=11 // pred_region
          %436 = vsyncadd [#allocation5], 0
          %s437 = sshll.u32 %s9, 4
          %s438 = int_to_ptr.hbm [resolvable:$true] %s437
          %s439 = sshll.u32 [#allocation4], 4
          %s440 = int_to_ptr.vmem [resolvable:$true] %s439
          %445 = dma.hbm_to_vmem [thread:$0]  %s438, 2048, %s440, [#allocation5], 128, 128, 8
        $region44: #{tpu_custom_call.1} parent=11 // pred_fallthru
          _
        // Predicated region
        $region45: #{tpu_custom_call.1} parent=11 // pred_check
          %p446 = pneg %p265
        $region46: #{tpu_custom_call.1} parent=11 // pred_check_branch
          %448 = sbr.rel (%p446) target = $region48
        $region47: #{tpu_custom_call.1} parent=11 // pred_region
          %450 = vsyncadd [#allocation7], 0
          %s451 = sshll.u32 %s10, 4
          %s452 = int_to_ptr.hbm [resolvable:$true] %s451
          %s453 = sshll.u32 [#allocation6], 4
          %s454 = int_to_ptr.vmem [resolvable:$true] %s453
          %459 = dma.hbm_to_vmem [thread:$0]  %s452, 2048, %s454, [#allocation7], 128, 128, 8
        $region48: #{tpu_custom_call.1} parent=11 // pred_fallthru
          _
        // Predicated region
        $region49: #{tpu_custom_call.1} parent=11 // pred_check
          %p460 = pneg %p286
        $region50: #{tpu_custom_call.1} parent=11 // pred_check_branch
          %462 = sbr.rel (%p460) target = $region52
        $region51: #{tpu_custom_call.1} parent=11 // pred_region
          _
        $region52: #{tpu_custom_call.1} parent=11 // pred_fallthru
          _
        // Predicated region
        $region53: #{tpu_custom_call.1} parent=11 // pred_check
          %p463 = pneg %p307
        $region54: #{tpu_custom_call.1} parent=11 // pred_check_branch
          %465 = sbr.rel (%p463) target = $region56
        $region55: #{tpu_custom_call.1} parent=11 // pred_region
          _
        $region56: #{tpu_custom_call.1} parent=11 // pred_fallthru
          _
        // Predicated region
        $region57: #{tpu_custom_call.1} parent=11 // pred_check
          %p466 = pneg %p328
        $region58: #{tpu_custom_call.1} parent=11 // pred_check_branch
          %468 = sbr.rel (%p466) target = $region60
        $region59: #{tpu_custom_call.1} parent=11 // pred_region
          _
        $region60: #{tpu_custom_call.1} parent=11 // pred_fallthru
          _
        // Predicated region
        $region61: #{tpu_custom_call.1} parent=11 // pred_check
          %p469 = pneg %p349
        $region62: #{tpu_custom_call.1} parent=11 // pred_check_branch
          %471 = sbr.rel (%p469) target = $region64
        $region63: #{tpu_custom_call.1} parent=11 // pred_region
          %473 = vsyncadd [#allocation7], 0
          %s474 = sshll.u32 %s14, 4
          %s475 = int_to_ptr.hbm [resolvable:$true] %s474
          %s476 = sshll.u32 [#allocation8], 4
          %s477 = int_to_ptr.vmem [resolvable:$true] %s476
          %482 = dma.hbm_to_vmem [thread:$0]  %s475, 2048, %s477, [#allocation7], 128, 128, 8
        $region64: #{tpu_custom_call.1} parent=11 // pred_fallthru
          _
        // Predicated region
        $region65: #{tpu_custom_call.1} parent=11 // pred_check
          %p483 = pneg %p370
        $region66: #{tpu_custom_call.1} parent=11 // pred_check_branch
          %485 = sbr.rel (%p483) target = $region68
        $region67: #{tpu_custom_call.1} parent=11 // pred_region
          _
        $region68: #{tpu_custom_call.1} parent=11 // pred_fallthru
          _
      $region12: #{tpu_custom_call.1} parent=5 // pred_fallthru
        _
      %p486 = scmp.lt.s32.totalorder %s24, 2
      // Predicated region
      $region69: #{tpu_custom_call.1} parent=5 // pred_check
        %p487 = pneg %p486
      $region70: #{tpu_custom_call.1} parent=5 // pred_check_branch
        %489 = sbr.rel (%p487) target = $region72
      $region71: #{tpu_custom_call.1} parent=5 // pred_region
        // Predicated region
        $region73: #{tpu_custom_call.1} parent=71 // pred_check
          %p490 = pneg %p44
        $region74: #{tpu_custom_call.1} parent=71 // pred_check_branch
          %492 = sbr.rel (%p490) target = $region76
        $region75: #{tpu_custom_call.1} parent=71 // pred_region
          %s493 = smul.u32 2, %s24
          %p494 = scmp.lt.s32.totalorder %s493, 3
          %s495 = scalar_select %p494, %s493, 3
          %s496 = smul.addr %s495, 4
          %s497 = smul.addr %s496, 8
          %s498 = scalar_lea.vmem %s0, %s497
          %s499 = smul.u32 2, %s24
        $region76: #{tpu_custom_call.1} parent=71 // pred_fallthru
          _
        // Predicated region
        $region77: #{tpu_custom_call.1} parent=71 // pred_check
          %p500 = pneg %p70
        $region78: #{tpu_custom_call.1} parent=71 // pred_check_branch
          %502 = sbr.rel (%p500) target = $region80
        $region79: #{tpu_custom_call.1} parent=71 // pred_region
          %s503 = smul.u32 2, %s24
          %p504 = scmp.lt.s32.totalorder %s503, 3
          %s505 = scalar_select %p504, %s503, 3
          %s506 = scalar_lea.vmem %s1, %s505
          %s507 = smul.u32 2, %s24
        $region80: #{tpu_custom_call.1} parent=71 // pred_fallthru
          _
      $region72: #{tpu_custom_call.1} parent=5 // pred_fallthru
        _
      %p508 = scmp.le.s32.totalorder 1, %s24
      %p509 = scmp.lt.s32.totalorder %s24, 3
      %p510 = pnand %p508, %p509
      %p511 = pneg %p510
      // Predicated region
      $region81: #{tpu_custom_call.1} parent=5 // pred_check
        _
      $region82: #{tpu_custom_call.1} parent=5 // pred_check_branch
        %513 = sbr.rel (%p510) target = $region84
      $region83: #{tpu_custom_call.1} parent=5 // pred_region
        %s514 = ssub.s32 %s24, 1
        // Predicated region
        $region85: #{tpu_custom_call.1} parent=83 // pred_check
          %p515 = pneg %p244
        $region86: #{tpu_custom_call.1} parent=83 // pred_check_branch
          %517 = sbr.rel (%p515) target = $region88
        $region87: #{tpu_custom_call.1} parent=83 // pred_region
          %519 = dma.done [#allocation5], 2048
        $region88: #{tpu_custom_call.1} parent=83 // pred_fallthru
          _
        // Predicated region
        $region89: #{tpu_custom_call.1} parent=83 // pred_check
          %p520 = pneg %p265
        $region90: #{tpu_custom_call.1} parent=83 // pred_check_branch
          %522 = sbr.rel (%p520) target = $region92
        $region91: #{tpu_custom_call.1} parent=83 // pred_region
          %524 = dma.done [#allocation7], 2048
        $region92: #{tpu_custom_call.1} parent=83 // pred_fallthru
          _
        // Predicated region
        $region93: #{tpu_custom_call.1} parent=83 // pred_check
          %p525 = pneg %p349
        $region94: #{tpu_custom_call.1} parent=83 // pred_check_branch
          %527 = sbr.rel (%p525) target = $region96
        $region95: #{tpu_custom_call.1} parent=83 // pred_region
          %529 = dma.done [#allocation7], 2048
        $region96: #{tpu_custom_call.1} parent=83 // pred_fallthru
          _
        %s530 = smul.u32 2, %s29
        %p531 = scmp.lt.s32.totalorder %s530, 3
        %s532 = scalar_select %p531, %s530, 3
        %s533 = smul.addr %s532, 4
        %s534 = smul.addr %s533, 8
        %s535 = scalar_lea.vmem %s0, %s534
        %p536 = pneg %p50
        %p537 = pneg %p47
        %s538 = smul.u32 2, %s29
        %p539 = scmp.lt.s32.totalorder %s538, 3
        %s540 = scalar_select %p539, %s538, 3
        %s541 = scalar_lea.vmem %s1, %s540
        %p542 = pneg %p76
        %p543 = pneg %p73
        %p544 = pneg %p97
        %p545 = pneg %p94
        %p546 = pneg %p118
        %p547 = pneg %p115
        %p548 = pneg %p139
        %p549 = pneg %p136
        %p550 = pneg %p160
        %p551 = pneg %p157
        %p552 = pneg %p181
        %p553 = pneg %p178
        %p554 = pneg %p202
        %p555 = pneg %p199
        %p556 = pneg %p223
        %p557 = pneg %p220
        %p558 = pneg %p244
        %p559 = pneg %p241
        %p560 = pneg %p265
        %p561 = pneg %p262
        %p562 = pneg %p286
        %p563 = pneg %p283
        %p564 = pneg %p307
        %p565 = pneg %p304
        %p566 = pneg %p328
        %p567 = pneg %p325
        %p568 = pneg %p349
        %p569 = pneg %p346
        %p570 = pneg %p370
        %p571 = pneg %p367
        %p572 = pneg %p396
        %p573 = pneg %p393
        %s574 = smul.u32 2, %s29
        %p575 = scmp.lt.s32.totalorder %s574, 3
        %s576 = scalar_select %p575, %s574, 3
        %s577 = smul.addr %s576, 4
        %s578 = smul.addr %s577, 8
        %s579 = scalar_lea.vmem %s16, %s578
        %s580 = smul.u32 2, %s29
        %p581 = scmp.lt.s32.totalorder %s580, 3
        %s582 = scalar_select %p581, %s580, 3
        %s583 = smul.addr %s582, 4
        %s584 = smul.addr %s583, 8
        %s585 = scalar_lea.vmem %s0, %s584
        %s586 = smul.u32 2, %s29
        %s587 = smul.u32 2, %s29
        %p588 = scmp.lt.s32.totalorder %s587, 3
        %s589 = scalar_select %p588, %s587, 3
        %s590 = scalar_lea.vmem %s1, %s589
        %s591 = smul.u32 2, %s29
        %s592 = smul.u32 2, %s29
        %p593 = scmp.lt.s32.totalorder %s592, 3
        %s594 = scalar_select %p593, %s592, 3
        %s595 = smul.addr %s594, 4
        %s596 = smul.addr %s595, 8
        %s597 = scalar_lea.vmem %s16, %s596
        %s598 = smul.u32 2, %s29
        %v599 = vlaneseq
        %v600 = vshrl.u32 %v599, 7
        %v601 = vadd.s32 %v600, 8
        %v602 = vadd.s32 %v600, 16
        %v603 = vadd.s32 %v600, 24
        %vm604 = vcmp.eq.s32.totalorder %v600, 0
        %vm605 = vcmp.eq.s32.totalorder %v601, 0
        %vm606 = vcmp.eq.s32.totalorder %v602, 0
        %vm607 = vcmp.eq.s32.totalorder %v603, 0
        %vm608 = vcmp.le.s32.totalorder %v600, 12
        %vm609 = vcmp.le.s32.totalorder %v601, 12
        %vm610 = vcmp.le.s32.totalorder %v602, 12
        %vm611 = vcmp.le.s32.totalorder %v603, 12
        %v612 = vsel %vm608, 1.0, -1.0
        %v613 = vsel %vm609, 1.0, -1.0
        %v614 = vsel %vm610, 1.0, -1.0
        %v615 = vsel %vm611, 1.0, -1.0
        %v616 = vsel %vm604, 0.0, %v612
        %v617 = vsel %vm605, 0.0, %v613
        %v618 = vsel %vm606, 0.0, %v614
        %v619 = vsel %vm607, 0.0, %v615
        %vm620 = vcmask 1048064
        %621 = vst.msk [vmem:[#allocation2] sm:$0xff] %vm620, %v616
        %622 = vst.msk [vmem:[#allocation2 + $0x8] sm:$0xff] %vm620, %v617
        %623 = vst.msk [vmem:[#allocation2 + $0x10] sm:$0xff] %vm620, %v618
        %vm624 = vcmask 1040896
        %625 = vst.msk [vmem:[#allocation2 + $0x18] sm:$0x1] %vm624, %v619
        %v626 = vld [vmem:[%s8] sm:$0xff]
        %v627 = vld [vmem:[%s8 + $0x8] sm:$0xff]
        %v628 = vld [vmem:[%s8 + $0x10] sm:$0xff]
        %v629 = vld [vmem:[%s8 + $0x18] sm:$0xff]
        %v630 = vld [vmem:[%s8 + $0x20] sm:$0xff]
        %v631 = vld [vmem:[%s8 + $0x28] sm:$0xff]
        %v632 = vld [vmem:[%s8 + $0x30] sm:$0xff]
        %v633 = vld [vmem:[%s8 + $0x38] sm:$0xff]
        %v634 = vld [vmem:[%s8 + $0x40] sm:$0xff]
        %v635 = vld [vmem:[%s8 + $0x48] sm:$0xff]
        %v636 = vld [vmem:[%s8 + $0x50] sm:$0xff]
        %v637 = vld [vmem:[%s8 + $0x58] sm:$0xff]
        %v638 = vld [vmem:[%s8 + $0x60] sm:$0xff]
        %v639 = vld [vmem:[%s8 + $0x68] sm:$0xff]
        %v640 = vld [vmem:[%s8 + $0x70] sm:$0xff]
        %v641 = vld [vmem:[%s8 + $0x78] sm:$0xff]
        %v642 = vld [vmem:[#allocation4] sm:$0xff]
        %v643 = vld [vmem:[#allocation4 + $0x8] sm:$0xff]
        %v644 = vld [vmem:[#allocation4 + $0x10] sm:$0xff]
        %v645 = vld [vmem:[#allocation4 + $0x18] sm:$0xff]
        %v646 = vld [vmem:[#allocation4 + $0x20] sm:$0xff]
        %v647 = vld [vmem:[#allocation4 + $0x28] sm:$0xff]
        %v648 = vld [vmem:[#allocation4 + $0x30] sm:$0xff]
        %v649 = vld [vmem:[#allocation4 + $0x38] sm:$0xff]
        %v650 = vld [vmem:[#allocation4 + $0x40] sm:$0xff]
        %v651 = vld [vmem:[#allocation4 + $0x48] sm:$0xff]
        %v652 = vld [vmem:[#allocation4 + $0x50] sm:$0xff]
        %v653 = vld [vmem:[#allocation4 + $0x58] sm:$0xff]
        %v654 = vld [vmem:[#allocation4 + $0x60] sm:$0xff]
        %v655 = vld [vmem:[#allocation4 + $0x68] sm:$0xff]
        %v656 = vld [vmem:[#allocation4 + $0x70] sm:$0xff]
        %v657 = vld [vmem:[#allocation4 + $0x78] sm:$0xff]
        %v658 = vld [vmem:[#allocation6] sm:$0xff]
        %v659 = vld [vmem:[#allocation6 + $0x8] sm:$0xff]
        %v660 = vld [vmem:[#allocation6 + $0x10] sm:$0xff]
        %v661 = vld [vmem:[#allocation6 + $0x18] sm:$0xff]
        %v662 = vld [vmem:[#allocation6 + $0x20] sm:$0xff]
        %v663 = vld [vmem:[#allocation6 + $0x28] sm:$0xff]
        %v664 = vld [vmem:[#allocation6 + $0x30] sm:$0xff]
        %v665 = vld [vmem:[#allocation6 + $0x38] sm:$0xff]
        %v666 = vld [vmem:[#allocation6 + $0x40] sm:$0xff]
        %v667 = vld [vmem:[#allocation6 + $0x48] sm:$0xff]
        %v668 = vld [vmem:[#allocation6 + $0x50] sm:$0xff]
        %v669 = vld [vmem:[#allocation6 + $0x58] sm:$0xff]
        %v670 = vld [vmem:[#allocation6 + $0x60] sm:$0xff]
        %v671 = vld [vmem:[#allocation6 + $0x68] sm:$0xff]
        %v672 = vld [vmem:[#allocation6 + $0x70] sm:$0xff]
        %v673 = vld [vmem:[#allocation6 + $0x78] sm:$0xff]
        %v674 = vld [vmem:[#allocation8] sm:$0xff]
        %v675 = vld [vmem:[#allocation8 + $0x8] sm:$0xff]
        %v676 = vld [vmem:[#allocation8 + $0x10] sm:$0xff]
        %v677 = vld [vmem:[#allocation8 + $0x18] sm:$0xff]
        %v678 = vld [vmem:[#allocation8 + $0x20] sm:$0xff]
        %v679 = vld [vmem:[#allocation8 + $0x28] sm:$0xff]
        %v680 = vld [vmem:[#allocation8 + $0x30] sm:$0xff]
        %v681 = vld [vmem:[#allocation8 + $0x38] sm:$0xff]
        %v682 = vld [vmem:[#allocation8 + $0x40] sm:$0xff]
        %v683 = vld [vmem:[#allocation8 + $0x48] sm:$0xff]
        %v684 = vld [vmem:[#allocation8 + $0x50] sm:$0xff]
        %v685 = vld [vmem:[#allocation8 + $0x58] sm:$0xff]
        %v686 = vld [vmem:[#allocation8 + $0x60] sm:$0xff]
        %v687 = vld [vmem:[#allocation8 + $0x68] sm:$0xff]
        %v688 = vld [vmem:[#allocation8 + $0x70] sm:$0xff]
        %v689 = vld [vmem:[#allocation8 + $0x78] sm:$0xff]
        %v690 = vld [vmem:[%s585] sm:$0xff]
        %v691 = vld [vmem:[%s585 + $0x8] sm:$0xff]
        %v692 = vld [vmem:[%s585 + $0x10] sm:$0xff]
        %v693 = vld [vmem:[%s585 + $0x18] sm:$0x1]
        %vm694 = vcmask 523264
        %695 = vst.msk [vmem:[#allocation2] sm:$0xff] %vm694, %v690
        %696 = vst.msk [vmem:[#allocation2 + $0x8] sm:$0xff] %vm694, %v691
        %697 = vst.msk [vmem:[#allocation2 + $0x10] sm:$0xff] %vm694, %v692
        %vm698 = vcmask 516096
        %699 = vst.msk [vmem:[#allocation2 + $0x18] sm:$0x1] %vm698, %v693
        %v700 = vld [vmem:[#allocation2] sm:$0xff]
        %v701 = vld [vmem:[#allocation2 + $0x8] sm:$0xff]
        %v702 = vld [vmem:[#allocation2 + $0x10] sm:$0xff]
        %v703 = vld [vmem:[#allocation2 + $0x18] sm:$0x1]
        %704 = vadd.xlane.f32.xlu0 %v700
        %v705 = vpop.xlane.xlu0 %704
        %706 = vadd.xlane.f32.xlu0 %v701
        %v707 = vpop.xlane.xlu0 %706
        %708 = vadd.xlane.f32.xlu0 %v702
        %v709 = vpop.xlane.xlu0 %708
        %vm710 = vcmask 1040384
        %v711 = vsel %vm710, %v703, 0.0
        %712 = vadd.xlane.f32.xlu0 %v711
        %v713 = vpop.xlane.xlu0 %712
        %v714 = vrcp.pop 128.0
        %v715 = vmul.f32 128.0, %v714
        %v716 = vsub.f32 1.0, %v715
        %v717 = vmul.f32 %v714, %v716
        %v718 = vadd.f32 %v714, %v717
        %vm719 = vweird.f32 %v714
        %v720 = vsel %vm719, %v714, %v718
        %v721 = vmul.f32 %v705, %v720
        %v722 = vmul.f32 %v707, %v720
        %v723 = vmul.f32 %v709, %v720
        %v724 = vmul.f32 %v713, %v720
        %v725 = vsub.f32 %v700, %v721
        %v726 = vsub.f32 %v701, %v722
        %v727 = vsub.f32 %v702, %v723
        %v728 = vsub.f32 %v703, %v724
        %v729 = vmul.f32 %v725, %v725
        %v730 = vmul.f32 %v726, %v726
        %v731 = vmul.f32 %v727, %v727
        %v732 = vmul.f32 %v728, %v728
        %733 = vadd.xlane.f32.xlu0 %v729
        %v734 = vpop.xlane.xlu0 %733
        %735 = vadd.xlane.f32.xlu0 %v730
        %v736 = vpop.xlane.xlu0 %735
        %737 = vadd.xlane.f32.xlu0 %v731
        %v738 = vpop.xlane.xlu0 %737
        %v739 = vsel %vm710, %v732, 0.0
        %740 = vadd.xlane.f32.xlu0 %v739
        %v741 = vpop.xlane.xlu0 %740
        %v742 = vmul.f32 %v734, %v720
        %v743 = vmul.f32 %v736, %v720
        %v744 = vmul.f32 %v738, %v720
        %v745 = vmul.f32 %v741, %v720
        %v746 = vadd.f32 %v742, 1e-05
        %v747 = vadd.f32 %v743, 1e-05
        %v748 = vadd.f32 %v744, 1e-05
        %v749 = vadd.f32 %v745, 1e-05
        %v750 = vrsqrt.pop %v746
        %v751 = vmul.f32 %v750, %v746
        %v752 = vmul.f32 %v751, %v750
        %v753 = vmul.f32 0.5, %v752
        %v754 = vsub.f32 1.5, %v753
        %v755 = vmul.f32 %v750, %v754
        %vm756 = vweird.f32 %v746
        %vm757 = vweird.f32 %v750
        %vm758 = vmor %vm756, %vm757
        %v759 = vsel %vm758, %v750, %v755
        %v760 = vrsqrt.pop %v747
        %v761 = vmul.f32 %v760, %v747
        %v762 = vmul.f32 %v761, %v760
        %v763 = vmul.f32 0.5, %v762
        %v764 = vsub.f32 1.5, %v763
        %v765 = vmul.f32 %v760, %v764
        %vm766 = vweird.f32 %v747
        %vm767 = vweird.f32 %v760
        %vm768 = vmor %vm766, %vm767
        %v769 = vsel %vm768, %v760, %v765
        %v770 = vrsqrt.pop %v748
        %v771 = vmul.f32 %v770, %v748
        %v772 = vmul.f32 %v771, %v770
        %v773 = vmul.f32 0.5, %v772
        %v774 = vsub.f32 1.5, %v773
        %v775 = vmul.f32 %v770, %v774
        %vm776 = vweird.f32 %v748
        %vm777 = vweird.f32 %v770
        %vm778 = vmor %vm776, %vm777
        %v779 = vsel %vm778, %v770, %v775
        %v780 = vrsqrt.pop %v749
        %v781 = vmul.f32 %v780, %v749
        %v782 = vmul.f32 %v781, %v780
        %v783 = vmul.f32 0.5, %v782
        %v784 = vsub.f32 1.5, %v783
        %v785 = vmul.f32 %v780, %v784
        %vm786 = vweird.f32 %v749
        %vm787 = vweird.f32 %v780
        %vm788 = vmor %vm786, %vm787
        %v789 = vsel %vm788, %v780, %v785
        %v790 = vmul.f32 %v725, %v759
        %v791 = vmul.f32 %v726, %v769
        %v792 = vmul.f32 %v727, %v779
        %v793 = vmul.f32 %v728, %v789
        %v794 = vld [vmem:[%s4] sm:$0x1]
        %v796 = vperm.slane %v794, 0
        %v798 = vmul.f32 %v790, %v796
        %v799 = vmul.f32 %v791, %v796
        %v800 = vmul.f32 %v792, %v796
        %v801 = vmul.f32 %v793, %v796
        %v802 = vld [vmem:[%s5] sm:$0x1]
        %v804 = vperm.slane %v802, 0
        %v806 = vadd.f32 %v798, %v804
        %v807 = vadd.f32 %v799, %v804
        %v808 = vadd.f32 %v800, %v804
        %v809 = vadd.f32 %v801, %v804
        %v810 = vld [vmem:[%s11] sm:$0x1]
        %v812 = vperm.slane %v810, 0
        %814 = vmatpush.msra.mxu0 %v641
        %815 = vmatpush.msra.mxu0 %v640
        %816 = vmatpush.msra.mxu0 %v639
        %817 = vmatpush.msra.mxu0 %v638
        %818 = vmatpush.msra.mxu0 %v637
        %819 = vmatpush.msra.mxu0 %v636
        %820 = vmatpush.msra.mxu0 %v635
        %821 = vmatpush.msra.mxu0 %v634
        %822 = vmatpush.msra.mxu0 %v633
        %823 = vmatpush.msra.mxu0 %v632
        %824 = vmatpush.msra.mxu0 %v631
        %825 = vmatpush.msra.mxu0 %v630
        %826 = vmatpush.msra.mxu0 %v629
        %827 = vmatpush.msra.mxu0 %v628
        %828 = vmatpush.msra.mxu0 %v627
        %829 = vmatpush.msra.mxu0 %v626
        %830 = vmatmul.f32.gmra.mxu0 %v806
        %v831 = vpop.f32.mrf.mxu0
        %v832 = vadd.f32 %v812, %v831
        %833 = vmatmul.f32.gmra.mxu0 %v807
        %v834 = vpop.f32.mrf.mxu0
        %v835 = vadd.f32 %v812, %v834
        %836 = vmatmul.f32.gmra.mxu0 %v808
        %v837 = vpop.f32.mrf.mxu0
        %v838 = vadd.f32 %v812, %v837
        %839 = vmatmul.f32.gmra.mxu0 %v809
        %v840 = vpop.f32.mrf.mxu0
        %v841 = vadd.f32 %v812, %v840
        %842 = vdwg.mxu0
        %v843 = vld [vmem:[%s2] sm:$0x1]
        %v845 = vperm.slane %v843, 0
        %v847 = vmul.f32 %v790, %v845
        %v848 = vmul.f32 %v791, %v845
        %v849 = vmul.f32 %v792, %v845
        %v850 = vmul.f32 %v793, %v845
        %v851 = vld [vmem:[%s3] sm:$0x1]
        %v853 = vperm.slane %v851, 0
        %v855 = vadd.f32 %v847, %v853
        %v856 = vadd.f32 %v848, %v853
        %v857 = vadd.f32 %v849, %v853
        %v858 = vadd.f32 %v850, %v853
        %v859 = vld [vmem:[%s12] sm:$0x1]
        %v861 = vperm.slane %v859, 0
        %863 = vmatpush.msra.mxu0 %v657
        %864 = vmatpush.msra.mxu0 %v656
        %865 = vmatpush.msra.mxu0 %v655
        %866 = vmatpush.msra.mxu0 %v654
        %867 = vmatpush.msra.mxu0 %v653
        %868 = vmatpush.msra.mxu0 %v652
        %869 = vmatpush.msra.mxu0 %v651
        %870 = vmatpush.msra.mxu0 %v650
        %871 = vmatpush.msra.mxu0 %v649
        %872 = vmatpush.msra.mxu0 %v648
        %873 = vmatpush.msra.mxu0 %v647
        %874 = vmatpush.msra.mxu0 %v646
        %875 = vmatpush.msra.mxu0 %v645
        %876 = vmatpush.msra.mxu0 %v644
        %877 = vmatpush.msra.mxu0 %v643
        %878 = vmatpush.msra.mxu0 %v642
        %879 = vmatmul.f32.gmra.mxu0 %v855
        %v880 = vpop.f32.mrf.mxu0
        %v881 = vadd.f32 %v861, %v880
        %882 = vmatmul.f32.gmra.mxu0 %v856
        %v883 = vpop.f32.mrf.mxu0
        %v884 = vadd.f32 %v861, %v883
        %885 = vmatmul.f32.gmra.mxu0 %v857
        %v886 = vpop.f32.mrf.mxu0
        %v887 = vadd.f32 %v861, %v886
        %888 = vmatmul.f32.gmra.mxu0 %v858
        %v889 = vpop.f32.mrf.mxu0
        %v890 = vadd.f32 %v861, %v889
        %891 = vdwg.mxu0
        %v892 = vld [vmem:[%s6] sm:$0x1]
        %v894 = vperm.slane %v892, 0
        %v896 = vmul.f32 %v790, %v894
        %v897 = vmul.f32 %v791, %v894
        %v898 = vmul.f32 %v792, %v894
        %v899 = vmul.f32 %v793, %v894
        %v900 = vld [vmem:[%s7] sm:$0x1]
        %v902 = vperm.slane %v900, 0
        %v904 = vadd.f32 %v896, %v902
        %v905 = vadd.f32 %v897, %v902
        %v906 = vadd.f32 %v898, %v902
        %v907 = vadd.f32 %v899, %v902
        %v908 = vld [vmem:[%s13] sm:$0x1]
        %v910 = vperm.slane %v908, 0
        %912 = vmatpush.msra.mxu0 %v673
        %913 = vmatpush.msra.mxu0 %v672
        %914 = vmatpush.msra.mxu0 %v671
        %915 = vmatpush.msra.mxu0 %v670
        %916 = vmatpush.msra.mxu0 %v669
        %917 = vmatpush.msra.mxu0 %v668
        %918 = vmatpush.msra.mxu0 %v667
        %919 = vmatpush.msra.mxu0 %v666
        %920 = vmatpush.msra.mxu0 %v665
        %921 = vmatpush.msra.mxu0 %v664
        %922 = vmatpush.msra.mxu0 %v663
        %923 = vmatpush.msra.mxu0 %v662
        %924 = vmatpush.msra.mxu0 %v661
        %925 = vmatpush.msra.mxu0 %v660
        %926 = vmatpush.msra.mxu0 %v659
        %927 = vmatpush.msra.mxu0 %v658
        %928 = vmatmul.f32.gmra.mxu0 %v904
        %v929 = vpop.f32.mrf.mxu0
        %v930 = vadd.f32 %v910, %v929
        %931 = vmatmul.f32.gmra.mxu0 %v905
        %v932 = vpop.f32.mrf.mxu0
        %v933 = vadd.f32 %v910, %v932
        %934 = vmatmul.f32.gmra.mxu0 %v906
        %v935 = vpop.f32.mrf.mxu0
        %v936 = vadd.f32 %v910, %v935
        %937 = vmatmul.f32.gmra.mxu0 %v907
        %v938 = vpop.f32.mrf.mxu0
        %v939 = vadd.f32 %v910, %v938
        %940 = vdwg.mxu0
        %v941 = vld [vmem:[%s590] sm:$0x1]
        %vm942 = vcmask 130048
        %v944 = vsel %vm942, %v832, 0
        %v947 = vsel %vm942, %v835, 0
        %v950 = vsel %vm942, %v838, 0
        %v953 = vsel %vm942, %v841, 0
        %v956 = vsel %vm942, %v881, 0
        %v959 = vsel %vm942, %v884, 0
        %v962 = vsel %vm942, %v887, 0
        %v965 = vsel %vm942, %v890, 0
        %967 = vmatpush.xpose.msra.mxu0 0.0
        %968 = vmatpush.xpose.msra.mxu0 0.0
        %969 = vmatpush.xpose.msra.mxu0 0.0
        %970 = vmatpush.xpose.msra.mxu0 0.0
        %971 = vmatpush.xpose.msra.mxu0 0.0
        %972 = vmatpush.xpose.msra.mxu0 0.0
        %973 = vmatpush.xpose.msra.mxu0 0.0
        %974 = vmatpush.xpose.msra.mxu0 0.0
        %975 = vmatpush.xpose.msra.mxu0 0.0
        %976 = vmatpush.xpose.msra.mxu0 0.0
        %977 = vmatpush.xpose.msra.mxu0 0.0
        %978 = vmatpush.xpose.msra.mxu0 0.0
        %979 = vmatpush.xpose.msra.mxu0 %v965
        %980 = vmatpush.xpose.msra.mxu0 %v962
        %981 = vmatpush.xpose.msra.mxu0 %v959
        %982 = vmatpush.xpose.msra.mxu0 %v956
        %983 = vmatmul.f32.gmra.mxu0 %v944
        %v984 = vpop.f32.mrf.mxu0
        %v985 = vadd.f32 0.0, %v984
        %986 = vmatmul.f32.gmra.mxu0 %v947
        %v987 = vpop.f32.mrf.mxu0
        %v988 = vadd.f32 0.0, %v987
        %989 = vmatmul.f32.gmra.mxu0 %v950
        %v990 = vpop.f32.mrf.mxu0
        %v991 = vadd.f32 0.0, %v990
        %992 = vmatmul.f32.gmra.mxu0 %v953
        %v993 = vpop.f32.mrf.mxu0
        %v994 = vadd.f32 0.0, %v993
        %995 = vdwg.mxu0
        %v996 = vmul.f32 %v985, 0.25
        %v997 = vmul.f32 %v988, 0.25
        %v998 = vmul.f32 %v991, 0.25
        %v999 = vmul.f32 %v994, 0.25
        %v1001 = vperm.slane %v941, 0
        %v1003 = vadd.f32 %v996, %v1001
        %v1004 = vadd.f32 %v997, %v1001
        %v1005 = vadd.f32 %v998, %v1001
        %v1006 = vadd.f32 %v999, %v1001
        %vm1007 = vcmask 203776
        %v1008 = vsel %vm1007, %v1003, -inf
        %1009 = vmax.xlane.f32.xlu0 %v1008
        %v1010 = vpop.xlane.xlu0 %1009
        %v1011 = vsel %vm1007, %v1004, -inf
        %1012 = vmax.xlane.f32.xlu0 %v1011
        %v1013 = vpop.xlane.xlu0 %1012
        %v1014 = vsel %vm1007, %v1005, -inf
        %1015 = vmax.xlane.f32.xlu0 %v1014
        %v1016 = vpop.xlane.xlu0 %1015
        %vm1017 = vcmask 196608
        %v1018 = vsel %vm1017, %v1006, -inf
        %1019 = vmax.xlane.f32.xlu0 %v1018
        %v1020 = vpop.xlane.xlu0 %1019
        %v1021 = vsub.f32 %v1003, %v1010
        %v1022 = vsub.f32 %v1004, %v1013
        %v1023 = vsub.f32 %v1005, %v1016
        %v1024 = vsub.f32 %v1006, %v1020
        %v1025 = vmul.f32 %v1021, 1.442695
        %v1026 = vpow.pop %v1025
        %v1027 = vmul.f32 %v1022, 1.442695
        %v1028 = vpow.pop %v1027
        %v1029 = vmul.f32 %v1023, 1.442695
        %v1030 = vpow.pop %v1029
        %v1031 = vmul.f32 %v1024, 1.442695
        %v1032 = vpow.pop %v1031
        %v1033 = vsel %vm1007, %v1026, 0.0
        %1034 = vadd.xlane.f32.xlu0 %v1033
        %v1035 = vpop.xlane.xlu0 %1034
        %v1036 = vsel %vm1007, %v1028, 0.0
        %1037 = vadd.xlane.f32.xlu0 %v1036
        %v1038 = vpop.xlane.xlu0 %1037
        %v1039 = vsel %vm1007, %v1030, 0.0
        %1040 = vadd.xlane.f32.xlu0 %v1039
        %v1041 = vpop.xlane.xlu0 %1040
        %v1042 = vsel %vm1017, %v1032, 0.0
        %1043 = vadd.xlane.f32.xlu0 %v1042
        %v1044 = vpop.xlane.xlu0 %1043
        %v1045 = vrcp.pop %v1035
        %v1046 = vrcp.pop %v1038
        %v1047 = vrcp.pop %v1041
        %v1048 = vrcp.pop %v1044
        %v1049 = vmul.f32 %v1026, %v1045
        %v1050 = vmul.f32 %v1028, %v1046
        %v1051 = vmul.f32 %v1030, %v1047
        %v1052 = vmul.f32 %v1032, %v1048
        %v1054 = vsel %vm1007, %v1049, 0
        %v1057 = vsel %vm1007, %v1050, 0
        %v1060 = vsel %vm1007, %v1051, 0
        %v1063 = vsel %vm1007, %v1052, 0
        %v1066 = vsel %vm710, %v939, 0
        %1068 = vmatpush.msra.mxu0 0.0
        %1069 = vmatpush.msra.mxu0 0.0
        %1070 = vmatpush.msra.mxu0 0.0
        %1071 = vmatpush.msra.mxu0 0.0
        %1072 = vmatpush.msra.mxu0 0.0
        %1073 = vmatpush.msra.mxu0 0.0
        %1074 = vmatpush.msra.mxu0 0.0
        %1075 = vmatpush.msra.mxu0 0.0
        %1076 = vmatpush.msra.mxu0 0.0
        %1077 = vmatpush.msra.mxu0 0.0
        %1078 = vmatpush.msra.mxu0 0.0
        %1079 = vmatpush.msra.mxu0 0.0
        %1080 = vmatpush.msra.mxu0 %v1066
        %1081 = vmatpush.msra.mxu0 %v936
        %1082 = vmatpush.msra.mxu0 %v933
        %1083 = vmatpush.msra.mxu0 %v930
        %1084 = vmatmul.f32.gmra.mxu0 %v1054
        %v1085 = vpop.f32.mrf.mxu0
        %v1086 = vadd.f32 0.0, %v1085
        %1087 = vmatmul.f32.gmra.mxu0 %v1057
        %v1088 = vpop.f32.mrf.mxu0
        %v1089 = vadd.f32 0.0, %v1088
        %1090 = vmatmul.f32.gmra.mxu0 %v1060
        %v1091 = vpop.f32.mrf.mxu0
        %v1092 = vadd.f32 0.0, %v1091
        %1093 = vmatmul.f32.gmra.mxu0 %v1063
        %v1094 = vpop.f32.mrf.mxu0
        %v1095 = vadd.f32 0.0, %v1094
        %1096 = vdwg.mxu0
        %1097 = vst.msk [vmem:[#allocation3] sm:$0xff] %vm942, %v1086
        %1098 = vst.msk [vmem:[#allocation3 + $0x8] sm:$0xff] %vm942, %v1089
        %1099 = vst.msk [vmem:[#allocation3 + $0x10] sm:$0xff] %vm942, %v1092
        %vm1100 = vcmask 122880
        %1101 = vst.msk [vmem:[#allocation3 + $0x18] sm:$0x1] %vm1100, %v1095
        %1102 = vrot.lane.b32.xlu0 %v832, 112
        %v1103 = vpop.permute.xlu0 %1102
        %1104 = vrot.lane.b32.xlu0 %v835, 112
        %v1105 = vpop.permute.xlu0 %1104
        %1106 = vrot.lane.b32.xlu0 %v838, 112
        %v1107 = vpop.permute.xlu0 %1106
        %1108 = vrot.lane.b32.xlu0 %v841, 112
        %v1109 = vpop.permute.xlu0 %1108
        %1110 = vrot.lane.b32.xlu0 %v881, 112
        %v1111 = vpop.permute.xlu0 %1110
        %1112 = vrot.lane.b32.xlu0 %v884, 112
        %v1113 = vpop.permute.xlu0 %1112
        %1114 = vrot.lane.b32.xlu0 %v887, 112
        %v1115 = vpop.permute.xlu0 %1114
        %1116 = vrot.lane.b32.xlu0 %v890, 112
        %v1117 = vpop.permute.xlu0 %1116
        %v1118 = vsel %vm942, %v1103, 0
        %v1120 = vsel %vm942, %v1105, 0
        %v1122 = vsel %vm942, %v1107, 0
        %v1124 = vsel %vm942, %v1109, 0
        %v1126 = vsel %vm942, %v1111, 0
        %v1128 = vsel %vm942, %v1113, 0
        %v1130 = vsel %vm942, %v1115, 0
        %v1132 = vsel %vm942, %v1117, 0
        %1134 = vmatpush.xpose.msra.mxu0 0.0
        %1135 = vmatpush.xpose.msra.mxu0 0.0
        %1136 = vmatpush.xpose.msra.mxu0 0.0
        %1137 = vmatpush.xpose.msra.mxu0 0.0
        %1138 = vmatpush.xpose.msra.mxu0 0.0
        %1139 = vmatpush.xpose.msra.mxu0 0.0
        %1140 = vmatpush.xpose.msra.mxu0 0.0
        %1141 = vmatpush.xpose.msra.mxu0 0.0
        %1142 = vmatpush.xpose.msra.mxu0 0.0
        %1143 = vmatpush.xpose.msra.mxu0 0.0
        %1144 = vmatpush.xpose.msra.mxu0 0.0
        %1145 = vmatpush.xpose.msra.mxu0 0.0
        %1146 = vmatpush.xpose.msra.mxu0 %v1132
        %1147 = vmatpush.xpose.msra.mxu0 %v1130
        %1148 = vmatpush.xpose.msra.mxu0 %v1128
        %1149 = vmatpush.xpose.msra.mxu0 %v1126
        %1150 = vmatmul.f32.gmra.mxu0 %v1118
        %v1151 = vpop.f32.mrf.mxu0
        %v1152 = vadd.f32 0.0, %v1151
        %1153 = vmatmul.f32.gmra.mxu0 %v1120
        %v1154 = vpop.f32.mrf.mxu0
        %v1155 = vadd.f32 0.0, %v1154
        %1156 = vmatmul.f32.gmra.mxu0 %v1122
        %v1157 = vpop.f32.mrf.mxu0
        %v1158 = vadd.f32 0.0, %v1157
        %1159 = vmatmul.f32.gmra.mxu0 %v1124
        %v1160 = vpop.f32.mrf.mxu0
        %v1161 = vadd.f32 0.0, %v1160
        %1162 = vdwg.mxu0
        %v1163 = vmul.f32 %v1152, 0.25
        %v1164 = vmul.f32 %v1155, 0.25
        %v1165 = vmul.f32 %v1158, 0.25
        %v1166 = vmul.f32 %v1161, 0.25
        %v1167 = vadd.f32 %v1163, %v1001
        %v1168 = vadd.f32 %v1164, %v1001
        %v1169 = vadd.f32 %v1165, %v1001
        %v1170 = vadd.f32 %v1166, %v1001
        %v1171 = vsel %vm1007, %v1167, -inf
        %1172 = vmax.xlane.f32.xlu0 %v1171
        %v1173 = vpop.xlane.xlu0 %1172
        %v1174 = vsel %vm1007, %v1168, -inf
        %1175 = vmax.xlane.f32.xlu0 %v1174
        %v1176 = vpop.xlane.xlu0 %1175
        %v1177 = vsel %vm1007, %v1169, -inf
        %1178 = vmax.xlane.f32.xlu0 %v1177
        %v1179 = vpop.xlane.xlu0 %1178
        %v1180 = vsel %vm1017, %v1170, -inf
        %1181 = vmax.xlane.f32.xlu0 %v1180
        %v1182 = vpop.xlane.xlu0 %1181
        %v1183 = vsub.f32 %v1167, %v1173
        %v1184 = vsub.f32 %v1168, %v1176
        %v1185 = vsub.f32 %v1169, %v1179
        %v1186 = vsub.f32 %v1170, %v1182
        %v1187 = vmul.f32 %v1183, 1.442695
        %v1188 = vpow.pop %v1187
        %v1189 = vmul.f32 %v1184, 1.442695
        %v1190 = vpow.pop %v1189
        %v1191 = vmul.f32 %v1185, 1.442695
        %v1192 = vpow.pop %v1191
        %v1193 = vmul.f32 %v1186, 1.442695
        %v1194 = vpow.pop %v1193
        %v1195 = vsel %vm1007, %v1188, 0.0
        %1196 = vadd.xlane.f32.xlu0 %v1195
        %v1197 = vpop.xlane.xlu0 %1196
        %v1198 = vsel %vm1007, %v1190, 0.0
        %1199 = vadd.xlane.f32.xlu0 %v1198
        %v1200 = vpop.xlane.xlu0 %1199
        %v1201 = vsel %vm1007, %v1192, 0.0
        %1202 = vadd.xlane.f32.xlu0 %v1201
        %v1203 = vpop.xlane.xlu0 %1202
        %v1204 = vsel %vm1017, %v1194, 0.0
        %1205 = vadd.xlane.f32.xlu0 %v1204
        %v1206 = vpop.xlane.xlu0 %1205
        %v1207 = vrcp.pop %v1197
        %v1208 = vrcp.pop %v1200
        %v1209 = vrcp.pop %v1203
        %v1210 = vrcp.pop %v1206
        %v1211 = vmul.f32 %v1188, %v1207
        %v1212 = vmul.f32 %v1190, %v1208
        %v1213 = vmul.f32 %v1192, %v1209
        %v1214 = vmul.f32 %v1194, %v1210
        %1218 = vrot.lane.b32.xlu0 %v930, 112
        %v1219 = vpop.permute.xlu0 %1218
        %1220 = vrot.lane.b32.xlu0 %v933, 112
        %v1221 = vpop.permute.xlu0 %1220
        %1222 = vrot.lane.b32.xlu0 %v936, 112
        %v1223 = vpop.permute.xlu0 %1222
        %1224 = vrot.lane.b32.xlu0 %v939, 112
        %v1225 = vpop.permute.xlu0 %1224
        %v1230 = vsel %vm1007, %v1211, 0
        %v1233 = vsel %vm1007, %v1212, 0
        %v1236 = vsel %vm1007, %v1213, 0
        %v1239 = vsel %vm1007, %v1214, 0
        %v1241 = vsel %vm710, %v1225, 0
        %1243 = vmatpush.msra.mxu0 0.0
        %1244 = vmatpush.msra.mxu0 0.0
        %1245 = vmatpush.msra.mxu0 0.0
        %1246 = vmatpush.msra.mxu0 0.0
        %1247 = vmatpush.msra.mxu0 0.0
        %1248 = vmatpush.msra.mxu0 0.0
        %1249 = vmatpush.msra.mxu0 0.0
        %1250 = vmatpush.msra.mxu0 0.0
        %1251 = vmatpush.msra.mxu0 0.0
        %1252 = vmatpush.msra.mxu0 0.0
        %1253 = vmatpush.msra.mxu0 0.0
        %1254 = vmatpush.msra.mxu0 0.0
        %1255 = vmatpush.msra.mxu0 %v1241
        %1256 = vmatpush.msra.mxu0 %v1223
        %1257 = vmatpush.msra.mxu0 %v1221
        %1258 = vmatpush.msra.mxu0 %v1219
        %1259 = vmatmul.f32.gmra.mxu0 %v1230
        %v1260 = vpop.f32.mrf.mxu0
        %v1261 = vadd.f32 0.0, %v1260
        %1262 = vmatmul.f32.gmra.mxu0 %v1233
        %v1263 = vpop.f32.mrf.mxu0
        %v1264 = vadd.f32 0.0, %v1263
        %1265 = vmatmul.f32.gmra.mxu0 %v1236
        %v1266 = vpop.f32.mrf.mxu0
        %v1267 = vadd.f32 0.0, %v1266
        %1268 = vmatmul.f32.gmra.mxu0 %v1239
        %v1269 = vpop.f32.mrf.mxu0
        %v1270 = vadd.f32 0.0, %v1269
        %1271 = vdwg.mxu0
        %1276 = vrot.lane.b32.xlu0 %v1261, 16
        %v1277 = vpop.permute.xlu0 %1276
        %1278 = vrot.lane.b32.xlu0 %v1264, 16
        %v1279 = vpop.permute.xlu0 %1278
        %1280 = vrot.lane.b32.xlu0 %v1267, 16
        %v1281 = vpop.permute.xlu0 %1280
        %1282 = vrot.lane.b32.xlu0 %v1270, 16
        %v1283 = vpop.permute.xlu0 %1282
        %vm1288 = vcmask 261248
        %1289 = vst.msk [vmem:[#allocation3] sm:$0xff] %vm1288, %v1277
        %1290 = vst.msk [vmem:[#allocation3 + $0x8] sm:$0xff] %vm1288, %v1279
        %1291 = vst.msk [vmem:[#allocation3 + $0x10] sm:$0xff] %vm1288, %v1281
        %vm1292 = vcmask 254080
        %1293 = vst.msk [vmem:[#allocation3 + $0x18] sm:$0x1] %vm1292, %v1283
        %1294 = vrot.lane.b32.xlu0 %v832, 96
        %v1295 = vpop.permute.xlu0 %1294
        %1296 = vrot.lane.b32.xlu0 %v835, 96
        %v1297 = vpop.permute.xlu0 %1296
        %1298 = vrot.lane.b32.xlu0 %v838, 96
        %v1299 = vpop.permute.xlu0 %1298
        %1300 = vrot.lane.b32.xlu0 %v841, 96
        %v1301 = vpop.permute.xlu0 %1300
        %1302 = vrot.lane.b32.xlu0 %v881, 96
        %v1303 = vpop.permute.xlu0 %1302
        %1304 = vrot.lane.b32.xlu0 %v884, 96
        %v1305 = vpop.permute.xlu0 %1304
        %1306 = vrot.lane.b32.xlu0 %v887, 96
        %v1307 = vpop.permute.xlu0 %1306
        %1308 = vrot.lane.b32.xlu0 %v890, 96
        %v1309 = vpop.permute.xlu0 %1308
        %v1310 = vsel %vm942, %v1295, 0
        %v1312 = vsel %vm942, %v1297, 0
        %v1314 = vsel %vm942, %v1299, 0
        %v1316 = vsel %vm942, %v1301, 0
        %v1318 = vsel %vm942, %v1303, 0
        %v1320 = vsel %vm942, %v1305, 0
        %v1322 = vsel %vm942, %v1307, 0
        %v1324 = vsel %vm942, %v1309, 0
        %1326 = vmatpush.xpose.msra.mxu0 0.0
        %1327 = vmatpush.xpose.msra.mxu0 0.0
        %1328 = vmatpush.xpose.msra.mxu0 0.0
        %1329 = vmatpush.xpose.msra.mxu0 0.0
        %1330 = vmatpush.xpose.msra.mxu0 0.0
        %1331 = vmatpush.xpose.msra.mxu0 0.0
        %1332 = vmatpush.xpose.msra.mxu0 0.0
        %1333 = vmatpush.xpose.msra.mxu0 0.0
        %1334 = vmatpush.xpose.msra.mxu0 0.0
        %1335 = vmatpush.xpose.msra.mxu0 0.0
        %1336 = vmatpush.xpose.msra.mxu0 0.0
        %1337 = vmatpush.xpose.msra.mxu0 0.0
        %1338 = vmatpush.xpose.msra.mxu0 %v1324
        %1339 = vmatpush.xpose.msra.mxu0 %v1322
        %1340 = vmatpush.xpose.msra.mxu0 %v1320
        %1341 = vmatpush.xpose.msra.mxu0 %v1318
        %1342 = vmatmul.f32.gmra.mxu0 %v1310
        %v1343 = vpop.f32.mrf.mxu0
        %v1344 = vadd.f32 0.0, %v1343
        %1345 = vmatmul.f32.gmra.mxu0 %v1312
        %v1346 = vpop.f32.mrf.mxu0
        %v1347 = vadd.f32 0.0, %v1346
        %1348 = vmatmul.f32.gmra.mxu0 %v1314
        %v1349 = vpop.f32.mrf.mxu0
        %v1350 = vadd.f32 0.0, %v1349
        %1351 = vmatmul.f32.gmra.mxu0 %v1316
        %v1352 = vpop.f32.mrf.mxu0
        %v1353 = vadd.f32 0.0, %v1352
        %1354 = vdwg.mxu0
        %v1355 = vmul.f32 %v1344, 0.25
        %v1356 = vmul.f32 %v1347, 0.25
        %v1357 = vmul.f32 %v1350, 0.25
        %v1358 = vmul.f32 %v1353, 0.25
        %v1359 = vadd.f32 %v1355, %v1001
        %v1360 = vadd.f32 %v1356, %v1001
        %v1361 = vadd.f32 %v1357, %v1001
        %v1362 = vadd.f32 %v1358, %v1001
        %v1363 = vsel %vm1007, %v1359, -inf
        %1364 = vmax.xlane.f32.xlu0 %v1363
        %v1365 = vpop.xlane.xlu0 %1364
        %v1366 = vsel %vm1007, %v1360, -inf
        %1367 = vmax.xlane.f32.xlu0 %v1366
        %v1368 = vpop.xlane.xlu0 %1367
        %v1369 = vsel %vm1007, %v1361, -inf
        %1370 = vmax.xlane.f32.xlu0 %v1369
        %v1371 = vpop.xlane.xlu0 %1370
        %v1372 = vsel %vm1017, %v1362, -inf
        %1373 = vmax.xlane.f32.xlu0 %v1372
        %v1374 = vpop.xlane.xlu0 %1373
        %v1375 = vsub.f32 %v1359, %v1365
        %v1376 = vsub.f32 %v1360, %v1368
        %v1377 = vsub.f32 %v1361, %v1371
        %v1378 = vsub.f32 %v1362, %v1374
        %v1379 = vmul.f32 %v1375, 1.442695
        %v1380 = vpow.pop %v1379
        %v1381 = vmul.f32 %v1376, 1.442695
        %v1382 = vpow.pop %v1381
        %v1383 = vmul.f32 %v1377, 1.442695
        %v1384 = vpow.pop %v1383
        %v1385 = vmul.f32 %v1378, 1.442695
        %v1386 = vpow.pop %v1385
        %v1387 = vsel %vm1007, %v1380, 0.0
        %1388 = vadd.xlane.f32.xlu0 %v1387
        %v1389 = vpop.xlane.xlu0 %1388
        %v1390 = vsel %vm1007, %v1382, 0.0
        %1391 = vadd.xlane.f32.xlu0 %v1390
        %v1392 = vpop.xlane.xlu0 %1391
        %v1393 = vsel %vm1007, %v1384, 0.0
        %1394 = vadd.xlane.f32.xlu0 %v1393
        %v1395 = vpop.xlane.xlu0 %1394
        %v1396 = vsel %vm1017, %v1386, 0.0
        %1397 = vadd.xlane.f32.xlu0 %v1396
        %v1398 = vpop.xlane.xlu0 %1397
        %v1399 = vrcp.pop %v1389
        %v1400 = vrcp.pop %v1392
        %v1401 = vrcp.pop %v1395
        %v1402 = vrcp.pop %v1398
        %v1403 = vmul.f32 %v1380, %v1399
        %v1404 = vmul.f32 %v1382, %v1400
        %v1405 = vmul.f32 %v1384, %v1401
        %v1406 = vmul.f32 %v1386, %v1402
        %1407 = vrot.lane.b32.xlu0 %v930, 96
        %v1408 = vpop.permute.xlu0 %1407
        %1409 = vrot.lane.b32.xlu0 %v933, 96
        %v1410 = vpop.permute.xlu0 %1409
        %1411 = vrot.lane.b32.xlu0 %v936, 96
        %v1412 = vpop.permute.xlu0 %1411
        %1413 = vrot.lane.b32.xlu0 %v939, 96
        %v1414 = vpop.permute.xlu0 %1413
        %v1419 = vsel %vm1007, %v1403, 0
        %v1422 = vsel %vm1007, %v1404, 0
        %v1425 = vsel %vm1007, %v1405, 0
        %v1428 = vsel %vm1007, %v1406, 0
        %v1430 = vsel %vm710, %v1414, 0
        %1432 = vmatpush.msra.mxu0 0.0
        %1433 = vmatpush.msra.mxu0 0.0
        %1434 = vmatpush.msra.mxu0 0.0
        %1435 = vmatpush.msra.mxu0 0.0
        %1436 = vmatpush.msra.mxu0 0.0
        %1437 = vmatpush.msra.mxu0 0.0
        %1438 = vmatpush.msra.mxu0 0.0
        %1439 = vmatpush.msra.mxu0 0.0
        %1440 = vmatpush.msra.mxu0 0.0
        %1441 = vmatpush.msra.mxu0 0.0
        %1442 = vmatpush.msra.mxu0 0.0
        %1443 = vmatpush.msra.mxu0 0.0
        %1444 = vmatpush.msra.mxu0 %v1430
        %1445 = vmatpush.msra.mxu0 %v1412
        %1446 = vmatpush.msra.mxu0 %v1410
        %1447 = vmatpush.msra.mxu0 %v1408
        %1448 = vmatmul.f32.gmra.mxu0 %v1419
        %v1449 = vpop.f32.mrf.mxu0
        %v1450 = vadd.f32 0.0, %v1449
        %1451 = vmatmul.f32.gmra.mxu0 %v1422
        %v1452 = vpop.f32.mrf.mxu0
        %v1453 = vadd.f32 0.0, %v1452
        %1454 = vmatmul.f32.gmra.mxu0 %v1425
        %v1455 = vpop.f32.mrf.mxu0
        %v1456 = vadd.f32 0.0, %v1455
        %1457 = vmatmul.f32.gmra.mxu0 %v1428
        %v1458 = vpop.f32.mrf.mxu0
        %v1459 = vadd.f32 0.0, %v1458
        %1460 = vdwg.mxu0
        %1465 = vrot.lane.b32.xlu0 %v1450, 32
        %v1466 = vpop.permute.xlu0 %1465
        %1467 = vrot.lane.b32.xlu0 %v1453, 32
        %v1468 = vpop.permute.xlu0 %1467
        %1469 = vrot.lane.b32.xlu0 %v1456, 32
        %v1470 = vpop.permute.xlu0 %1469
        %1471 = vrot.lane.b32.xlu0 %v1459, 32
        %v1472 = vpop.permute.xlu0 %1471
        %vm1477 = vcmask 392448
        %1478 = vst.msk [vmem:[#allocation3] sm:$0xff] %vm1477, %v1466
        %1479 = vst.msk [vmem:[#allocation3 + $0x8] sm:$0xff] %vm1477, %v1468
        %1480 = vst.msk [vmem:[#allocation3 + $0x10] sm:$0xff] %vm1477, %v1470
        %vm1481 = vcmask 385280
        %1482 = vst.msk [vmem:[#allocation3 + $0x18] sm:$0x1] %vm1481, %v1472
        %1483 = vrot.lane.b32.xlu0 %v832, 80
        %v1484 = vpop.permute.xlu0 %1483
        %1485 = vrot.lane.b32.xlu0 %v835, 80
        %v1486 = vpop.permute.xlu0 %1485
        %1487 = vrot.lane.b32.xlu0 %v838, 80
        %v1488 = vpop.permute.xlu0 %1487
        %1489 = vrot.lane.b32.xlu0 %v841, 80
        %v1490 = vpop.permute.xlu0 %1489
        %1491 = vrot.lane.b32.xlu0 %v881, 80
        %v1492 = vpop.permute.xlu0 %1491
        %1493 = vrot.lane.b32.xlu0 %v884, 80
        %v1494 = vpop.permute.xlu0 %1493
        %1495 = vrot.lane.b32.xlu0 %v887, 80
        %v1496 = vpop.permute.xlu0 %1495
        %1497 = vrot.lane.b32.xlu0 %v890, 80
        %v1498 = vpop.permute.xlu0 %1497
        %v1499 = vsel %vm942, %v1484, 0
        %v1501 = vsel %vm942, %v1486, 0
        %v1503 = vsel %vm942, %v1488, 0
        %v1505 = vsel %vm942, %v1490, 0
        %v1507 = vsel %vm942, %v1492, 0
        %v1509 = vsel %vm942, %v1494, 0
        %v1511 = vsel %vm942, %v1496, 0
        %v1513 = vsel %vm942, %v1498, 0
        %1515 = vmatpush.xpose.msra.mxu0 0.0
        %1516 = vmatpush.xpose.msra.mxu0 0.0
        %1517 = vmatpush.xpose.msra.mxu0 0.0
        %1518 = vmatpush.xpose.msra.mxu0 0.0
        %1519 = vmatpush.xpose.msra.mxu0 0.0
        %1520 = vmatpush.xpose.msra.mxu0 0.0
        %1521 = vmatpush.xpose.msra.mxu0 0.0
        %1522 = vmatpush.xpose.msra.mxu0 0.0
        %1523 = vmatpush.xpose.msra.mxu0 0.0
        %1524 = vmatpush.xpose.msra.mxu0 0.0
        %1525 = vmatpush.xpose.msra.mxu0 0.0
        %1526 = vmatpush.xpose.msra.mxu0 0.0
        %1527 = vmatpush.xpose.msra.mxu0 %v1513
        %1528 = vmatpush.xpose.msra.mxu0 %v1511
        %1529 = vmatpush.xpose.msra.mxu0 %v1509
        %1530 = vmatpush.xpose.msra.mxu0 %v1507
        %1531 = vmatmul.f32.gmra.mxu0 %v1499
        %v1532 = vpop.f32.mrf.mxu0
        %v1533 = vadd.f32 0.0, %v1532
        %1534 = vmatmul.f32.gmra.mxu0 %v1501
        %v1535 = vpop.f32.mrf.mxu0
        %v1536 = vadd.f32 0.0, %v1535
        %1537 = vmatmul.f32.gmra.mxu0 %v1503
        %v1538 = vpop.f32.mrf.mxu0
        %v1539 = vadd.f32 0.0, %v1538
        %1540 = vmatmul.f32.gmra.mxu0 %v1505
        %v1541 = vpop.f32.mrf.mxu0
        %v1542 = vadd.f32 0.0, %v1541
        %1543 = vdwg.mxu0
        %v1544 = vmul.f32 %v1533, 0.25
        %v1545 = vmul.f32 %v1536, 0.25
        %v1546 = vmul.f32 %v1539, 0.25
        %v1547 = vmul.f32 %v1542, 0.25
        %v1548 = vadd.f32 %v1544, %v1001
        %v1549 = vadd.f32 %v1545, %v1001
        %v1550 = vadd.f32 %v1546, %v1001
        %v1551 = vadd.f32 %v1547, %v1001
        %v1552 = vsel %vm1007, %v1548, -inf
        %1553 = vmax.xlane.f32.xlu0 %v1552
        %v1554 = vpop.xlane.xlu0 %1553
        %v1555 = vsel %vm1007, %v1549, -inf
        %1556 = vmax.xlane.f32.xlu0 %v1555
        %v1557 = vpop.xlane.xlu0 %1556
        %v1558 = vsel %vm1007, %v1550, -inf
        %1559 = vmax.xlane.f32.xlu0 %v1558
        %v1560 = vpop.xlane.xlu0 %1559
        %v1561 = vsel %vm1017, %v1551, -inf
        %1562 = vmax.xlane.f32.xlu0 %v1561
        %v1563 = vpop.xlane.xlu0 %1562
        %v1564 = vsub.f32 %v1548, %v1554
        %v1565 = vsub.f32 %v1549, %v1557
        %v1566 = vsub.f32 %v1550, %v1560
        %v1567 = vsub.f32 %v1551, %v1563
        %v1568 = vmul.f32 %v1564, 1.442695
        %v1569 = vpow.pop %v1568
        %v1570 = vmul.f32 %v1565, 1.442695
        %v1571 = vpow.pop %v1570
        %v1572 = vmul.f32 %v1566, 1.442695
        %v1573 = vpow.pop %v1572
        %v1574 = vmul.f32 %v1567, 1.442695
        %v1575 = vpow.pop %v1574
        %v1576 = vsel %vm1007, %v1569, 0.0
        %1577 = vadd.xlane.f32.xlu0 %v1576
        %v1578 = vpop.xlane.xlu0 %1577
        %v1579 = vsel %vm1007, %v1571, 0.0
        %1580 = vadd.xlane.f32.xlu0 %v1579
        %v1581 = vpop.xlane.xlu0 %1580
        %v1582 = vsel %vm1007, %v1573, 0.0
        %1583 = vadd.xlane.f32.xlu0 %v1582
        %v1584 = vpop.xlane.xlu0 %1583
        %v1585 = vsel %vm1017, %v1575, 0.0
        %1586 = vadd.xlane.f32.xlu0 %v1585
        %v1587 = vpop.xlane.xlu0 %1586
        %v1588 = vrcp.pop %v1578
        %v1589 = vrcp.pop %v1581
        %v1590 = vrcp.pop %v1584
        %v1591 = vrcp.pop %v1587
        %v1592 = vmul.f32 %v1569, %v1588
        %v1593 = vmul.f32 %v1571, %v1589
        %v1594 = vmul.f32 %v1573, %v1590
        %v1595 = vmul.f32 %v1575, %v1591
        %1596 = vrot.lane.b32.xlu0 %v930, 80
        %v1597 = vpop.permute.xlu0 %1596
        %1598 = vrot.lane.b32.xlu0 %v933, 80
        %v1599 = vpop.permute.xlu0 %1598
        %1600 = vrot.lane.b32.xlu0 %v936, 80
        %v1601 = vpop.permute.xlu0 %1600
        %1602 = vrot.lane.b32.xlu0 %v939, 80
        %v1603 = vpop.permute.xlu0 %1602
        %v1608 = vsel %vm1007, %v1592, 0
        %v1611 = vsel %vm1007, %v1593, 0
        %v1614 = vsel %vm1007, %v1594, 0
        %v1617 = vsel %vm1007, %v1595, 0
        %v1619 = vsel %vm710, %v1603, 0
        %1621 = vmatpush.msra.mxu0 0.0
        %1622 = vmatpush.msra.mxu0 0.0
        %1623 = vmatpush.msra.mxu0 0.0
        %1624 = vmatpush.msra.mxu0 0.0
        %1625 = vmatpush.msra.mxu0 0.0
        %1626 = vmatpush.msra.mxu0 0.0
        %1627 = vmatpush.msra.mxu0 0.0
        %1628 = vmatpush.msra.mxu0 0.0
        %1629 = vmatpush.msra.mxu0 0.0
        %1630 = vmatpush.msra.mxu0 0.0
        %1631 = vmatpush.msra.mxu0 0.0
        %1632 = vmatpush.msra.mxu0 0.0
        %1633 = vmatpush.msra.mxu0 %v1619
        %1634 = vmatpush.msra.mxu0 %v1601
        %1635 = vmatpush.msra.mxu0 %v1599
        %1636 = vmatpush.msra.mxu0 %v1597
        %1637 = vmatmul.f32.gmra.mxu0 %v1608
        %v1638 = vpop.f32.mrf.mxu0
        %v1639 = vadd.f32 0.0, %v1638
        %1640 = vmatmul.f32.gmra.mxu0 %v1611
        %v1641 = vpop.f32.mrf.mxu0
        %v1642 = vadd.f32 0.0, %v1641
        %1643 = vmatmul.f32.gmra.mxu0 %v1614
        %v1644 = vpop.f32.mrf.mxu0
        %v1645 = vadd.f32 0.0, %v1644
        %1646 = vmatmul.f32.gmra.mxu0 %v1617
        %v1647 = vpop.f32.mrf.mxu0
        %v1648 = vadd.f32 0.0, %v1647
        %1649 = vdwg.mxu0
        %1654 = vrot.lane.b32.xlu0 %v1639, 48
        %v1655 = vpop.permute.xlu0 %1654
        %1656 = vrot.lane.b32.xlu0 %v1642, 48
        %v1657 = vpop.permute.xlu0 %1656
        %1658 = vrot.lane.b32.xlu0 %v1645, 48
        %v1659 = vpop.permute.xlu0 %1658
        %1660 = vrot.lane.b32.xlu0 %v1648, 48
        %v1661 = vpop.permute.xlu0 %1660
        %vm1666 = vcmask 523648
        %1667 = vst.msk [vmem:[#allocation3] sm:$0xff] %vm1666, %v1655
        %1668 = vst.msk [vmem:[#allocation3 + $0x8] sm:$0xff] %vm1666, %v1657
        %1669 = vst.msk [vmem:[#allocation3 + $0x10] sm:$0xff] %vm1666, %v1659
        %vm1670 = vcmask 516480
        %1671 = vst.msk [vmem:[#allocation3 + $0x18] sm:$0x1] %vm1670, %v1661
        %1672 = vrot.lane.b32.xlu0 %v832, 64
        %v1673 = vpop.permute.xlu0 %1672
        %1674 = vrot.lane.b32.xlu0 %v835, 64
        %v1675 = vpop.permute.xlu0 %1674
        %1676 = vrot.lane.b32.xlu0 %v838, 64
        %v1677 = vpop.permute.xlu0 %1676
        %1678 = vrot.lane.b32.xlu0 %v841, 64
        %v1679 = vpop.permute.xlu0 %1678
        %1680 = vrot.lane.b32.xlu0 %v881, 64
        %v1681 = vpop.permute.xlu0 %1680
        %1682 = vrot.lane.b32.xlu0 %v884, 64
        %v1683 = vpop.permute.xlu0 %1682
        %1684 = vrot.lane.b32.xlu0 %v887, 64
        %v1685 = vpop.permute.xlu0 %1684
        %1686 = vrot.lane.b32.xlu0 %v890, 64
        %v1687 = vpop.permute.xlu0 %1686
        %v1688 = vsel %vm942, %v1673, 0
        %v1690 = vsel %vm942, %v1675, 0
        %v1692 = vsel %vm942, %v1677, 0
        %v1694 = vsel %vm942, %v1679, 0
        %v1696 = vsel %vm942, %v1681, 0
        %v1698 = vsel %vm942, %v1683, 0
        %v1700 = vsel %vm942, %v1685, 0
        %v1702 = vsel %vm942, %v1687, 0
        %1704 = vmatpush.xpose.msra.mxu0 0.0
        %1705 = vmatpush.xpose.msra.mxu0 0.0
        %1706 = vmatpush.xpose.msra.mxu0 0.0
        %1707 = vmatpush.xpose.msra.mxu0 0.0
        %1708 = vmatpush.xpose.msra.mxu0 0.0
        %1709 = vmatpush.xpose.msra.mxu0 0.0
        %1710 = vmatpush.xpose.msra.mxu0 0.0
        %1711 = vmatpush.xpose.msra.mxu0 0.0
        %1712 = vmatpush.xpose.msra.mxu0 0.0
        %1713 = vmatpush.xpose.msra.mxu0 0.0
        %1714 = vmatpush.xpose.msra.mxu0 0.0
        %1715 = vmatpush.xpose.msra.mxu0 0.0
        %1716 = vmatpush.xpose.msra.mxu0 %v1702
        %1717 = vmatpush.xpose.msra.mxu0 %v1700
        %1718 = vmatpush.xpose.msra.mxu0 %v1698
        %1719 = vmatpush.xpose.msra.mxu0 %v1696
        %1720 = vmatmul.f32.gmra.mxu0 %v1688
        %v1721 = vpop.f32.mrf.mxu0
        %v1722 = vadd.f32 0.0, %v1721
        %1723 = vmatmul.f32.gmra.mxu0 %v1690
        %v1724 = vpop.f32.mrf.mxu0
        %v1725 = vadd.f32 0.0, %v1724
        %1726 = vmatmul.f32.gmra.mxu0 %v1692
        %v1727 = vpop.f32.mrf.mxu0
        %v1728 = vadd.f32 0.0, %v1727
        %1729 = vmatmul.f32.gmra.mxu0 %v1694
        %v1730 = vpop.f32.mrf.mxu0
        %v1731 = vadd.f32 0.0, %v1730
        %1732 = vdwg.mxu0
        %v1733 = vmul.f32 %v1722, 0.25
        %v1734 = vmul.f32 %v1725, 0.25
        %v1735 = vmul.f32 %v1728, 0.25
        %v1736 = vmul.f32 %v1731, 0.25
        %v1737 = vadd.f32 %v1733, %v1001
        %v1738 = vadd.f32 %v1734, %v1001
        %v1739 = vadd.f32 %v1735, %v1001
        %v1740 = vadd.f32 %v1736, %v1001
        %v1741 = vsel %vm1007, %v1737, -inf
        %1742 = vmax.xlane.f32.xlu0 %v1741
        %v1743 = vpop.xlane.xlu0 %1742
        %v1744 = vsel %vm1007, %v1738, -inf
        %1745 = vmax.xlane.f32.xlu0 %v1744
        %v1746 = vpop.xlane.xlu0 %1745
        %v1747 = vsel %vm1007, %v1739, -inf
        %1748 = vmax.xlane.f32.xlu0 %v1747
        %v1749 = vpop.xlane.xlu0 %1748
        %v1750 = vsel %vm1017, %v1740, -inf
        %1751 = vmax.xlane.f32.xlu0 %v1750
        %v1752 = vpop.xlane.xlu0 %1751
        %v1753 = vsub.f32 %v1737, %v1743
        %v1754 = vsub.f32 %v1738, %v1746
        %v1755 = vsub.f32 %v1739, %v1749
        %v1756 = vsub.f32 %v1740, %v1752
        %v1757 = vmul.f32 %v1753, 1.442695
        %v1758 = vpow.pop %v1757
        %v1759 = vmul.f32 %v1754, 1.442695
        %v1760 = vpow.pop %v1759
        %v1761 = vmul.f32 %v1755, 1.442695
        %v1762 = vpow.pop %v1761
        %v1763 = vmul.f32 %v1756, 1.442695
        %v1764 = vpow.pop %v1763
        %v1765 = vsel %vm1007, %v1758, 0.0
        %1766 = vadd.xlane.f32.xlu0 %v1765
        %v1767 = vpop.xlane.xlu0 %1766
        %v1768 = vsel %vm1007, %v1760, 0.0
        %1769 = vadd.xlane.f32.xlu0 %v1768
        %v1770 = vpop.xlane.xlu0 %1769
        %v1771 = vsel %vm1007, %v1762, 0.0
        %1772 = vadd.xlane.f32.xlu0 %v1771
        %v1773 = vpop.xlane.xlu0 %1772
        %v1774 = vsel %vm1017, %v1764, 0.0
        %1775 = vadd.xlane.f32.xlu0 %v1774
        %v1776 = vpop.xlane.xlu0 %1775
        %v1777 = vrcp.pop %v1767
        %v1778 = vrcp.pop %v1770
        %v1779 = vrcp.pop %v1773
        %v1780 = vrcp.pop %v1776
        %v1781 = vmul.f32 %v1758, %v1777
        %v1782 = vmul.f32 %v1760, %v1778
        %v1783 = vmul.f32 %v1762, %v1779
        %v1784 = vmul.f32 %v1764, %v1780
        %1785 = vrot.lane.b32.xlu0 %v930, 64
        %v1786 = vpop.permute.xlu0 %1785
        %1787 = vrot.lane.b32.xlu0 %v933, 64
        %v1788 = vpop.permute.xlu0 %1787
        %1789 = vrot.lane.b32.xlu0 %v936, 64
        %v1790 = vpop.permute.xlu0 %1789
        %1791 = vrot.lane.b32.xlu0 %v939, 64
        %v1792 = vpop.permute.xlu0 %1791
        %v1797 = vsel %vm1007, %v1781, 0
        %v1800 = vsel %vm1007, %v1782, 0
        %v1803 = vsel %vm1007, %v1783, 0
        %v1806 = vsel %vm1007, %v1784, 0
        %v1808 = vsel %vm710, %v1792, 0
        %1810 = vmatpush.msra.mxu0 0.0
        %1811 = vmatpush.msra.mxu0 0.0
        %1812 = vmatpush.msra.mxu0 0.0
        %1813 = vmatpush.msra.mxu0 0.0
        %1814 = vmatpush.msra.mxu0 0.0
        %1815 = vmatpush.msra.mxu0 0.0
        %1816 = vmatpush.msra.mxu0 0.0
        %1817 = vmatpush.msra.mxu0 0.0
        %1818 = vmatpush.msra.mxu0 0.0
        %1819 = vmatpush.msra.mxu0 0.0
        %1820 = vmatpush.msra.mxu0 0.0
        %1821 = vmatpush.msra.mxu0 0.0
        %1822 = vmatpush.msra.mxu0 %v1808
        %1823 = vmatpush.msra.mxu0 %v1790
        %1824 = vmatpush.msra.mxu0 %v1788
        %1825 = vmatpush.msra.mxu0 %v1786
        %1826 = vmatmul.f32.gmra.mxu0 %v1797
        %v1827 = vpop.f32.mrf.mxu0
        %v1828 = vadd.f32 0.0, %v1827
        %1829 = vmatmul.f32.gmra.mxu0 %v1800
        %v1830 = vpop.f32.mrf.mxu0
        %v1831 = vadd.f32 0.0, %v1830
        %1832 = vmatmul.f32.gmra.mxu0 %v1803
        %v1833 = vpop.f32.mrf.mxu0
        %v1834 = vadd.f32 0.0, %v1833
        %1835 = vmatmul.f32.gmra.mxu0 %v1806
        %v1836 = vpop.f32.mrf.mxu0
        %v1837 = vadd.f32 0.0, %v1836
        %1838 = vdwg.mxu0
        %1843 = vrot.lane.b32.xlu0 %v1828, 64
        %v1844 = vpop.permute.xlu0 %1843
        %1845 = vrot.lane.b32.xlu0 %v1831, 64
        %v1846 = vpop.permute.xlu0 %1845
        %1847 = vrot.lane.b32.xlu0 %v1834, 64
        %v1848 = vpop.permute.xlu0 %1847
        %1849 = vrot.lane.b32.xlu0 %v1837, 64
        %v1850 = vpop.permute.xlu0 %1849
        %vm1855 = vcmask 654848
        %1856 = vst.msk [vmem:[#allocation3] sm:$0xff] %vm1855, %v1844
        %1857 = vst.msk [vmem:[#allocation3 + $0x8] sm:$0xff] %vm1855, %v1846
        %1858 = vst.msk [vmem:[#allocation3 + $0x10] sm:$0xff] %vm1855, %v1848
        %vm1859 = vcmask 647680
        %1860 = vst.msk [vmem:[#allocation3 + $0x18] sm:$0x1] %vm1859, %v1850
        %1861 = vrot.lane.b32.xlu0 %v832, 48
        %v1862 = vpop.permute.xlu0 %1861
        %1863 = vrot.lane.b32.xlu0 %v835, 48
        %v1864 = vpop.permute.xlu0 %1863
        %1865 = vrot.lane.b32.xlu0 %v838, 48
        %v1866 = vpop.permute.xlu0 %1865
        %1867 = vrot.lane.b32.xlu0 %v841, 48
        %v1868 = vpop.permute.xlu0 %1867
        %1869 = vrot.lane.b32.xlu0 %v881, 48
        %v1870 = vpop.permute.xlu0 %1869
        %1871 = vrot.lane.b32.xlu0 %v884, 48
        %v1872 = vpop.permute.xlu0 %1871
        %1873 = vrot.lane.b32.xlu0 %v887, 48
        %v1874 = vpop.permute.xlu0 %1873
        %1875 = vrot.lane.b32.xlu0 %v890, 48
        %v1876 = vpop.permute.xlu0 %1875
        %v1877 = vsel %vm942, %v1862, 0
        %v1879 = vsel %vm942, %v1864, 0
        %v1881 = vsel %vm942, %v1866, 0
        %v1883 = vsel %vm942, %v1868, 0
        %v1885 = vsel %vm942, %v1870, 0
        %v1887 = vsel %vm942, %v1872, 0
        %v1889 = vsel %vm942, %v1874, 0
        %v1891 = vsel %vm942, %v1876, 0
        %1893 = vmatpush.xpose.msra.mxu0 0.0
        %1894 = vmatpush.xpose.msra.mxu0 0.0
        %1895 = vmatpush.xpose.msra.mxu0 0.0
        %1896 = vmatpush.xpose.msra.mxu0 0.0
        %1897 = vmatpush.xpose.msra.mxu0 0.0
        %1898 = vmatpush.xpose.msra.mxu0 0.0
        %1899 = vmatpush.xpose.msra.mxu0 0.0
        %1900 = vmatpush.xpose.msra.mxu0 0.0
        %1901 = vmatpush.xpose.msra.mxu0 0.0
        %1902 = vmatpush.xpose.msra.mxu0 0.0
        %1903 = vmatpush.xpose.msra.mxu0 0.0
        %1904 = vmatpush.xpose.msra.mxu0 0.0
        %1905 = vmatpush.xpose.msra.mxu0 %v1891
        %1906 = vmatpush.xpose.msra.mxu0 %v1889
        %1907 = vmatpush.xpose.msra.mxu0 %v1887
        %1908 = vmatpush.xpose.msra.mxu0 %v1885
        %1909 = vmatmul.f32.gmra.mxu0 %v1877
        %v1910 = vpop.f32.mrf.mxu0
        %v1911 = vadd.f32 0.0, %v1910
        %1912 = vmatmul.f32.gmra.mxu0 %v1879
        %v1913 = vpop.f32.mrf.mxu0
        %v1914 = vadd.f32 0.0, %v1913
        %1915 = vmatmul.f32.gmra.mxu0 %v1881
        %v1916 = vpop.f32.mrf.mxu0
        %v1917 = vadd.f32 0.0, %v1916
        %1918 = vmatmul.f32.gmra.mxu0 %v1883
        %v1919 = vpop.f32.mrf.mxu0
        %v1920 = vadd.f32 0.0, %v1919
        %1921 = vdwg.mxu0
        %v1922 = vmul.f32 %v1911, 0.25
        %v1923 = vmul.f32 %v1914, 0.25
        %v1924 = vmul.f32 %v1917, 0.25
        %v1925 = vmul.f32 %v1920, 0.25
        %v1926 = vadd.f32 %v1922, %v1001
        %v1927 = vadd.f32 %v1923, %v1001
        %v1928 = vadd.f32 %v1924, %v1001
        %v1929 = vadd.f32 %v1925, %v1001
        %v1930 = vsel %vm1007, %v1926, -inf
        %1931 = vmax.xlane.f32.xlu0 %v1930
        %v1932 = vpop.xlane.xlu0 %1931
        %v1933 = vsel %vm1007, %v1927, -inf
        %1934 = vmax.xlane.f32.xlu0 %v1933
        %v1935 = vpop.xlane.xlu0 %1934
        %v1936 = vsel %vm1007, %v1928, -inf
        %1937 = vmax.xlane.f32.xlu0 %v1936
        %v1938 = vpop.xlane.xlu0 %1937
        %v1939 = vsel %vm1017, %v1929, -inf
        %1940 = vmax.xlane.f32.xlu0 %v1939
        %v1941 = vpop.xlane.xlu0 %1940
        %v1942 = vsub.f32 %v1926, %v1932
        %v1943 = vsub.f32 %v1927, %v1935
        %v1944 = vsub.f32 %v1928, %v1938
        %v1945 = vsub.f32 %v1929, %v1941
        %v1946 = vmul.f32 %v1942, 1.442695
        %v1947 = vpow.pop %v1946
        %v1948 = vmul.f32 %v1943, 1.442695
        %v1949 = vpow.pop %v1948
        %v1950 = vmul.f32 %v1944, 1.442695
        %v1951 = vpow.pop %v1950
        %v1952 = vmul.f32 %v1945, 1.442695
        %v1953 = vpow.pop %v1952
        %v1954 = vsel %vm1007, %v1947, 0.0
        %1955 = vadd.xlane.f32.xlu0 %v1954
        %v1956 = vpop.xlane.xlu0 %1955
        %v1957 = vsel %vm1007, %v1949, 0.0
        %1958 = vadd.xlane.f32.xlu0 %v1957
        %v1959 = vpop.xlane.xlu0 %1958
        %v1960 = vsel %vm1007, %v1951, 0.0
        %1961 = vadd.xlane.f32.xlu0 %v1960
        %v1962 = vpop.xlane.xlu0 %1961
        %v1963 = vsel %vm1017, %v1953, 0.0
        %1964 = vadd.xlane.f32.xlu0 %v1963
        %v1965 = vpop.xlane.xlu0 %1964
        %v1966 = vrcp.pop %v1956
        %v1967 = vrcp.pop %v1959
        %v1968 = vrcp.pop %v1962
        %v1969 = vrcp.pop %v1965
        %v1970 = vmul.f32 %v1947, %v1966
        %v1971 = vmul.f32 %v1949, %v1967
        %v1972 = vmul.f32 %v1951, %v1968
        %v1973 = vmul.f32 %v1953, %v1969
        %1974 = vrot.lane.b32.xlu0 %v930, 48
        %v1975 = vpop.permute.xlu0 %1974
        %1976 = vrot.lane.b32.xlu0 %v933, 48
        %v1977 = vpop.permute.xlu0 %1976
        %1978 = vrot.lane.b32.xlu0 %v936, 48
        %v1979 = vpop.permute.xlu0 %1978
        %1980 = vrot.lane.b32.xlu0 %v939, 48
        %v1981 = vpop.permute.xlu0 %1980
        %v1986 = vsel %vm1007, %v1970, 0
        %v1989 = vsel %vm1007, %v1971, 0
        %v1992 = vsel %vm1007, %v1972, 0
        %v1995 = vsel %vm1007, %v1973, 0
        %v1997 = vsel %vm710, %v1981, 0
        %1999 = vmatpush.msra.mxu0 0.0
        %2000 = vmatpush.msra.mxu0 0.0
        %2001 = vmatpush.msra.mxu0 0.0
        %2002 = vmatpush.msra.mxu0 0.0
        %2003 = vmatpush.msra.mxu0 0.0
        %2004 = vmatpush.msra.mxu0 0.0
        %2005 = vmatpush.msra.mxu0 0.0
        %2006 = vmatpush.msra.mxu0 0.0
        %2007 = vmatpush.msra.mxu0 0.0
        %2008 = vmatpush.msra.mxu0 0.0
        %2009 = vmatpush.msra.mxu0 0.0
        %2010 = vmatpush.msra.mxu0 0.0
        %2011 = vmatpush.msra.mxu0 %v1997
        %2012 = vmatpush.msra.mxu0 %v1979
        %2013 = vmatpush.msra.mxu0 %v1977
        %2014 = vmatpush.msra.mxu0 %v1975
        %2015 = vmatmul.f32.gmra.mxu0 %v1986
        %v2016 = vpop.f32.mrf.mxu0
        %v2017 = vadd.f32 0.0, %v2016
        %2018 = vmatmul.f32.gmra.mxu0 %v1989
        %v2019 = vpop.f32.mrf.mxu0
        %v2020 = vadd.f32 0.0, %v2019
        %2021 = vmatmul.f32.gmra.mxu0 %v1992
        %v2022 = vpop.f32.mrf.mxu0
        %v2023 = vadd.f32 0.0, %v2022
        %2024 = vmatmul.f32.gmra.mxu0 %v1995
        %v2025 = vpop.f32.mrf.mxu0
        %v2026 = vadd.f32 0.0, %v2025
        %2027 = vdwg.mxu0
        %2032 = vrot.lane.b32.xlu0 %v2017, 80
        %v2033 = vpop.permute.xlu0 %2032
        %2034 = vrot.lane.b32.xlu0 %v2020, 80
        %v2035 = vpop.permute.xlu0 %2034
        %2036 = vrot.lane.b32.xlu0 %v2023, 80
        %v2037 = vpop.permute.xlu0 %2036
        %2038 = vrot.lane.b32.xlu0 %v2026, 80
        %v2039 = vpop.permute.xlu0 %2038
        %vm2044 = vcmask 786048
        %2045 = vst.msk [vmem:[#allocation3] sm:$0xff] %vm2044, %v2033
        %2046 = vst.msk [vmem:[#allocation3 + $0x8] sm:$0xff] %vm2044, %v2035
        %2047 = vst.msk [vmem:[#allocation3 + $0x10] sm:$0xff] %vm2044, %v2037
        %vm2048 = vcmask 778880
        %2049 = vst.msk [vmem:[#allocation3 + $0x18] sm:$0x1] %vm2048, %v2039
        %2050 = vrot.lane.b32.xlu0 %v832, 32
        %v2051 = vpop.permute.xlu0 %2050
        %2052 = vrot.lane.b32.xlu0 %v835, 32
        %v2053 = vpop.permute.xlu0 %2052
        %2054 = vrot.lane.b32.xlu0 %v838, 32
        %v2055 = vpop.permute.xlu0 %2054
        %2056 = vrot.lane.b32.xlu0 %v841, 32
        %v2057 = vpop.permute.xlu0 %2056
        %2058 = vrot.lane.b32.xlu0 %v881, 32
        %v2059 = vpop.permute.xlu0 %2058
        %2060 = vrot.lane.b32.xlu0 %v884, 32
        %v2061 = vpop.permute.xlu0 %2060
        %2062 = vrot.lane.b32.xlu0 %v887, 32
        %v2063 = vpop.permute.xlu0 %2062
        %2064 = vrot.lane.b32.xlu0 %v890, 32
        %v2065 = vpop.permute.xlu0 %2064
        %v2066 = vsel %vm942, %v2051, 0
        %v2068 = vsel %vm942, %v2053, 0
        %v2070 = vsel %vm942, %v2055, 0
        %v2072 = vsel %vm942, %v2057, 0
        %v2074 = vsel %vm942, %v2059, 0
        %v2076 = vsel %vm942, %v2061, 0
        %v2078 = vsel %vm942, %v2063, 0
        %v2080 = vsel %vm942, %v2065, 0
        %2082 = vmatpush.xpose.msra.mxu0 0.0
        %2083 = vmatpush.xpose.msra.mxu0 0.0
        %2084 = vmatpush.xpose.msra.mxu0 0.0
        %2085 = vmatpush.xpose.msra.mxu0 0.0
        %2086 = vmatpush.xpose.msra.mxu0 0.0
        %2087 = vmatpush.xpose.msra.mxu0 0.0
        %2088 = vmatpush.xpose.msra.mxu0 0.0
        %2089 = vmatpush.xpose.msra.mxu0 0.0
        %2090 = vmatpush.xpose.msra.mxu0 0.0
        %2091 = vmatpush.xpose.msra.mxu0 0.0
        %2092 = vmatpush.xpose.msra.mxu0 0.0
        %2093 = vmatpush.xpose.msra.mxu0 0.0
        %2094 = vmatpush.xpose.msra.mxu0 %v2080
        %2095 = vmatpush.xpose.msra.mxu0 %v2078
        %2096 = vmatpush.xpose.msra.mxu0 %v2076
        %2097 = vmatpush.xpose.msra.mxu0 %v2074
        %2098 = vmatmul.f32.gmra.mxu0 %v2066
        %v2099 = vpop.f32.mrf.mxu0
        %v2100 = vadd.f32 0.0, %v2099
        %2101 = vmatmul.f32.gmra.mxu0 %v2068
        %v2102 = vpop.f32.mrf.mxu0
        %v2103 = vadd.f32 0.0, %v2102
        %2104 = vmatmul.f32.gmra.mxu0 %v2070
        %v2105 = vpop.f32.mrf.mxu0
        %v2106 = vadd.f32 0.0, %v2105
        %2107 = vmatmul.f32.gmra.mxu0 %v2072
        %v2108 = vpop.f32.mrf.mxu0
        %v2109 = vadd.f32 0.0, %v2108
        %2110 = vdwg.mxu0
        %v2111 = vmul.f32 %v2100, 0.25
        %v2112 = vmul.f32 %v2103, 0.25
        %v2113 = vmul.f32 %v2106, 0.25
        %v2114 = vmul.f32 %v2109, 0.25
        %v2115 = vadd.f32 %v2111, %v1001
        %v2116 = vadd.f32 %v2112, %v1001
        %v2117 = vadd.f32 %v2113, %v1001
        %v2118 = vadd.f32 %v2114, %v1001
        %v2119 = vsel %vm1007, %v2115, -inf
        %2120 = vmax.xlane.f32.xlu0 %v2119
        %v2121 = vpop.xlane.xlu0 %2120
        %v2122 = vsel %vm1007, %v2116, -inf
        %2123 = vmax.xlane.f32.xlu0 %v2122
        %v2124 = vpop.xlane.xlu0 %2123
        %v2125 = vsel %vm1007, %v2117, -inf
        %2126 = vmax.xlane.f32.xlu0 %v2125
        %v2127 = vpop.xlane.xlu0 %2126
        %v2128 = vsel %vm1017, %v2118, -inf
        %2129 = vmax.xlane.f32.xlu0 %v2128
        %v2130 = vpop.xlane.xlu0 %2129
        %v2131 = vsub.f32 %v2115, %v2121
        %v2132 = vsub.f32 %v2116, %v2124
        %v2133 = vsub.f32 %v2117, %v2127
        %v2134 = vsub.f32 %v2118, %v2130
        %v2135 = vmul.f32 %v2131, 1.442695
        %v2136 = vpow.pop %v2135
        %v2137 = vmul.f32 %v2132, 1.442695
        %v2138 = vpow.pop %v2137
        %v2139 = vmul.f32 %v2133, 1.442695
        %v2140 = vpow.pop %v2139
        %v2141 = vmul.f32 %v2134, 1.442695
        %v2142 = vpow.pop %v2141
        %v2143 = vsel %vm1007, %v2136, 0.0
        %2144 = vadd.xlane.f32.xlu0 %v2143
        %v2145 = vpop.xlane.xlu0 %2144
        %v2146 = vsel %vm1007, %v2138, 0.0
        %2147 = vadd.xlane.f32.xlu0 %v2146
        %v2148 = vpop.xlane.xlu0 %2147
        %v2149 = vsel %vm1007, %v2140, 0.0
        %2150 = vadd.xlane.f32.xlu0 %v2149
        %v2151 = vpop.xlane.xlu0 %2150
        %v2152 = vsel %vm1017, %v2142, 0.0
        %2153 = vadd.xlane.f32.xlu0 %v2152
        %v2154 = vpop.xlane.xlu0 %2153
        %v2155 = vrcp.pop %v2145
        %v2156 = vrcp.pop %v2148
        %v2157 = vrcp.pop %v2151
        %v2158 = vrcp.pop %v2154
        %v2159 = vmul.f32 %v2136, %v2155
        %v2160 = vmul.f32 %v2138, %v2156
        %v2161 = vmul.f32 %v2140, %v2157
        %v2162 = vmul.f32 %v2142, %v2158
        %2163 = vrot.lane.b32.xlu0 %v930, 32
        %v2164 = vpop.permute.xlu0 %2163
        %2165 = vrot.lane.b32.xlu0 %v933, 32
        %v2166 = vpop.permute.xlu0 %2165
        %2167 = vrot.lane.b32.xlu0 %v936, 32
        %v2168 = vpop.permute.xlu0 %2167
        %2169 = vrot.lane.b32.xlu0 %v939, 32
        %v2170 = vpop.permute.xlu0 %2169
        %v2175 = vsel %vm1007, %v2159, 0
        %v2178 = vsel %vm1007, %v2160, 0
        %v2181 = vsel %vm1007, %v2161, 0
        %v2184 = vsel %vm1007, %v2162, 0
        %v2186 = vsel %vm710, %v2170, 0
        %2188 = vmatpush.msra.mxu0 0.0
        %2189 = vmatpush.msra.mxu0 0.0
        %2190 = vmatpush.msra.mxu0 0.0
        %2191 = vmatpush.msra.mxu0 0.0
        %2192 = vmatpush.msra.mxu0 0.0
        %2193 = vmatpush.msra.mxu0 0.0
        %2194 = vmatpush.msra.mxu0 0.0
        %2195 = vmatpush.msra.mxu0 0.0
        %2196 = vmatpush.msra.mxu0 0.0
        %2197 = vmatpush.msra.mxu0 0.0
        %2198 = vmatpush.msra.mxu0 0.0
        %2199 = vmatpush.msra.mxu0 0.0
        %2200 = vmatpush.msra.mxu0 %v2186
        %2201 = vmatpush.msra.mxu0 %v2168
        %2202 = vmatpush.msra.mxu0 %v2166
        %2203 = vmatpush.msra.mxu0 %v2164
        %2204 = vmatmul.f32.gmra.mxu0 %v2175
        %v2205 = vpop.f32.mrf.mxu0
        %v2206 = vadd.f32 0.0, %v2205
        %2207 = vmatmul.f32.gmra.mxu0 %v2178
        %v2208 = vpop.f32.mrf.mxu0
        %v2209 = vadd.f32 0.0, %v2208
        %2210 = vmatmul.f32.gmra.mxu0 %v2181
        %v2211 = vpop.f32.mrf.mxu0
        %v2212 = vadd.f32 0.0, %v2211
        %2213 = vmatmul.f32.gmra.mxu0 %v2184
        %v2214 = vpop.f32.mrf.mxu0
        %v2215 = vadd.f32 0.0, %v2214
        %2216 = vdwg.mxu0
        %2221 = vrot.lane.b32.xlu0 %v2206, 96
        %v2222 = vpop.permute.xlu0 %2221
        %2223 = vrot.lane.b32.xlu0 %v2209, 96
        %v2224 = vpop.permute.xlu0 %2223
        %2225 = vrot.lane.b32.xlu0 %v2212, 96
        %v2226 = vpop.permute.xlu0 %2225
        %2227 = vrot.lane.b32.xlu0 %v2215, 96
        %v2228 = vpop.permute.xlu0 %2227
        %vm2233 = vcmask 917248
        %2234 = vst.msk [vmem:[#allocation3] sm:$0xff] %vm2233, %v2222
        %2235 = vst.msk [vmem:[#allocation3 + $0x8] sm:$0xff] %vm2233, %v2224
        %2236 = vst.msk [vmem:[#allocation3 + $0x10] sm:$0xff] %vm2233, %v2226
        %vm2237 = vcmask 910080
        %2238 = vst.msk [vmem:[#allocation3 + $0x18] sm:$0x1] %vm2237, %v2228
        %2239 = vrot.lane.b32.xlu0 %v832, 16
        %v2240 = vpop.permute.xlu0 %2239
        %2241 = vrot.lane.b32.xlu0 %v835, 16
        %v2242 = vpop.permute.xlu0 %2241
        %2243 = vrot.lane.b32.xlu0 %v838, 16
        %v2244 = vpop.permute.xlu0 %2243
        %2245 = vrot.lane.b32.xlu0 %v841, 16
        %v2246 = vpop.permute.xlu0 %2245
        %2247 = vrot.lane.b32.xlu0 %v881, 16
        %v2248 = vpop.permute.xlu0 %2247
        %2249 = vrot.lane.b32.xlu0 %v884, 16
        %v2250 = vpop.permute.xlu0 %2249
        %2251 = vrot.lane.b32.xlu0 %v887, 16
        %v2252 = vpop.permute.xlu0 %2251
        %2253 = vrot.lane.b32.xlu0 %v890, 16
        %v2254 = vpop.permute.xlu0 %2253
        %v2255 = vsel %vm942, %v2240, 0
        %v2257 = vsel %vm942, %v2242, 0
        %v2259 = vsel %vm942, %v2244, 0
        %v2261 = vsel %vm942, %v2246, 0
        %v2263 = vsel %vm942, %v2248, 0
        %v2265 = vsel %vm942, %v2250, 0
        %v2267 = vsel %vm942, %v2252, 0
        %v2269 = vsel %vm942, %v2254, 0
        %2271 = vmatpush.xpose.msra.mxu0 0.0
        %2272 = vmatpush.xpose.msra.mxu0 0.0
        %2273 = vmatpush.xpose.msra.mxu0 0.0
        %2274 = vmatpush.xpose.msra.mxu0 0.0
        %2275 = vmatpush.xpose.msra.mxu0 0.0
        %2276 = vmatpush.xpose.msra.mxu0 0.0
        %2277 = vmatpush.xpose.msra.mxu0 0.0
        %2278 = vmatpush.xpose.msra.mxu0 0.0
        %2279 = vmatpush.xpose.msra.mxu0 0.0
        %2280 = vmatpush.xpose.msra.mxu0 0.0
        %2281 = vmatpush.xpose.msra.mxu0 0.0
        %2282 = vmatpush.xpose.msra.mxu0 0.0
        %2283 = vmatpush.xpose.msra.mxu0 %v2269
        %2284 = vmatpush.xpose.msra.mxu0 %v2267
        %2285 = vmatpush.xpose.msra.mxu0 %v2265
        %2286 = vmatpush.xpose.msra.mxu0 %v2263
        %2287 = vmatmul.f32.gmra.mxu0 %v2255
        %v2288 = vpop.f32.mrf.mxu0
        %v2289 = vadd.f32 0.0, %v2288
        %2290 = vmatmul.f32.gmra.mxu0 %v2257
        %v2291 = vpop.f32.mrf.mxu0
        %v2292 = vadd.f32 0.0, %v2291
        %2293 = vmatmul.f32.gmra.mxu0 %v2259
        %v2294 = vpop.f32.mrf.mxu0
        %v2295 = vadd.f32 0.0, %v2294
        %2296 = vmatmul.f32.gmra.mxu0 %v2261
        %v2297 = vpop.f32.mrf.mxu0
        %v2298 = vadd.f32 0.0, %v2297
        %2299 = vdwg.mxu0
        %v2300 = vmul.f32 %v2289, 0.25
        %v2301 = vmul.f32 %v2292, 0.25
        %v2302 = vmul.f32 %v2295, 0.25
        %v2303 = vmul.f32 %v2298, 0.25
        %v2304 = vadd.f32 %v2300, %v1001
        %v2305 = vadd.f32 %v2301, %v1001
        %v2306 = vadd.f32 %v2302, %v1001
        %v2307 = vadd.f32 %v2303, %v1001
        %v2308 = vsel %vm1007, %v2304, -inf
        %2309 = vmax.xlane.f32.xlu0 %v2308
        %v2310 = vpop.xlane.xlu0 %2309
        %v2311 = vsel %vm1007, %v2305, -inf
        %2312 = vmax.xlane.f32.xlu0 %v2311
        %v2313 = vpop.xlane.xlu0 %2312
        %v2314 = vsel %vm1007, %v2306, -inf
        %2315 = vmax.xlane.f32.xlu0 %v2314
        %v2316 = vpop.xlane.xlu0 %2315
        %v2317 = vsel %vm1017, %v2307, -inf
        %2318 = vmax.xlane.f32.xlu0 %v2317
        %v2319 = vpop.xlane.xlu0 %2318
        %v2320 = vsub.f32 %v2304, %v2310
        %v2321 = vsub.f32 %v2305, %v2313
        %v2322 = vsub.f32 %v2306, %v2316
        %v2323 = vsub.f32 %v2307, %v2319
        %v2324 = vmul.f32 %v2320, 1.442695
        %v2325 = vpow.pop %v2324
        %v2326 = vmul.f32 %v2321, 1.442695
        %v2327 = vpow.pop %v2326
        %v2328 = vmul.f32 %v2322, 1.442695
        %v2329 = vpow.pop %v2328
        %v2330 = vmul.f32 %v2323, 1.442695
        %v2331 = vpow.pop %v2330
        %v2332 = vsel %vm1007, %v2325, 0.0
        %2333 = vadd.xlane.f32.xlu0 %v2332
        %v2334 = vpop.xlane.xlu0 %2333
        %v2335 = vsel %vm1007, %v2327, 0.0
        %2336 = vadd.xlane.f32.xlu0 %v2335
        %v2337 = vpop.xlane.xlu0 %2336
        %v2338 = vsel %vm1007, %v2329, 0.0
        %2339 = vadd.xlane.f32.xlu0 %v2338
        %v2340 = vpop.xlane.xlu0 %2339
        %v2341 = vsel %vm1017, %v2331, 0.0
        %2342 = vadd.xlane.f32.xlu0 %v2341
        %v2343 = vpop.xlane.xlu0 %2342
        %v2344 = vrcp.pop %v2334
        %v2345 = vrcp.pop %v2337
        %v2346 = vrcp.pop %v2340
        %v2347 = vrcp.pop %v2343
        %v2348 = vmul.f32 %v2325, %v2344
        %v2349 = vmul.f32 %v2327, %v2345
        %v2350 = vmul.f32 %v2329, %v2346
        %v2351 = vmul.f32 %v2331, %v2347
        %2352 = vrot.lane.b32.xlu0 %v930, 16
        %v2353 = vpop.permute.xlu0 %2352
        %2354 = vrot.lane.b32.xlu0 %v933, 16
        %v2355 = vpop.permute.xlu0 %2354
        %2356 = vrot.lane.b32.xlu0 %v936, 16
        %v2357 = vpop.permute.xlu0 %2356
        %2358 = vrot.lane.b32.xlu0 %v939, 16
        %v2359 = vpop.permute.xlu0 %2358
        %v2364 = vsel %vm1007, %v2348, 0
        %v2367 = vsel %vm1007, %v2349, 0
        %v2370 = vsel %vm1007, %v2350, 0
        %v2373 = vsel %vm1007, %v2351, 0
        %v2375 = vsel %vm710, %v2359, 0
        %2377 = vmatpush.msra.mxu0 0.0
        %2378 = vmatpush.msra.mxu0 0.0
        %2379 = vmatpush.msra.mxu0 0.0
        %2380 = vmatpush.msra.mxu0 0.0
        %2381 = vmatpush.msra.mxu0 0.0
        %2382 = vmatpush.msra.mxu0 0.0
        %2383 = vmatpush.msra.mxu0 0.0
        %2384 = vmatpush.msra.mxu0 0.0
        %2385 = vmatpush.msra.mxu0 0.0
        %2386 = vmatpush.msra.mxu0 0.0
        %2387 = vmatpush.msra.mxu0 0.0
        %2388 = vmatpush.msra.mxu0 0.0
        %2389 = vmatpush.msra.mxu0 %v2375
        %2390 = vmatpush.msra.mxu0 %v2357
        %2391 = vmatpush.msra.mxu0 %v2355
        %2392 = vmatpush.msra.mxu0 %v2353
        %2393 = vmatmul.f32.gmra.mxu0 %v2364
        %v2394 = vpop.f32.mrf.mxu0
        %v2395 = vadd.f32 0.0, %v2394
        %2396 = vmatmul.f32.gmra.mxu0 %v2367
        %v2397 = vpop.f32.mrf.mxu0
        %v2398 = vadd.f32 0.0, %v2397
        %2399 = vmatmul.f32.gmra.mxu0 %v2370
        %v2400 = vpop.f32.mrf.mxu0
        %v2401 = vadd.f32 0.0, %v2400
        %2402 = vmatmul.f32.gmra.mxu0 %v2373
        %v2403 = vpop.f32.mrf.mxu0
        %v2404 = vadd.f32 0.0, %v2403
        %2405 = vdwg.mxu0
        %2410 = vrot.lane.b32.xlu0 %v2395, 112
        %v2411 = vpop.permute.xlu0 %2410
        %2412 = vrot.lane.b32.xlu0 %v2398, 112
        %v2413 = vpop.permute.xlu0 %2412
        %2414 = vrot.lane.b32.xlu0 %v2401, 112
        %v2415 = vpop.permute.xlu0 %2414
        %2416 = vrot.lane.b32.xlu0 %v2404, 112
        %v2417 = vpop.permute.xlu0 %2416
        %vm2422 = vcmask 1048448
        %2423 = vst.msk [vmem:[#allocation3] sm:$0xff] %vm2422, %v2411
        %2424 = vst.msk [vmem:[#allocation3 + $0x8] sm:$0xff] %vm2422, %v2413
        %2425 = vst.msk [vmem:[#allocation3 + $0x10] sm:$0xff] %vm2422, %v2415
        %vm2426 = vcmask 1041280
        %2427 = vst.msk [vmem:[#allocation3 + $0x18] sm:$0x1] %vm2426, %v2417
        %v2428 = vld [vmem:[#allocation3] sm:$0xff]
        %v2429 = vld [vmem:[#allocation3 + $0x8] sm:$0xff]
        %v2430 = vld [vmem:[#allocation3 + $0x10] sm:$0xff]
        %v2431 = vld [vmem:[#allocation3 + $0x18] sm:$0x1]
        %v2432 = vld [vmem:[%s15] sm:$0x1]
        %v2434 = vperm.slane %v2432, 0
        %2436 = vmatpush.msra.mxu0 %v689
        %2437 = vmatpush.msra.mxu0 %v688
        %2438 = vmatpush.msra.mxu0 %v687
        %2439 = vmatpush.msra.mxu0 %v686
        %2440 = vmatpush.msra.mxu0 %v685
        %2441 = vmatpush.msra.mxu0 %v684
        %2442 = vmatpush.msra.mxu0 %v683
        %2443 = vmatpush.msra.mxu0 %v682
        %2444 = vmatpush.msra.mxu0 %v681
        %2445 = vmatpush.msra.mxu0 %v680
        %2446 = vmatpush.msra.mxu0 %v679
        %2447 = vmatpush.msra.mxu0 %v678
        %2448 = vmatpush.msra.mxu0 %v677
        %2449 = vmatpush.msra.mxu0 %v676
        %2450 = vmatpush.msra.mxu0 %v675
        %2451 = vmatpush.msra.mxu0 %v674
        %2452 = vmatmul.f32.gmra.mxu0 %v2428
        %v2453 = vpop.f32.mrf.mxu0
        %v2454 = vadd.f32 %v2434, %v2453
        %2455 = vmatmul.f32.gmra.mxu0 %v2429
        %v2456 = vpop.f32.mrf.mxu0
        %v2457 = vadd.f32 %v2434, %v2456
        %2458 = vmatmul.f32.gmra.mxu0 %v2430
        %v2459 = vpop.f32.mrf.mxu0
        %v2460 = vadd.f32 %v2434, %v2459
        %2461 = vmatmul.f32.gmra.mxu0 %v2431
        %v2462 = vpop.f32.mrf.mxu0
        %v2463 = vadd.f32 %v2434, %v2462
        %2464 = vdwg.mxu0
        %v2465 = vadd.f32 %v700, %v2454
        %v2466 = vadd.f32 %v701, %v2457
        %v2467 = vadd.f32 %v702, %v2460
        %v2468 = vadd.f32 %v703, %v2463
        %2469 = vst [vmem:[%s597] sm:$0xff] %v2465
        %2470 = vst [vmem:[%s597 + $0x8] sm:$0xff] %v2466
        %2471 = vst [vmem:[%s597 + $0x10] sm:$0xff] %v2467
        %2472 = vst [vmem:[%s597 + $0x18] sm:$0x1] %v2468
        %s2473 = scalar_lea.vmem %s585, 32
        %v2474 = vld [vmem:[%s2473] sm:$0xff]
        %v2475 = vld [vmem:[%s2473 + $0x8] sm:$0xff]
        %v2476 = vld [vmem:[%s2473 + $0x10] sm:$0xff]
        %v2477 = vld [vmem:[%s2473 + $0x18] sm:$0x1]
        %2478 = vst.msk [vmem:[#allocation2] sm:$0xff] %vm694, %v2474
        %2479 = vst.msk [vmem:[#allocation2 + $0x8] sm:$0xff] %vm694, %v2475
        %2480 = vst.msk [vmem:[#allocation2 + $0x10] sm:$0xff] %vm694, %v2476
        %2481 = vst.msk [vmem:[#allocation2 + $0x18] sm:$0x1] %vm698, %v2477
        %v2482 = vld [vmem:[#allocation2] sm:$0xff]
        %v2483 = vld [vmem:[#allocation2 + $0x8] sm:$0xff]
        %v2484 = vld [vmem:[#allocation2 + $0x10] sm:$0xff]
        %v2485 = vld [vmem:[#allocation2 + $0x18] sm:$0x1]
        %2486 = vadd.xlane.f32.xlu0 %v2482
        %v2487 = vpop.xlane.xlu0 %2486
        %2488 = vadd.xlane.f32.xlu0 %v2483
        %v2489 = vpop.xlane.xlu0 %2488
        %2490 = vadd.xlane.f32.xlu0 %v2484
        %v2491 = vpop.xlane.xlu0 %2490
        %v2492 = vsel %vm710, %v2485, 0.0
        %2493 = vadd.xlane.f32.xlu0 %v2492
        %v2494 = vpop.xlane.xlu0 %2493
        %v2495 = vmul.f32 %v2487, %v720
        %v2496 = vmul.f32 %v2489, %v720
        %v2497 = vmul.f32 %v2491, %v720
        %v2498 = vmul.f32 %v2494, %v720
        %v2499 = vsub.f32 %v2482, %v2495
        %v2500 = vsub.f32 %v2483, %v2496
        %v2501 = vsub.f32 %v2484, %v2497
        %v2502 = vsub.f32 %v2485, %v2498
        %v2503 = vmul.f32 %v2499, %v2499
        %v2504 = vmul.f32 %v2500, %v2500
        %v2505 = vmul.f32 %v2501, %v2501
        %v2506 = vmul.f32 %v2502, %v2502
        %2507 = vadd.xlane.f32.xlu0 %v2503
        %v2508 = vpop.xlane.xlu0 %2507
        %2509 = vadd.xlane.f32.xlu0 %v2504
        %v2510 = vpop.xlane.xlu0 %2509
        %2511 = vadd.xlane.f32.xlu0 %v2505
        %v2512 = vpop.xlane.xlu0 %2511
        %v2513 = vsel %vm710, %v2506, 0.0
        %2514 = vadd.xlane.f32.xlu0 %v2513
        %v2515 = vpop.xlane.xlu0 %2514
        %v2516 = vmul.f32 %v2508, %v720
        %v2517 = vmul.f32 %v2510, %v720
        %v2518 = vmul.f32 %v2512, %v720
        %v2519 = vmul.f32 %v2515, %v720
        %v2520 = vadd.f32 %v2516, 1e-05
        %v2521 = vadd.f32 %v2517, 1e-05
        %v2522 = vadd.f32 %v2518, 1e-05
        %v2523 = vadd.f32 %v2519, 1e-05
        %v2524 = vrsqrt.pop %v2520
        %v2525 = vmul.f32 %v2524, %v2520
        %v2526 = vmul.f32 %v2525, %v2524
        %v2527 = vmul.f32 0.5, %v2526
        %v2528 = vsub.f32 1.5, %v2527
        %v2529 = vmul.f32 %v2524, %v2528
        %vm2530 = vweird.f32 %v2520
        %vm2531 = vweird.f32 %v2524
        %vm2532 = vmor %vm2530, %vm2531
        %v2533 = vsel %vm2532, %v2524, %v2529
        %v2534 = vrsqrt.pop %v2521
        %v2535 = vmul.f32 %v2534, %v2521
        %v2536 = vmul.f32 %v2535, %v2534
        %v2537 = vmul.f32 0.5, %v2536
        %v2538 = vsub.f32 1.5, %v2537
        %v2539 = vmul.f32 %v2534, %v2538
        %vm2540 = vweird.f32 %v2521
        %vm2541 = vweird.f32 %v2534
        %vm2542 = vmor %vm2540, %vm2541
        %v2543 = vsel %vm2542, %v2534, %v2539
        %v2544 = vrsqrt.pop %v2522
        %v2545 = vmul.f32 %v2544, %v2522
        %v2546 = vmul.f32 %v2545, %v2544
        %v2547 = vmul.f32 0.5, %v2546
        %v2548 = vsub.f32 1.5, %v2547
        %v2549 = vmul.f32 %v2544, %v2548
        %vm2550 = vweird.f32 %v2522
        %vm2551 = vweird.f32 %v2544
        %vm2552 = vmor %vm2550, %vm2551
        %v2553 = vsel %vm2552, %v2544, %v2549
        %v2554 = vrsqrt.pop %v2523
        %v2555 = vmul.f32 %v2554, %v2523
        %v2556 = vmul.f32 %v2555, %v2554
        %v2557 = vmul.f32 0.5, %v2556
        %v2558 = vsub.f32 1.5, %v2557
        %v2559 = vmul.f32 %v2554, %v2558
        %vm2560 = vweird.f32 %v2523
        %vm2561 = vweird.f32 %v2554
        %vm2562 = vmor %vm2560, %vm2561
        %v2563 = vsel %vm2562, %v2554, %v2559
        %v2564 = vmul.f32 %v2499, %v2533
        %v2565 = vmul.f32 %v2500, %v2543
        %v2566 = vmul.f32 %v2501, %v2553
        %v2567 = vmul.f32 %v2502, %v2563
        %v2568 = vld [vmem:[%s4] sm:$0x1]
        %v2570 = vperm.slane %v2568, 0
        %v2572 = vmul.f32 %v2564, %v2570
        %v2573 = vmul.f32 %v2565, %v2570
        %v2574 = vmul.f32 %v2566, %v2570
        %v2575 = vmul.f32 %v2567, %v2570
        %v2576 = vld [vmem:[%s5] sm:$0x1]
        %v2578 = vperm.slane %v2576, 0
        %v2580 = vadd.f32 %v2572, %v2578
        %v2581 = vadd.f32 %v2573, %v2578
        %v2582 = vadd.f32 %v2574, %v2578
        %v2583 = vadd.f32 %v2575, %v2578
        %v2584 = vld [vmem:[%s11] sm:$0x1]
        %v2586 = vperm.slane %v2584, 0
        %2588 = vmatpush.msra.mxu0 %v641
        %2589 = vmatpush.msra.mxu0 %v640
        %2590 = vmatpush.msra.mxu0 %v639
        %2591 = vmatpush.msra.mxu0 %v638
        %2592 = vmatpush.msra.mxu0 %v637
        %2593 = vmatpush.msra.mxu0 %v636
        %2594 = vmatpush.msra.mxu0 %v635
        %2595 = vmatpush.msra.mxu0 %v634
        %2596 = vmatpush.msra.mxu0 %v633
        %2597 = vmatpush.msra.mxu0 %v632
        %2598 = vmatpush.msra.mxu0 %v631
        %2599 = vmatpush.msra.mxu0 %v630
        %2600 = vmatpush.msra.mxu0 %v629
        %2601 = vmatpush.msra.mxu0 %v628
        %2602 = vmatpush.msra.mxu0 %v627
        %2603 = vmatpush.msra.mxu0 %v626
        %2604 = vmatmul.f32.gmra.mxu0 %v2580
        %v2605 = vpop.f32.mrf.mxu0
        %v2606 = vadd.f32 %v2586, %v2605
        %2607 = vmatmul.f32.gmra.mxu0 %v2581
        %v2608 = vpop.f32.mrf.mxu0
        %v2609 = vadd.f32 %v2586, %v2608
        %2610 = vmatmul.f32.gmra.mxu0 %v2582
        %v2611 = vpop.f32.mrf.mxu0
        %v2612 = vadd.f32 %v2586, %v2611
        %2613 = vmatmul.f32.gmra.mxu0 %v2583
        %v2614 = vpop.f32.mrf.mxu0
        %v2615 = vadd.f32 %v2586, %v2614
        %2616 = vdwg.mxu0
        %v2617 = vld [vmem:[%s2] sm:$0x1]
        %v2619 = vperm.slane %v2617, 0
        %v2621 = vmul.f32 %v2564, %v2619
        %v2622 = vmul.f32 %v2565, %v2619
        %v2623 = vmul.f32 %v2566, %v2619
        %v2624 = vmul.f32 %v2567, %v2619
        %v2625 = vld [vmem:[%s3] sm:$0x1]
        %v2627 = vperm.slane %v2625, 0
        %v2629 = vadd.f32 %v2621, %v2627
        %v2630 = vadd.f32 %v2622, %v2627
        %v2631 = vadd.f32 %v2623, %v2627
        %v2632 = vadd.f32 %v2624, %v2627
        %v2633 = vld [vmem:[%s12] sm:$0x1]
        %v2635 = vperm.slane %v2633, 0
        %2637 = vmatpush.msra.mxu0 %v657
        %2638 = vmatpush.msra.mxu0 %v656
        %2639 = vmatpush.msra.mxu0 %v655
        %2640 = vmatpush.msra.mxu0 %v654
        %2641 = vmatpush.msra.mxu0 %v653
        %2642 = vmatpush.msra.mxu0 %v652
        %2643 = vmatpush.msra.mxu0 %v651
        %2644 = vmatpush.msra.mxu0 %v650
        %2645 = vmatpush.msra.mxu0 %v649
        %2646 = vmatpush.msra.mxu0 %v648
        %2647 = vmatpush.msra.mxu0 %v647
        %2648 = vmatpush.msra.mxu0 %v646
        %2649 = vmatpush.msra.mxu0 %v645
        %2650 = vmatpush.msra.mxu0 %v644
        %2651 = vmatpush.msra.mxu0 %v643
        %2652 = vmatpush.msra.mxu0 %v642
        %2653 = vmatmul.f32.gmra.mxu0 %v2629
        %v2654 = vpop.f32.mrf.mxu0
        %v2655 = vadd.f32 %v2635, %v2654
        %2656 = vmatmul.f32.gmra.mxu0 %v2630
        %v2657 = vpop.f32.mrf.mxu0
        %v2658 = vadd.f32 %v2635, %v2657
        %2659 = vmatmul.f32.gmra.mxu0 %v2631
        %v2660 = vpop.f32.mrf.mxu0
        %v2661 = vadd.f32 %v2635, %v2660
        %2662 = vmatmul.f32.gmra.mxu0 %v2632
        %v2663 = vpop.f32.mrf.mxu0
        %v2664 = vadd.f32 %v2635, %v2663
        %2665 = vdwg.mxu0
        %v2666 = vld [vmem:[%s6] sm:$0x1]
        %v2668 = vperm.slane %v2666, 0
        %v2670 = vmul.f32 %v2564, %v2668
        %v2671 = vmul.f32 %v2565, %v2668
        %v2672 = vmul.f32 %v2566, %v2668
        %v2673 = vmul.f32 %v2567, %v2668
        %v2674 = vld [vmem:[%s7] sm:$0x1]
        %v2676 = vperm.slane %v2674, 0
        %v2678 = vadd.f32 %v2670, %v2676
        %v2679 = vadd.f32 %v2671, %v2676
        %v2680 = vadd.f32 %v2672, %v2676
        %v2681 = vadd.f32 %v2673, %v2676
        %v2682 = vld [vmem:[%s13] sm:$0x1]
        %v2684 = vperm.slane %v2682, 0
        %2686 = vmatpush.msra.mxu0 %v673
        %2687 = vmatpush.msra.mxu0 %v672
        %2688 = vmatpush.msra.mxu0 %v671
        %2689 = vmatpush.msra.mxu0 %v670
        %2690 = vmatpush.msra.mxu0 %v669
        %2691 = vmatpush.msra.mxu0 %v668
        %2692 = vmatpush.msra.mxu0 %v667
        %2693 = vmatpush.msra.mxu0 %v666
        %2694 = vmatpush.msra.mxu0 %v665
        %2695 = vmatpush.msra.mxu0 %v664
        %2696 = vmatpush.msra.mxu0 %v663
        %2697 = vmatpush.msra.mxu0 %v662
        %2698 = vmatpush.msra.mxu0 %v661
        %2699 = vmatpush.msra.mxu0 %v660
        %2700 = vmatpush.msra.mxu0 %v659
        %2701 = vmatpush.msra.mxu0 %v658
        %2702 = vmatmul.f32.gmra.mxu0 %v2678
        %v2703 = vpop.f32.mrf.mxu0
        %v2704 = vadd.f32 %v2684, %v2703
        %2705 = vmatmul.f32.gmra.mxu0 %v2679
        %v2706 = vpop.f32.mrf.mxu0
        %v2707 = vadd.f32 %v2684, %v2706
        %2708 = vmatmul.f32.gmra.mxu0 %v2680
        %v2709 = vpop.f32.mrf.mxu0
        %v2710 = vadd.f32 %v2684, %v2709
        %2711 = vmatmul.f32.gmra.mxu0 %v2681
        %v2712 = vpop.f32.mrf.mxu0
        %v2713 = vadd.f32 %v2684, %v2712
        %2714 = vdwg.mxu0
        %s2715 = scalar_lea.vmem %s590, 1
        %v2716 = vld [vmem:[%s2715] sm:$0x1]
        %v2718 = vsel %vm942, %v2606, 0
        %v2721 = vsel %vm942, %v2609, 0
        %v2724 = vsel %vm942, %v2612, 0
        %v2727 = vsel %vm942, %v2615, 0
        %v2730 = vsel %vm942, %v2655, 0
        %v2733 = vsel %vm942, %v2658, 0
        %v2736 = vsel %vm942, %v2661, 0
        %v2739 = vsel %vm942, %v2664, 0
        %2741 = vmatpush.xpose.msra.mxu0 0.0
        %2742 = vmatpush.xpose.msra.mxu0 0.0
        %2743 = vmatpush.xpose.msra.mxu0 0.0
        %2744 = vmatpush.xpose.msra.mxu0 0.0
        %2745 = vmatpush.xpose.msra.mxu0 0.0
        %2746 = vmatpush.xpose.msra.mxu0 0.0
        %2747 = vmatpush.xpose.msra.mxu0 0.0
        %2748 = vmatpush.xpose.msra.mxu0 0.0
        %2749 = vmatpush.xpose.msra.mxu0 0.0
        %2750 = vmatpush.xpose.msra.mxu0 0.0
        %2751 = vmatpush.xpose.msra.mxu0 0.0
        %2752 = vmatpush.xpose.msra.mxu0 0.0
        %2753 = vmatpush.xpose.msra.mxu0 %v2739
        %2754 = vmatpush.xpose.msra.mxu0 %v2736
        %2755 = vmatpush.xpose.msra.mxu0 %v2733
        %2756 = vmatpush.xpose.msra.mxu0 %v2730
        %2757 = vmatmul.f32.gmra.mxu0 %v2718
        %v2758 = vpop.f32.mrf.mxu0
        %v2759 = vadd.f32 0.0, %v2758
        %2760 = vmatmul.f32.gmra.mxu0 %v2721
        %v2761 = vpop.f32.mrf.mxu0
        %v2762 = vadd.f32 0.0, %v2761
        %2763 = vmatmul.f32.gmra.mxu0 %v2724
        %v2764 = vpop.f32.mrf.mxu0
        %v2765 = vadd.f32 0.0, %v2764
        %2766 = vmatmul.f32.gmra.mxu0 %v2727
        %v2767 = vpop.f32.mrf.mxu0
        %v2768 = vadd.f32 0.0, %v2767
        %2769 = vdwg.mxu0
        %v2770 = vmul.f32 %v2759, 0.25
        %v2771 = vmul.f32 %v2762, 0.25
        %v2772 = vmul.f32 %v2765, 0.25
        %v2773 = vmul.f32 %v2768, 0.25
        %v2775 = vperm.slane %v2716, 0
        %v2777 = vadd.f32 %v2770, %v2775
        %v2778 = vadd.f32 %v2771, %v2775
        %v2779 = vadd.f32 %v2772, %v2775
        %v2780 = vadd.f32 %v2773, %v2775
        %v2781 = vsel %vm1007, %v2777, -inf
        %2782 = vmax.xlane.f32.xlu0 %v2781
        %v2783 = vpop.xlane.xlu0 %2782
        %v2784 = vsel %vm1007, %v2778, -inf
        %2785 = vmax.xlane.f32.xlu0 %v2784
        %v2786 = vpop.xlane.xlu0 %2785
        %v2787 = vsel %vm1007, %v2779, -inf
        %2788 = vmax.xlane.f32.xlu0 %v2787
        %v2789 = vpop.xlane.xlu0 %2788
        %v2790 = vsel %vm1017, %v2780, -inf
        %2791 = vmax.xlane.f32.xlu0 %v2790
        %v2792 = vpop.xlane.xlu0 %2791
        %v2793 = vsub.f32 %v2777, %v2783
        %v2794 = vsub.f32 %v2778, %v2786
        %v2795 = vsub.f32 %v2779, %v2789
        %v2796 = vsub.f32 %v2780, %v2792
        %v2797 = vmul.f32 %v2793, 1.442695
        %v2798 = vpow.pop %v2797
        %v2799 = vmul.f32 %v2794, 1.442695
        %v2800 = vpow.pop %v2799
        %v2801 = vmul.f32 %v2795, 1.442695
        %v2802 = vpow.pop %v2801
        %v2803 = vmul.f32 %v2796, 1.442695
        %v2804 = vpow.pop %v2803
        %v2805 = vsel %vm1007, %v2798, 0.0
        %2806 = vadd.xlane.f32.xlu0 %v2805
        %v2807 = vpop.xlane.xlu0 %2806
        %v2808 = vsel %vm1007, %v2800, 0.0
        %2809 = vadd.xlane.f32.xlu0 %v2808
        %v2810 = vpop.xlane.xlu0 %2809
        %v2811 = vsel %vm1007, %v2802, 0.0
        %2812 = vadd.xlane.f32.xlu0 %v2811
        %v2813 = vpop.xlane.xlu0 %2812
        %v2814 = vsel %vm1017, %v2804, 0.0
        %2815 = vadd.xlane.f32.xlu0 %v2814
        %v2816 = vpop.xlane.xlu0 %2815
        %v2817 = vrcp.pop %v2807
        %v2818 = vrcp.pop %v2810
        %v2819 = vrcp.pop %v2813
        %v2820 = vrcp.pop %v2816
        %v2821 = vmul.f32 %v2798, %v2817
        %v2822 = vmul.f32 %v2800, %v2818
        %v2823 = vmul.f32 %v2802, %v2819
        %v2824 = vmul.f32 %v2804, %v2820
        %v2826 = vsel %vm1007, %v2821, 0
        %v2829 = vsel %vm1007, %v2822, 0
        %v2832 = vsel %vm1007, %v2823, 0
        %v2835 = vsel %vm1007, %v2824, 0
        %v2838 = vsel %vm710, %v2713, 0
        %2840 = vmatpush.msra.mxu0 0.0
        %2841 = vmatpush.msra.mxu0 0.0
        %2842 = vmatpush.msra.mxu0 0.0
        %2843 = vmatpush.msra.mxu0 0.0
        %2844 = vmatpush.msra.mxu0 0.0
        %2845 = vmatpush.msra.mxu0 0.0
        %2846 = vmatpush.msra.mxu0 0.0
        %2847 = vmatpush.msra.mxu0 0.0
        %2848 = vmatpush.msra.mxu0 0.0
        %2849 = vmatpush.msra.mxu0 0.0
        %2850 = vmatpush.msra.mxu0 0.0
        %2851 = vmatpush.msra.mxu0 0.0
        %2852 = vmatpush.msra.mxu0 %v2838
        %2853 = vmatpush.msra.mxu0 %v2710
        %2854 = vmatpush.msra.mxu0 %v2707
        %2855 = vmatpush.msra.mxu0 %v2704
        %2856 = vmatmul.f32.gmra.mxu0 %v2826
        %v2857 = vpop.f32.mrf.mxu0
        %v2858 = vadd.f32 0.0, %v2857
        %2859 = vmatmul.f32.gmra.mxu0 %v2829
        %v2860 = vpop.f32.mrf.mxu0
        %v2861 = vadd.f32 0.0, %v2860
        %2862 = vmatmul.f32.gmra.mxu0 %v2832
        %v2863 = vpop.f32.mrf.mxu0
        %v2864 = vadd.f32 0.0, %v2863
        %2865 = vmatmul.f32.gmra.mxu0 %v2835
        %v2866 = vpop.f32.mrf.mxu0
        %v2867 = vadd.f32 0.0, %v2866
        %2868 = vdwg.mxu0
        %2869 = vst.msk [vmem:[#allocation3] sm:$0xff] %vm942, %v2858
        %2870 = vst.msk [vmem:[#allocation3 + $0x8] sm:$0xff] %vm942, %v2861
        %2871 = vst.msk [vmem:[#allocation3 + $0x10] sm:$0xff] %vm942, %v2864
        %2872 = vst.msk [vmem:[#allocation3 + $0x18] sm:$0x1] %vm1100, %v2867
        %2873 = vrot.lane.b32.xlu0 %v2606, 112
        %v2874 = vpop.permute.xlu0 %2873
        %2875 = vrot.lane.b32.xlu0 %v2609, 112
        %v2876 = vpop.permute.xlu0 %2875
        %2877 = vrot.lane.b32.xlu0 %v2612, 112
        %v2878 = vpop.permute.xlu0 %2877
        %2879 = vrot.lane.b32.xlu0 %v2615, 112
        %v2880 = vpop.permute.xlu0 %2879
        %2881 = vrot.lane.b32.xlu0 %v2655, 112
        %v2882 = vpop.permute.xlu0 %2881
        %2883 = vrot.lane.b32.xlu0 %v2658, 112
        %v2884 = vpop.permute.xlu0 %2883
        %2885 = vrot.lane.b32.xlu0 %v2661, 112
        %v2886 = vpop.permute.xlu0 %2885
        %2887 = vrot.lane.b32.xlu0 %v2664, 112
        %v2888 = vpop.permute.xlu0 %2887
        %v2889 = vsel %vm942, %v2874, 0
        %v2891 = vsel %vm942, %v2876, 0
        %v2893 = vsel %vm942, %v2878, 0
        %v2895 = vsel %vm942, %v2880, 0
        %v2897 = vsel %vm942, %v2882, 0
        %v2899 = vsel %vm942, %v2884, 0
        %v2901 = vsel %vm942, %v2886, 0
        %v2903 = vsel %vm942, %v2888, 0
        %2905 = vmatpush.xpose.msra.mxu0 0.0
        %2906 = vmatpush.xpose.msra.mxu0 0.0
        %2907 = vmatpush.xpose.msra.mxu0 0.0
        %2908 = vmatpush.xpose.msra.mxu0 0.0
        %2909 = vmatpush.xpose.msra.mxu0 0.0
        %2910 = vmatpush.xpose.msra.mxu0 0.0
        %2911 = vmatpush.xpose.msra.mxu0 0.0
        %2912 = vmatpush.xpose.msra.mxu0 0.0
        %2913 = vmatpush.xpose.msra.mxu0 0.0
        %2914 = vmatpush.xpose.msra.mxu0 0.0
        %2915 = vmatpush.xpose.msra.mxu0 0.0
        %2916 = vmatpush.xpose.msra.mxu0 0.0
        %2917 = vmatpush.xpose.msra.mxu0 %v2903
        %2918 = vmatpush.xpose.msra.mxu0 %v2901
        %2919 = vmatpush.xpose.msra.mxu0 %v2899
        %2920 = vmatpush.xpose.msra.mxu0 %v2897
        %2921 = vmatmul.f32.gmra.mxu0 %v2889
        %v2922 = vpop.f32.mrf.mxu0
        %v2923 = vadd.f32 0.0, %v2922
        %2924 = vmatmul.f32.gmra.mxu0 %v2891
        %v2925 = vpop.f32.mrf.mxu0
        %v2926 = vadd.f32 0.0, %v2925
        %2927 = vmatmul.f32.gmra.mxu0 %v2893
        %v2928 = vpop.f32.mrf.mxu0
        %v2929 = vadd.f32 0.0, %v2928
        %2930 = vmatmul.f32.gmra.mxu0 %v2895
        %v2931 = vpop.f32.mrf.mxu0
        %v2932 = vadd.f32 0.0, %v2931
        %2933 = vdwg.mxu0
        %v2934 = vmul.f32 %v2923, 0.25
        %v2935 = vmul.f32 %v2926, 0.25
        %v2936 = vmul.f32 %v2929, 0.25
        %v2937 = vmul.f32 %v2932, 0.25
        %v2938 = vadd.f32 %v2934, %v2775
        %v2939 = vadd.f32 %v2935, %v2775
        %v2940 = vadd.f32 %v2936, %v2775
        %v2941 = vadd.f32 %v2937, %v2775
        %v2942 = vsel %vm1007, %v2938, -inf
        %2943 = vmax.xlane.f32.xlu0 %v2942
        %v2944 = vpop.xlane.xlu0 %2943
        %v2945 = vsel %vm1007, %v2939, -inf
        %2946 = vmax.xlane.f32.xlu0 %v2945
        %v2947 = vpop.xlane.xlu0 %2946
        %v2948 = vsel %vm1007, %v2940, -inf
        %2949 = vmax.xlane.f32.xlu0 %v2948
        %v2950 = vpop.xlane.xlu0 %2949
        %v2951 = vsel %vm1017, %v2941, -inf
        %2952 = vmax.xlane.f32.xlu0 %v2951
        %v2953 = vpop.xlane.xlu0 %2952
        %v2954 = vsub.f32 %v2938, %v2944
        %v2955 = vsub.f32 %v2939, %v2947
        %v2956 = vsub.f32 %v2940, %v2950
        %v2957 = vsub.f32 %v2941, %v2953
        %v2958 = vmul.f32 %v2954, 1.442695
        %v2959 = vpow.pop %v2958
        %v2960 = vmul.f32 %v2955, 1.442695
        %v2961 = vpow.pop %v2960
        %v2962 = vmul.f32 %v2956, 1.442695
        %v2963 = vpow.pop %v2962
        %v2964 = vmul.f32 %v2957, 1.442695
        %v2965 = vpow.pop %v2964
        %v2966 = vsel %vm1007, %v2959, 0.0
        %2967 = vadd.xlane.f32.xlu0 %v2966
        %v2968 = vpop.xlane.xlu0 %2967
        %v2969 = vsel %vm1007, %v2961, 0.0
        %2970 = vadd.xlane.f32.xlu0 %v2969
        %v2971 = vpop.xlane.xlu0 %2970
        %v2972 = vsel %vm1007, %v2963, 0.0
        %2973 = vadd.xlane.f32.xlu0 %v2972
        %v2974 = vpop.xlane.xlu0 %2973
        %v2975 = vsel %vm1017, %v2965, 0.0
        %2976 = vadd.xlane.f32.xlu0 %v2975
        %v2977 = vpop.xlane.xlu0 %2976
        %v2978 = vrcp.pop %v2968
        %v2979 = vrcp.pop %v2971
        %v2980 = vrcp.pop %v2974
        %v2981 = vrcp.pop %v2977
        %v2982 = vmul.f32 %v2959, %v2978
        %v2983 = vmul.f32 %v2961, %v2979
        %v2984 = vmul.f32 %v2963, %v2980
        %v2985 = vmul.f32 %v2965, %v2981
        %2989 = vrot.lane.b32.xlu0 %v2704, 112
        %v2990 = vpop.permute.xlu0 %2989
        %2991 = vrot.lane.b32.xlu0 %v2707, 112
        %v2992 = vpop.permute.xlu0 %2991
        %2993 = vrot.lane.b32.xlu0 %v2710, 112
        %v2994 = vpop.permute.xlu0 %2993
        %2995 = vrot.lane.b32.xlu0 %v2713, 112
        %v2996 = vpop.permute.xlu0 %2995
        %v3001 = vsel %vm1007, %v2982, 0
        %v3004 = vsel %vm1007, %v2983, 0
        %v3007 = vsel %vm1007, %v2984, 0
        %v3010 = vsel %vm1007, %v2985, 0
        %v3012 = vsel %vm710, %v2996, 0
        %3014 = vmatpush.msra.mxu0 0.0
        %3015 = vmatpush.msra.mxu0 0.0
        %3016 = vmatpush.msra.mxu0 0.0
        %3017 = vmatpush.msra.mxu0 0.0
        %3018 = vmatpush.msra.mxu0 0.0
        %3019 = vmatpush.msra.mxu0 0.0
        %3020 = vmatpush.msra.mxu0 0.0
        %3021 = vmatpush.msra.mxu0 0.0
        %3022 = vmatpush.msra.mxu0 0.0
        %3023 = vmatpush.msra.mxu0 0.0
        %3024 = vmatpush.msra.mxu0 0.0
        %3025 = vmatpush.msra.mxu0 0.0
        %3026 = vmatpush.msra.mxu0 %v3012
        %3027 = vmatpush.msra.mxu0 %v2994
        %3028 = vmatpush.msra.mxu0 %v2992
        %3029 = vmatpush.msra.mxu0 %v2990
        %3030 = vmatmul.f32.gmra.mxu0 %v3001
        %v3031 = vpop.f32.mrf.mxu0
        %v3032 = vadd.f32 0.0, %v3031
        %3033 = vmatmul.f32.gmra.mxu0 %v3004
        %v3034 = vpop.f32.mrf.mxu0
        %v3035 = vadd.f32 0.0, %v3034
        %3036 = vmatmul.f32.gmra.mxu0 %v3007
        %v3037 = vpop.f32.mrf.mxu0
        %v3038 = vadd.f32 0.0, %v3037
        %3039 = vmatmul.f32.gmra.mxu0 %v3010
        %v3040 = vpop.f32.mrf.mxu0
        %v3041 = vadd.f32 0.0, %v3040
        %3042 = vdwg.mxu0
        %3047 = vrot.lane.b32.xlu0 %v3032, 16
        %v3048 = vpop.permute.xlu0 %3047
        %3049 = vrot.lane.b32.xlu0 %v3035, 16
        %v3050 = vpop.permute.xlu0 %3049
        %3051 = vrot.lane.b32.xlu0 %v3038, 16
        %v3052 = vpop.permute.xlu0 %3051
        %3053 = vrot.lane.b32.xlu0 %v3041, 16
        %v3054 = vpop.permute.xlu0 %3053
        %3059 = vst.msk [vmem:[#allocation3] sm:$0xff] %vm1288, %v3048
        %3060 = vst.msk [vmem:[#allocation3 + $0x8] sm:$0xff] %vm1288, %v3050
        %3061 = vst.msk [vmem:[#allocation3 + $0x10] sm:$0xff] %vm1288, %v3052
        %3062 = vst.msk [vmem:[#allocation3 + $0x18] sm:$0x1] %vm1292, %v3054
        %3063 = vrot.lane.b32.xlu0 %v2606, 96
        %v3064 = vpop.permute.xlu0 %3063
        %3065 = vrot.lane.b32.xlu0 %v2609, 96
        %v3066 = vpop.permute.xlu0 %3065
        %3067 = vrot.lane.b32.xlu0 %v2612, 96
        %v3068 = vpop.permute.xlu0 %3067
        %3069 = vrot.lane.b32.xlu0 %v2615, 96
        %v3070 = vpop.permute.xlu0 %3069
        %3071 = vrot.lane.b32.xlu0 %v2655, 96
        %v3072 = vpop.permute.xlu0 %3071
        %3073 = vrot.lane.b32.xlu0 %v2658, 96
        %v3074 = vpop.permute.xlu0 %3073
        %3075 = vrot.lane.b32.xlu0 %v2661, 96
        %v3076 = vpop.permute.xlu0 %3075
        %3077 = vrot.lane.b32.xlu0 %v2664, 96
        %v3078 = vpop.permute.xlu0 %3077
        %v3079 = vsel %vm942, %v3064, 0
        %v3081 = vsel %vm942, %v3066, 0
        %v3083 = vsel %vm942, %v3068, 0
        %v3085 = vsel %vm942, %v3070, 0
        %v3087 = vsel %vm942, %v3072, 0
        %v3089 = vsel %vm942, %v3074, 0
        %v3091 = vsel %vm942, %v3076, 0
        %v3093 = vsel %vm942, %v3078, 0
        %3095 = vmatpush.xpose.msra.mxu0 0.0
        %3096 = vmatpush.xpose.msra.mxu0 0.0
        %3097 = vmatpush.xpose.msra.mxu0 0.0
        %3098 = vmatpush.xpose.msra.mxu0 0.0
        %3099 = vmatpush.xpose.msra.mxu0 0.0
        %3100 = vmatpush.xpose.msra.mxu0 0.0
        %3101 = vmatpush.xpose.msra.mxu0 0.0
        %3102 = vmatpush.xpose.msra.mxu0 0.0
        %3103 = vmatpush.xpose.msra.mxu0 0.0
        %3104 = vmatpush.xpose.msra.mxu0 0.0
        %3105 = vmatpush.xpose.msra.mxu0 0.0
        %3106 = vmatpush.xpose.msra.mxu0 0.0
        %3107 = vmatpush.xpose.msra.mxu0 %v3093
        %3108 = vmatpush.xpose.msra.mxu0 %v3091
        %3109 = vmatpush.xpose.msra.mxu0 %v3089
        %3110 = vmatpush.xpose.msra.mxu0 %v3087
        %3111 = vmatmul.f32.gmra.mxu0 %v3079
        %v3112 = vpop.f32.mrf.mxu0
        %v3113 = vadd.f32 0.0, %v3112
        %3114 = vmatmul.f32.gmra.mxu0 %v3081
        %v3115 = vpop.f32.mrf.mxu0
        %v3116 = vadd.f32 0.0, %v3115
        %3117 = vmatmul.f32.gmra.mxu0 %v3083
        %v3118 = vpop.f32.mrf.mxu0
        %v3119 = vadd.f32 0.0, %v3118
        %3120 = vmatmul.f32.gmra.mxu0 %v3085
        %v3121 = vpop.f32.mrf.mxu0
        %v3122 = vadd.f32 0.0, %v3121
        %3123 = vdwg.mxu0
        %v3124 = vmul.f32 %v3113, 0.25
        %v3125 = vmul.f32 %v3116, 0.25
        %v3126 = vmul.f32 %v3119, 0.25
        %v3127 = vmul.f32 %v3122, 0.25
        %v3128 = vadd.f32 %v3124, %v2775
        %v3129 = vadd.f32 %v3125, %v2775
        %v3130 = vadd.f32 %v3126, %v2775
        %v3131 = vadd.f32 %v3127, %v2775
        %v3132 = vsel %vm1007, %v3128, -inf
        %3133 = vmax.xlane.f32.xlu0 %v3132
        %v3134 = vpop.xlane.xlu0 %3133
        %v3135 = vsel %vm1007, %v3129, -inf
        %3136 = vmax.xlane.f32.xlu0 %v3135
        %v3137 = vpop.xlane.xlu0 %3136
        %v3138 = vsel %vm1007, %v3130, -inf
        %3139 = vmax.xlane.f32.xlu0 %v3138
        %v3140 = vpop.xlane.xlu0 %3139
        %v3141 = vsel %vm1017, %v3131, -inf
        %3142 = vmax.xlane.f32.xlu0 %v3141
        %v3143 = vpop.xlane.xlu0 %3142
        %v3144 = vsub.f32 %v3128, %v3134
        %v3145 = vsub.f32 %v3129, %v3137
        %v3146 = vsub.f32 %v3130, %v3140
        %v3147 = vsub.f32 %v3131, %v3143
        %v3148 = vmul.f32 %v3144, 1.442695
        %v3149 = vpow.pop %v3148
        %v3150 = vmul.f32 %v3145, 1.442695
        %v3151 = vpow.pop %v3150
        %v3152 = vmul.f32 %v3146, 1.442695
        %v3153 = vpow.pop %v3152
        %v3154 = vmul.f32 %v3147, 1.442695
        %v3155 = vpow.pop %v3154
        %v3156 = vsel %vm1007, %v3149, 0.0
        %3157 = vadd.xlane.f32.xlu0 %v3156
        %v3158 = vpop.xlane.xlu0 %3157
        %v3159 = vsel %vm1007, %v3151, 0.0
        %3160 = vadd.xlane.f32.xlu0 %v3159
        %v3161 = vpop.xlane.xlu0 %3160
        %v3162 = vsel %vm1007, %v3153, 0.0
        %3163 = vadd.xlane.f32.xlu0 %v3162
        %v3164 = vpop.xlane.xlu0 %3163
        %v3165 = vsel %vm1017, %v3155, 0.0
        %3166 = vadd.xlane.f32.xlu0 %v3165
        %v3167 = vpop.xlane.xlu0 %3166
        %v3168 = vrcp.pop %v3158
        %v3169 = vrcp.pop %v3161
        %v3170 = vrcp.pop %v3164
        %v3171 = vrcp.pop %v3167
        %v3172 = vmul.f32 %v3149, %v3168
        %v3173 = vmul.f32 %v3151, %v3169
        %v3174 = vmul.f32 %v3153, %v3170
        %v3175 = vmul.f32 %v3155, %v3171
        %3176 = vrot.lane.b32.xlu0 %v2704, 96
        %v3177 = vpop.permute.xlu0 %3176
        %3178 = vrot.lane.b32.xlu0 %v2707, 96
        %v3179 = vpop.permute.xlu0 %3178
        %3180 = vrot.lane.b32.xlu0 %v2710, 96
        %v3181 = vpop.permute.xlu0 %3180
        %3182 = vrot.lane.b32.xlu0 %v2713, 96
        %v3183 = vpop.permute.xlu0 %3182
        %v3188 = vsel %vm1007, %v3172, 0
        %v3191 = vsel %vm1007, %v3173, 0
        %v3194 = vsel %vm1007, %v3174, 0
        %v3197 = vsel %vm1007, %v3175, 0
        %v3199 = vsel %vm710, %v3183, 0
        %3201 = vmatpush.msra.mxu0 0.0
        %3202 = vmatpush.msra.mxu0 0.0
        %3203 = vmatpush.msra.mxu0 0.0
        %3204 = vmatpush.msra.mxu0 0.0
        %3205 = vmatpush.msra.mxu0 0.0
        %3206 = vmatpush.msra.mxu0 0.0
        %3207 = vmatpush.msra.mxu0 0.0
        %3208 = vmatpush.msra.mxu0 0.0
        %3209 = vmatpush.msra.mxu0 0.0
        %3210 = vmatpush.msra.mxu0 0.0
        %3211 = vmatpush.msra.mxu0 0.0
        %3212 = vmatpush.msra.mxu0 0.0
        %3213 = vmatpush.msra.mxu0 %v3199
        %3214 = vmatpush.msra.mxu0 %v3181
        %3215 = vmatpush.msra.mxu0 %v3179
        %3216 = vmatpush.msra.mxu0 %v3177
        %3217 = vmatmul.f32.gmra.mxu0 %v3188
        %v3218 = vpop.f32.mrf.mxu0
        %v3219 = vadd.f32 0.0, %v3218
        %3220 = vmatmul.f32.gmra.mxu0 %v3191
        %v3221 = vpop.f32.mrf.mxu0
        %v3222 = vadd.f32 0.0, %v3221
        %3223 = vmatmul.f32.gmra.mxu0 %v3194
        %v3224 = vpop.f32.mrf.mxu0
        %v3225 = vadd.f32 0.0, %v3224
        %3226 = vmatmul.f32.gmra.mxu0 %v3197
        %v3227 = vpop.f32.mrf.mxu0
        %v3228 = vadd.f32 0.0, %v3227
        %3229 = vdwg.mxu0
        %3234 = vrot.lane.b32.xlu0 %v3219, 32
        %v3235 = vpop.permute.xlu0 %3234
        %3236 = vrot.lane.b32.xlu0 %v3222, 32
        %v3237 = vpop.permute.xlu0 %3236
        %3238 = vrot.lane.b32.xlu0 %v3225, 32
        %v3239 = vpop.permute.xlu0 %3238
        %3240 = vrot.lane.b32.xlu0 %v3228, 32
        %v3241 = vpop.permute.xlu0 %3240
        %3246 = vst.msk [vmem:[#allocation3] sm:$0xff] %vm1477, %v3235
        %3247 = vst.msk [vmem:[#allocation3 + $0x8] sm:$0xff] %vm1477, %v3237
        %3248 = vst.msk [vmem:[#allocation3 + $0x10] sm:$0xff] %vm1477, %v3239
        %3249 = vst.msk [vmem:[#allocation3 + $0x18] sm:$0x1] %vm1481, %v3241
        %3250 = vrot.lane.b32.xlu0 %v2606, 80
        %v3251 = vpop.permute.xlu0 %3250
        %3252 = vrot.lane.b32.xlu0 %v2609, 80
        %v3253 = vpop.permute.xlu0 %3252
        %3254 = vrot.lane.b32.xlu0 %v2612, 80
        %v3255 = vpop.permute.xlu0 %3254
        %3256 = vrot.lane.b32.xlu0 %v2615, 80
        %v3257 = vpop.permute.xlu0 %3256
        %3258 = vrot.lane.b32.xlu0 %v2655, 80
        %v3259 = vpop.permute.xlu0 %3258
        %3260 = vrot.lane.b32.xlu0 %v2658, 80
        %v3261 = vpop.permute.xlu0 %3260
        %3262 = vrot.lane.b32.xlu0 %v2661, 80
        %v3263 = vpop.permute.xlu0 %3262
        %3264 = vrot.lane.b32.xlu0 %v2664, 80
        %v3265 = vpop.permute.xlu0 %3264
        %v3266 = vsel %vm942, %v3251, 0
        %v3268 = vsel %vm942, %v3253, 0
        %v3270 = vsel %vm942, %v3255, 0
        %v3272 = vsel %vm942, %v3257, 0
        %v3274 = vsel %vm942, %v3259, 0
        %v3276 = vsel %vm942, %v3261, 0
        %v3278 = vsel %vm942, %v3263, 0
        %v3280 = vsel %vm942, %v3265, 0
        %3282 = vmatpush.xpose.msra.mxu0 0.0
        %3283 = vmatpush.xpose.msra.mxu0 0.0
        %3284 = vmatpush.xpose.msra.mxu0 0.0
        %3285 = vmatpush.xpose.msra.mxu0 0.0
        %3286 = vmatpush.xpose.msra.mxu0 0.0
        %3287 = vmatpush.xpose.msra.mxu0 0.0
        %3288 = vmatpush.xpose.msra.mxu0 0.0
        %3289 = vmatpush.xpose.msra.mxu0 0.0
        %3290 = vmatpush.xpose.msra.mxu0 0.0
        %3291 = vmatpush.xpose.msra.mxu0 0.0
        %3292 = vmatpush.xpose.msra.mxu0 0.0
        %3293 = vmatpush.xpose.msra.mxu0 0.0
        %3294 = vmatpush.xpose.msra.mxu0 %v3280
        %3295 = vmatpush.xpose.msra.mxu0 %v3278
        %3296 = vmatpush.xpose.msra.mxu0 %v3276
        %3297 = vmatpush.xpose.msra.mxu0 %v3274
        %3298 = vmatmul.f32.gmra.mxu0 %v3266
        %v3299 = vpop.f32.mrf.mxu0
        %v3300 = vadd.f32 0.0, %v3299
        %3301 = vmatmul.f32.gmra.mxu0 %v3268
        %v3302 = vpop.f32.mrf.mxu0
        %v3303 = vadd.f32 0.0, %v3302
        %3304 = vmatmul.f32.gmra.mxu0 %v3270
        %v3305 = vpop.f32.mrf.mxu0
        %v3306 = vadd.f32 0.0, %v3305
        %3307 = vmatmul.f32.gmra.mxu0 %v3272
        %v3308 = vpop.f32.mrf.mxu0
        %v3309 = vadd.f32 0.0, %v3308
        %3310 = vdwg.mxu0
        %v3311 = vmul.f32 %v3300, 0.25
        %v3312 = vmul.f32 %v3303, 0.25
        %v3313 = vmul.f32 %v3306, 0.25
        %v3314 = vmul.f32 %v3309, 0.25
        %v3315 = vadd.f32 %v3311, %v2775
        %v3316 = vadd.f32 %v3312, %v2775
        %v3317 = vadd.f32 %v3313, %v2775
        %v3318 = vadd.f32 %v3314, %v2775
        %v3319 = vsel %vm1007, %v3315, -inf
        %3320 = vmax.xlane.f32.xlu0 %v3319
        %v3321 = vpop.xlane.xlu0 %3320
        %v3322 = vsel %vm1007, %v3316, -inf
        %3323 = vmax.xlane.f32.xlu0 %v3322
        %v3324 = vpop.xlane.xlu0 %3323
        %v3325 = vsel %vm1007, %v3317, -inf
        %3326 = vmax.xlane.f32.xlu0 %v3325
        %v3327 = vpop.xlane.xlu0 %3326
        %v3328 = vsel %vm1017, %v3318, -inf
        %3329 = vmax.xlane.f32.xlu0 %v3328
        %v3330 = vpop.xlane.xlu0 %3329
        %v3331 = vsub.f32 %v3315, %v3321
        %v3332 = vsub.f32 %v3316, %v3324
        %v3333 = vsub.f32 %v3317, %v3327
        %v3334 = vsub.f32 %v3318, %v3330
        %v3335 = vmul.f32 %v3331, 1.442695
        %v3336 = vpow.pop %v3335
        %v3337 = vmul.f32 %v3332, 1.442695
        %v3338 = vpow.pop %v3337
        %v3339 = vmul.f32 %v3333, 1.442695
        %v3340 = vpow.pop %v3339
        %v3341 = vmul.f32 %v3334, 1.442695
        %v3342 = vpow.pop %v3341
        %v3343 = vsel %vm1007, %v3336, 0.0
        %3344 = vadd.xlane.f32.xlu0 %v3343
        %v3345 = vpop.xlane.xlu0 %3344
        %v3346 = vsel %vm1007, %v3338, 0.0
        %3347 = vadd.xlane.f32.xlu0 %v3346
        %v3348 = vpop.xlane.xlu0 %3347
        %v3349 = vsel %vm1007, %v3340, 0.0
        %3350 = vadd.xlane.f32.xlu0 %v3349
        %v3351 = vpop.xlane.xlu0 %3350
        %v3352 = vsel %vm1017, %v3342, 0.0
        %3353 = vadd.xlane.f32.xlu0 %v3352
        %v3354 = vpop.xlane.xlu0 %3353
        %v3355 = vrcp.pop %v3345
        %v3356 = vrcp.pop %v3348
        %v3357 = vrcp.pop %v3351
        %v3358 = vrcp.pop %v3354
        %v3359 = vmul.f32 %v3336, %v3355
        %v3360 = vmul.f32 %v3338, %v3356
        %v3361 = vmul.f32 %v3340, %v3357
        %v3362 = vmul.f32 %v3342, %v3358
        %3363 = vrot.lane.b32.xlu0 %v2704, 80
        %v3364 = vpop.permute.xlu0 %3363
        %3365 = vrot.lane.b32.xlu0 %v2707, 80
        %v3366 = vpop.permute.xlu0 %3365
        %3367 = vrot.lane.b32.xlu0 %v2710, 80
        %v3368 = vpop.permute.xlu0 %3367
        %3369 = vrot.lane.b32.xlu0 %v2713, 80
        %v3370 = vpop.permute.xlu0 %3369
        %v3375 = vsel %vm1007, %v3359, 0
        %v3378 = vsel %vm1007, %v3360, 0
        %v3381 = vsel %vm1007, %v3361, 0
        %v3384 = vsel %vm1007, %v3362, 0
        %v3386 = vsel %vm710, %v3370, 0
        %3388 = vmatpush.msra.mxu0 0.0
        %3389 = vmatpush.msra.mxu0 0.0
        %3390 = vmatpush.msra.mxu0 0.0
        %3391 = vmatpush.msra.mxu0 0.0
        %3392 = vmatpush.msra.mxu0 0.0
        %3393 = vmatpush.msra.mxu0 0.0
        %3394 = vmatpush.msra.mxu0 0.0
        %3395 = vmatpush.msra.mxu0 0.0
        %3396 = vmatpush.msra.mxu0 0.0
        %3397 = vmatpush.msra.mxu0 0.0
        %3398 = vmatpush.msra.mxu0 0.0
        %3399 = vmatpush.msra.mxu0 0.0
        %3400 = vmatpush.msra.mxu0 %v3386
        %3401 = vmatpush.msra.mxu0 %v3368
        %3402 = vmatpush.msra.mxu0 %v3366
        %3403 = vmatpush.msra.mxu0 %v3364
        %3404 = vmatmul.f32.gmra.mxu0 %v3375
        %v3405 = vpop.f32.mrf.mxu0
        %v3406 = vadd.f32 0.0, %v3405
        %3407 = vmatmul.f32.gmra.mxu0 %v3378
        %v3408 = vpop.f32.mrf.mxu0
        %v3409 = vadd.f32 0.0, %v3408
        %3410 = vmatmul.f32.gmra.mxu0 %v3381
        %v3411 = vpop.f32.mrf.mxu0
        %v3412 = vadd.f32 0.0, %v3411
        %3413 = vmatmul.f32.gmra.mxu0 %v3384
        %v3414 = vpop.f32.mrf.mxu0
        %v3415 = vadd.f32 0.0, %v3414
        %3416 = vdwg.mxu0
        %3421 = vrot.lane.b32.xlu0 %v3406, 48
        %v3422 = vpop.permute.xlu0 %3421
        %3423 = vrot.lane.b32.xlu0 %v3409, 48
        %v3424 = vpop.permute.xlu0 %3423
        %3425 = vrot.lane.b32.xlu0 %v3412, 48
        %v3426 = vpop.permute.xlu0 %3425
        %3427 = vrot.lane.b32.xlu0 %v3415, 48
        %v3428 = vpop.permute.xlu0 %3427
        %3433 = vst.msk [vmem:[#allocation3] sm:$0xff] %vm1666, %v3422
        %3434 = vst.msk [vmem:[#allocation3 + $0x8] sm:$0xff] %vm1666, %v3424
        %3435 = vst.msk [vmem:[#allocation3 + $0x10] sm:$0xff] %vm1666, %v3426
        %3436 = vst.msk [vmem:[#allocation3 + $0x18] sm:$0x1] %vm1670, %v3428
        %3437 = vrot.lane.b32.xlu0 %v2606, 64
        %v3438 = vpop.permute.xlu0 %3437
        %3439 = vrot.lane.b32.xlu0 %v2609, 64
        %v3440 = vpop.permute.xlu0 %3439
        %3441 = vrot.lane.b32.xlu0 %v2612, 64
        %v3442 = vpop.permute.xlu0 %3441
        %3443 = vrot.lane.b32.xlu0 %v2615, 64
        %v3444 = vpop.permute.xlu0 %3443
        %3445 = vrot.lane.b32.xlu0 %v2655, 64
        %v3446 = vpop.permute.xlu0 %3445
        %3447 = vrot.lane.b32.xlu0 %v2658, 64
        %v3448 = vpop.permute.xlu0 %3447
        %3449 = vrot.lane.b32.xlu0 %v2661, 64
        %v3450 = vpop.permute.xlu0 %3449
        %3451 = vrot.lane.b32.xlu0 %v2664, 64
        %v3452 = vpop.permute.xlu0 %3451
        %v3453 = vsel %vm942, %v3438, 0
        %v3455 = vsel %vm942, %v3440, 0
        %v3457 = vsel %vm942, %v3442, 0
        %v3459 = vsel %vm942, %v3444, 0
        %v3461 = vsel %vm942, %v3446, 0
        %v3463 = vsel %vm942, %v3448, 0
        %v3465 = vsel %vm942, %v3450, 0
        %v3467 = vsel %vm942, %v3452, 0
        %3469 = vmatpush.xpose.msra.mxu0 0.0
        %3470 = vmatpush.xpose.msra.mxu0 0.0
        %3471 = vmatpush.xpose.msra.mxu0 0.0
        %3472 = vmatpush.xpose.msra.mxu0 0.0
        %3473 = vmatpush.xpose.msra.mxu0 0.0
        %3474 = vmatpush.xpose.msra.mxu0 0.0
        %3475 = vmatpush.xpose.msra.mxu0 0.0
        %3476 = vmatpush.xpose.msra.mxu0 0.0
        %3477 = vmatpush.xpose.msra.mxu0 0.0
        %3478 = vmatpush.xpose.msra.mxu0 0.0
        %3479 = vmatpush.xpose.msra.mxu0 0.0
        %3480 = vmatpush.xpose.msra.mxu0 0.0
        %3481 = vmatpush.xpose.msra.mxu0 %v3467
        %3482 = vmatpush.xpose.msra.mxu0 %v3465
        %3483 = vmatpush.xpose.msra.mxu0 %v3463
        %3484 = vmatpush.xpose.msra.mxu0 %v3461
        %3485 = vmatmul.f32.gmra.mxu0 %v3453
        %v3486 = vpop.f32.mrf.mxu0
        %v3487 = vadd.f32 0.0, %v3486
        %3488 = vmatmul.f32.gmra.mxu0 %v3455
        %v3489 = vpop.f32.mrf.mxu0
        %v3490 = vadd.f32 0.0, %v3489
        %3491 = vmatmul.f32.gmra.mxu0 %v3457
        %v3492 = vpop.f32.mrf.mxu0
        %v3493 = vadd.f32 0.0, %v3492
        %3494 = vmatmul.f32.gmra.mxu0 %v3459
        %v3495 = vpop.f32.mrf.mxu0
        %v3496 = vadd.f32 0.0, %v3495
        %3497 = vdwg.mxu0
        %v3498 = vmul.f32 %v3487, 0.25
        %v3499 = vmul.f32 %v3490, 0.25
        %v3500 = vmul.f32 %v3493, 0.25
        %v3501 = vmul.f32 %v3496, 0.25
        %v3502 = vadd.f32 %v3498, %v2775
        %v3503 = vadd.f32 %v3499, %v2775
        %v3504 = vadd.f32 %v3500, %v2775
        %v3505 = vadd.f32 %v3501, %v2775
        %v3506 = vsel %vm1007, %v3502, -inf
        %3507 = vmax.xlane.f32.xlu0 %v3506
        %v3508 = vpop.xlane.xlu0 %3507
        %v3509 = vsel %vm1007, %v3503, -inf
        %3510 = vmax.xlane.f32.xlu0 %v3509
        %v3511 = vpop.xlane.xlu0 %3510
        %v3512 = vsel %vm1007, %v3504, -inf
        %3513 = vmax.xlane.f32.xlu0 %v3512
        %v3514 = vpop.xlane.xlu0 %3513
        %v3515 = vsel %vm1017, %v3505, -inf
        %3516 = vmax.xlane.f32.xlu0 %v3515
        %v3517 = vpop.xlane.xlu0 %3516
        %v3518 = vsub.f32 %v3502, %v3508
        %v3519 = vsub.f32 %v3503, %v3511
        %v3520 = vsub.f32 %v3504, %v3514
        %v3521 = vsub.f32 %v3505, %v3517
        %v3522 = vmul.f32 %v3518, 1.442695
        %v3523 = vpow.pop %v3522
        %v3524 = vmul.f32 %v3519, 1.442695
        %v3525 = vpow.pop %v3524
        %v3526 = vmul.f32 %v3520, 1.442695
        %v3527 = vpow.pop %v3526
        %v3528 = vmul.f32 %v3521, 1.442695
        %v3529 = vpow.pop %v3528
        %v3530 = vsel %vm1007, %v3523, 0.0
        %3531 = vadd.xlane.f32.xlu0 %v3530
        %v3532 = vpop.xlane.xlu0 %3531
        %v3533 = vsel %vm1007, %v3525, 0.0
        %3534 = vadd.xlane.f32.xlu0 %v3533
        %v3535 = vpop.xlane.xlu0 %3534
        %v3536 = vsel %vm1007, %v3527, 0.0
        %3537 = vadd.xlane.f32.xlu0 %v3536
        %v3538 = vpop.xlane.xlu0 %3537
        %v3539 = vsel %vm1017, %v3529, 0.0
        %3540 = vadd.xlane.f32.xlu0 %v3539
        %v3541 = vpop.xlane.xlu0 %3540
        %v3542 = vrcp.pop %v3532
        %v3543 = vrcp.pop %v3535
        %v3544 = vrcp.pop %v3538
        %v3545 = vrcp.pop %v3541
        %v3546 = vmul.f32 %v3523, %v3542
        %v3547 = vmul.f32 %v3525, %v3543
        %v3548 = vmul.f32 %v3527, %v3544
        %v3549 = vmul.f32 %v3529, %v3545
        %3550 = vrot.lane.b32.xlu0 %v2704, 64
        %v3551 = vpop.permute.xlu0 %3550
        %3552 = vrot.lane.b32.xlu0 %v2707, 64
        %v3553 = vpop.permute.xlu0 %3552
        %3554 = vrot.lane.b32.xlu0 %v2710, 64
        %v3555 = vpop.permute.xlu0 %3554
        %3556 = vrot.lane.b32.xlu0 %v2713, 64
        %v3557 = vpop.permute.xlu0 %3556
        %v3562 = vsel %vm1007, %v3546, 0
        %v3565 = vsel %vm1007, %v3547, 0
        %v3568 = vsel %vm1007, %v3548, 0
        %v3571 = vsel %vm1007, %v3549, 0
        %v3573 = vsel %vm710, %v3557, 0
        %3575 = vmatpush.msra.mxu0 0.0
        %3576 = vmatpush.msra.mxu0 0.0
        %3577 = vmatpush.msra.mxu0 0.0
        %3578 = vmatpush.msra.mxu0 0.0
        %3579 = vmatpush.msra.mxu0 0.0
        %3580 = vmatpush.msra.mxu0 0.0
        %3581 = vmatpush.msra.mxu0 0.0
        %3582 = vmatpush.msra.mxu0 0.0
        %3583 = vmatpush.msra.mxu0 0.0
        %3584 = vmatpush.msra.mxu0 0.0
        %3585 = vmatpush.msra.mxu0 0.0
        %3586 = vmatpush.msra.mxu0 0.0
        %3587 = vmatpush.msra.mxu0 %v3573
        %3588 = vmatpush.msra.mxu0 %v3555
        %3589 = vmatpush.msra.mxu0 %v3553
        %3590 = vmatpush.msra.mxu0 %v3551
        %3591 = vmatmul.f32.gmra.mxu0 %v3562
        %v3592 = vpop.f32.mrf.mxu0
        %v3593 = vadd.f32 0.0, %v3592
        %3594 = vmatmul.f32.gmra.mxu0 %v3565
        %v3595 = vpop.f32.mrf.mxu0
        %v3596 = vadd.f32 0.0, %v3595
        %3597 = vmatmul.f32.gmra.mxu0 %v3568
        %v3598 = vpop.f32.mrf.mxu0
        %v3599 = vadd.f32 0.0, %v3598
        %3600 = vmatmul.f32.gmra.mxu0 %v3571
        %v3601 = vpop.f32.mrf.mxu0
        %v3602 = vadd.f32 0.0, %v3601
        %3603 = vdwg.mxu0
        %3608 = vrot.lane.b32.xlu0 %v3593, 64
        %v3609 = vpop.permute.xlu0 %3608
        %3610 = vrot.lane.b32.xlu0 %v3596, 64
        %v3611 = vpop.permute.xlu0 %3610
        %3612 = vrot.lane.b32.xlu0 %v3599, 64
        %v3613 = vpop.permute.xlu0 %3612
        %3614 = vrot.lane.b32.xlu0 %v3602, 64
        %v3615 = vpop.permute.xlu0 %3614
        %3620 = vst.msk [vmem:[#allocation3] sm:$0xff] %vm1855, %v3609
        %3621 = vst.msk [vmem:[#allocation3 + $0x8] sm:$0xff] %vm1855, %v3611
        %3622 = vst.msk [vmem:[#allocation3 + $0x10] sm:$0xff] %vm1855, %v3613
        %3623 = vst.msk [vmem:[#allocation3 + $0x18] sm:$0x1] %vm1859, %v3615
        %3624 = vrot.lane.b32.xlu0 %v2606, 48
        %v3625 = vpop.permute.xlu0 %3624
        %3626 = vrot.lane.b32.xlu0 %v2609, 48
        %v3627 = vpop.permute.xlu0 %3626
        %3628 = vrot.lane.b32.xlu0 %v2612, 48
        %v3629 = vpop.permute.xlu0 %3628
        %3630 = vrot.lane.b32.xlu0 %v2615, 48
        %v3631 = vpop.permute.xlu0 %3630
        %3632 = vrot.lane.b32.xlu0 %v2655, 48
        %v3633 = vpop.permute.xlu0 %3632
        %3634 = vrot.lane.b32.xlu0 %v2658, 48
        %v3635 = vpop.permute.xlu0 %3634
        %3636 = vrot.lane.b32.xlu0 %v2661, 48
        %v3637 = vpop.permute.xlu0 %3636
        %3638 = vrot.lane.b32.xlu0 %v2664, 48
        %v3639 = vpop.permute.xlu0 %3638
        %v3640 = vsel %vm942, %v3625, 0
        %v3642 = vsel %vm942, %v3627, 0
        %v3644 = vsel %vm942, %v3629, 0
        %v3646 = vsel %vm942, %v3631, 0
        %v3648 = vsel %vm942, %v3633, 0
        %v3650 = vsel %vm942, %v3635, 0
        %v3652 = vsel %vm942, %v3637, 0
        %v3654 = vsel %vm942, %v3639, 0
        %3656 = vmatpush.xpose.msra.mxu0 0.0
        %3657 = vmatpush.xpose.msra.mxu0 0.0
        %3658 = vmatpush.xpose.msra.mxu0 0.0
        %3659 = vmatpush.xpose.msra.mxu0 0.0
        %3660 = vmatpush.xpose.msra.mxu0 0.0
        %3661 = vmatpush.xpose.msra.mxu0 0.0
        %3662 = vmatpush.xpose.msra.mxu0 0.0
        %3663 = vmatpush.xpose.msra.mxu0 0.0
        %3664 = vmatpush.xpose.msra.mxu0 0.0
        %3665 = vmatpush.xpose.msra.mxu0 0.0
        %3666 = vmatpush.xpose.msra.mxu0 0.0
        %3667 = vmatpush.xpose.msra.mxu0 0.0
        %3668 = vmatpush.xpose.msra.mxu0 %v3654
        %3669 = vmatpush.xpose.msra.mxu0 %v3652
        %3670 = vmatpush.xpose.msra.mxu0 %v3650
        %3671 = vmatpush.xpose.msra.mxu0 %v3648
        %3672 = vmatmul.f32.gmra.mxu0 %v3640
        %v3673 = vpop.f32.mrf.mxu0
        %v3674 = vadd.f32 0.0, %v3673
        %3675 = vmatmul.f32.gmra.mxu0 %v3642
        %v3676 = vpop.f32.mrf.mxu0
        %v3677 = vadd.f32 0.0, %v3676
        %3678 = vmatmul.f32.gmra.mxu0 %v3644
        %v3679 = vpop.f32.mrf.mxu0
        %v3680 = vadd.f32 0.0, %v3679
        %3681 = vmatmul.f32.gmra.mxu0 %v3646
        %v3682 = vpop.f32.mrf.mxu0
        %v3683 = vadd.f32 0.0, %v3682
        %3684 = vdwg.mxu0
        %v3685 = vmul.f32 %v3674, 0.25
        %v3686 = vmul.f32 %v3677, 0.25
        %v3687 = vmul.f32 %v3680, 0.25
        %v3688 = vmul.f32 %v3683, 0.25
        %v3689 = vadd.f32 %v3685, %v2775
        %v3690 = vadd.f32 %v3686, %v2775
        %v3691 = vadd.f32 %v3687, %v2775
        %v3692 = vadd.f32 %v3688, %v2775
        %v3693 = vsel %vm1007, %v3689, -inf
        %3694 = vmax.xlane.f32.xlu0 %v3693
        %v3695 = vpop.xlane.xlu0 %3694
        %v3696 = vsel %vm1007, %v3690, -inf
        %3697 = vmax.xlane.f32.xlu0 %v3696
        %v3698 = vpop.xlane.xlu0 %3697
        %v3699 = vsel %vm1007, %v3691, -inf
        %3700 = vmax.xlane.f32.xlu0 %v3699
        %v3701 = vpop.xlane.xlu0 %3700
        %v3702 = vsel %vm1017, %v3692, -inf
        %3703 = vmax.xlane.f32.xlu0 %v3702
        %v3704 = vpop.xlane.xlu0 %3703
        %v3705 = vsub.f32 %v3689, %v3695
        %v3706 = vsub.f32 %v3690, %v3698
        %v3707 = vsub.f32 %v3691, %v3701
        %v3708 = vsub.f32 %v3692, %v3704
        %v3709 = vmul.f32 %v3705, 1.442695
        %v3710 = vpow.pop %v3709
        %v3711 = vmul.f32 %v3706, 1.442695
        %v3712 = vpow.pop %v3711
        %v3713 = vmul.f32 %v3707, 1.442695
        %v3714 = vpow.pop %v3713
        %v3715 = vmul.f32 %v3708, 1.442695
        %v3716 = vpow.pop %v3715
        %v3717 = vsel %vm1007, %v3710, 0.0
        %3718 = vadd.xlane.f32.xlu0 %v3717
        %v3719 = vpop.xlane.xlu0 %3718
        %v3720 = vsel %vm1007, %v3712, 0.0
        %3721 = vadd.xlane.f32.xlu0 %v3720
        %v3722 = vpop.xlane.xlu0 %3721
        %v3723 = vsel %vm1007, %v3714, 0.0
        %3724 = vadd.xlane.f32.xlu0 %v3723
        %v3725 = vpop.xlane.xlu0 %3724
        %v3726 = vsel %vm1017, %v3716, 0.0
        %3727 = vadd.xlane.f32.xlu0 %v3726
        %v3728 = vpop.xlane.xlu0 %3727
        %v3729 = vrcp.pop %v3719
        %v3730 = vrcp.pop %v3722
        %v3731 = vrcp.pop %v3725
        %v3732 = vrcp.pop %v3728
        %v3733 = vmul.f32 %v3710, %v3729
        %v3734 = vmul.f32 %v3712, %v3730
        %v3735 = vmul.f32 %v3714, %v3731
        %v3736 = vmul.f32 %v3716, %v3732
        %3737 = vrot.lane.b32.xlu0 %v2704, 48
        %v3738 = vpop.permute.xlu0 %3737
        %3739 = vrot.lane.b32.xlu0 %v2707, 48
        %v3740 = vpop.permute.xlu0 %3739
        %3741 = vrot.lane.b32.xlu0 %v2710, 48
        %v3742 = vpop.permute.xlu0 %3741
        %3743 = vrot.lane.b32.xlu0 %v2713, 48
        %v3744 = vpop.permute.xlu0 %3743
        %v3749 = vsel %vm1007, %v3733, 0
        %v3752 = vsel %vm1007, %v3734, 0
        %v3755 = vsel %vm1007, %v3735, 0
        %v3758 = vsel %vm1007, %v3736, 0
        %v3760 = vsel %vm710, %v3744, 0
        %3762 = vmatpush.msra.mxu0 0.0
        %3763 = vmatpush.msra.mxu0 0.0
        %3764 = vmatpush.msra.mxu0 0.0
        %3765 = vmatpush.msra.mxu0 0.0
        %3766 = vmatpush.msra.mxu0 0.0
        %3767 = vmatpush.msra.mxu0 0.0
        %3768 = vmatpush.msra.mxu0 0.0
        %3769 = vmatpush.msra.mxu0 0.0
        %3770 = vmatpush.msra.mxu0 0.0
        %3771 = vmatpush.msra.mxu0 0.0
        %3772 = vmatpush.msra.mxu0 0.0
        %3773 = vmatpush.msra.mxu0 0.0
        %3774 = vmatpush.msra.mxu0 %v3760
        %3775 = vmatpush.msra.mxu0 %v3742
        %3776 = vmatpush.msra.mxu0 %v3740
        %3777 = vmatpush.msra.mxu0 %v3738
        %3778 = vmatmul.f32.gmra.mxu0 %v3749
        %v3779 = vpop.f32.mrf.mxu0
        %v3780 = vadd.f32 0.0, %v3779
        %3781 = vmatmul.f32.gmra.mxu0 %v3752
        %v3782 = vpop.f32.mrf.mxu0
        %v3783 = vadd.f32 0.0, %v3782
        %3784 = vmatmul.f32.gmra.mxu0 %v3755
        %v3785 = vpop.f32.mrf.mxu0
        %v3786 = vadd.f32 0.0, %v3785
        %3787 = vmatmul.f32.gmra.mxu0 %v3758
        %v3788 = vpop.f32.mrf.mxu0
        %v3789 = vadd.f32 0.0, %v3788
        %3790 = vdwg.mxu0
        %3795 = vrot.lane.b32.xlu0 %v3780, 80
        %v3796 = vpop.permute.xlu0 %3795
        %3797 = vrot.lane.b32.xlu0 %v3783, 80
        %v3798 = vpop.permute.xlu0 %3797
        %3799 = vrot.lane.b32.xlu0 %v3786, 80
        %v3800 = vpop.permute.xlu0 %3799
        %3801 = vrot.lane.b32.xlu0 %v3789, 80
        %v3802 = vpop.permute.xlu0 %3801
        %3807 = vst.msk [vmem:[#allocation3] sm:$0xff] %vm2044, %v3796
        %3808 = vst.msk [vmem:[#allocation3 + $0x8] sm:$0xff] %vm2044, %v3798
        %3809 = vst.msk [vmem:[#allocation3 + $0x10] sm:$0xff] %vm2044, %v3800
        %3810 = vst.msk [vmem:[#allocation3 + $0x18] sm:$0x1] %vm2048, %v3802
        %3811 = vrot.lane.b32.xlu0 %v2606, 32
        %v3812 = vpop.permute.xlu0 %3811
        %3813 = vrot.lane.b32.xlu0 %v2609, 32
        %v3814 = vpop.permute.xlu0 %3813
        %3815 = vrot.lane.b32.xlu0 %v2612, 32
        %v3816 = vpop.permute.xlu0 %3815
        %3817 = vrot.lane.b32.xlu0 %v2615, 32
        %v3818 = vpop.permute.xlu0 %3817
        %3819 = vrot.lane.b32.xlu0 %v2655, 32
        %v3820 = vpop.permute.xlu0 %3819
        %3821 = vrot.lane.b32.xlu0 %v2658, 32
        %v3822 = vpop.permute.xlu0 %3821
        %3823 = vrot.lane.b32.xlu0 %v2661, 32
        %v3824 = vpop.permute.xlu0 %3823
        %3825 = vrot.lane.b32.xlu0 %v2664, 32
        %v3826 = vpop.permute.xlu0 %3825
        %v3827 = vsel %vm942, %v3812, 0
        %v3829 = vsel %vm942, %v3814, 0
        %v3831 = vsel %vm942, %v3816, 0
        %v3833 = vsel %vm942, %v3818, 0
        %v3835 = vsel %vm942, %v3820, 0
        %v3837 = vsel %vm942, %v3822, 0
        %v3839 = vsel %vm942, %v3824, 0
        %v3841 = vsel %vm942, %v3826, 0
        %3843 = vmatpush.xpose.msra.mxu0 0.0
        %3844 = vmatpush.xpose.msra.mxu0 0.0
        %3845 = vmatpush.xpose.msra.mxu0 0.0
        %3846 = vmatpush.xpose.msra.mxu0 0.0
        %3847 = vmatpush.xpose.msra.mxu0 0.0
        %3848 = vmatpush.xpose.msra.mxu0 0.0
        %3849 = vmatpush.xpose.msra.mxu0 0.0
        %3850 = vmatpush.xpose.msra.mxu0 0.0
        %3851 = vmatpush.xpose.msra.mxu0 0.0
        %3852 = vmatpush.xpose.msra.mxu0 0.0
        %3853 = vmatpush.xpose.msra.mxu0 0.0
        %3854 = vmatpush.xpose.msra.mxu0 0.0
        %3855 = vmatpush.xpose.msra.mxu0 %v3841
        %3856 = vmatpush.xpose.msra.mxu0 %v3839
        %3857 = vmatpush.xpose.msra.mxu0 %v3837
        %3858 = vmatpush.xpose.msra.mxu0 %v3835
        %3859 = vmatmul.f32.gmra.mxu0 %v3827
        %v3860 = vpop.f32.mrf.mxu0
        %v3861 = vadd.f32 0.0, %v3860
        %3862 = vmatmul.f32.gmra.mxu0 %v3829
        %v3863 = vpop.f32.mrf.mxu0
        %v3864 = vadd.f32 0.0, %v3863
        %3865 = vmatmul.f32.gmra.mxu0 %v3831
        %v3866 = vpop.f32.mrf.mxu0
        %v3867 = vadd.f32 0.0, %v3866
        %3868 = vmatmul.f32.gmra.mxu0 %v3833
        %v3869 = vpop.f32.mrf.mxu0
        %v3870 = vadd.f32 0.0, %v3869
        %3871 = vdwg.mxu0
        %v3872 = vmul.f32 %v3861, 0.25
        %v3873 = vmul.f32 %v3864, 0.25
        %v3874 = vmul.f32 %v3867, 0.25
        %v3875 = vmul.f32 %v3870, 0.25
        %v3876 = vadd.f32 %v3872, %v2775
        %v3877 = vadd.f32 %v3873, %v2775
        %v3878 = vadd.f32 %v3874, %v2775
        %v3879 = vadd.f32 %v3875, %v2775
        %v3880 = vsel %vm1007, %v3876, -inf
        %3881 = vmax.xlane.f32.xlu0 %v3880
        %v3882 = vpop.xlane.xlu0 %3881
        %v3883 = vsel %vm1007, %v3877, -inf
        %3884 = vmax.xlane.f32.xlu0 %v3883
        %v3885 = vpop.xlane.xlu0 %3884
        %v3886 = vsel %vm1007, %v3878, -inf
        %3887 = vmax.xlane.f32.xlu0 %v3886
        %v3888 = vpop.xlane.xlu0 %3887
        %v3889 = vsel %vm1017, %v3879, -inf
        %3890 = vmax.xlane.f32.xlu0 %v3889
        %v3891 = vpop.xlane.xlu0 %3890
        %v3892 = vsub.f32 %v3876, %v3882
        %v3893 = vsub.f32 %v3877, %v3885
        %v3894 = vsub.f32 %v3878, %v3888
        %v3895 = vsub.f32 %v3879, %v3891
        %v3896 = vmul.f32 %v3892, 1.442695
        %v3897 = vpow.pop %v3896
        %v3898 = vmul.f32 %v3893, 1.442695
        %v3899 = vpow.pop %v3898
        %v3900 = vmul.f32 %v3894, 1.442695
        %v3901 = vpow.pop %v3900
        %v3902 = vmul.f32 %v3895, 1.442695
        %v3903 = vpow.pop %v3902
        %v3904 = vsel %vm1007, %v3897, 0.0
        %3905 = vadd.xlane.f32.xlu0 %v3904
        %v3906 = vpop.xlane.xlu0 %3905
        %v3907 = vsel %vm1007, %v3899, 0.0
        %3908 = vadd.xlane.f32.xlu0 %v3907
        %v3909 = vpop.xlane.xlu0 %3908
        %v3910 = vsel %vm1007, %v3901, 0.0
        %3911 = vadd.xlane.f32.xlu0 %v3910
        %v3912 = vpop.xlane.xlu0 %3911
        %v3913 = vsel %vm1017, %v3903, 0.0
        %3914 = vadd.xlane.f32.xlu0 %v3913
        %v3915 = vpop.xlane.xlu0 %3914
        %v3916 = vrcp.pop %v3906
        %v3917 = vrcp.pop %v3909
        %v3918 = vrcp.pop %v3912
        %v3919 = vrcp.pop %v3915
        %v3920 = vmul.f32 %v3897, %v3916
        %v3921 = vmul.f32 %v3899, %v3917
        %v3922 = vmul.f32 %v3901, %v3918
        %v3923 = vmul.f32 %v3903, %v3919
        %3924 = vrot.lane.b32.xlu0 %v2704, 32
        %v3925 = vpop.permute.xlu0 %3924
        %3926 = vrot.lane.b32.xlu0 %v2707, 32
        %v3927 = vpop.permute.xlu0 %3926
        %3928 = vrot.lane.b32.xlu0 %v2710, 32
        %v3929 = vpop.permute.xlu0 %3928
        %3930 = vrot.lane.b32.xlu0 %v2713, 32
        %v3931 = vpop.permute.xlu0 %3930
        %v3936 = vsel %vm1007, %v3920, 0
        %v3939 = vsel %vm1007, %v3921, 0
        %v3942 = vsel %vm1007, %v3922, 0
        %v3945 = vsel %vm1007, %v3923, 0
        %v3947 = vsel %vm710, %v3931, 0
        %3949 = vmatpush.msra.mxu0 0.0
        %3950 = vmatpush.msra.mxu0 0.0
        %3951 = vmatpush.msra.mxu0 0.0
        %3952 = vmatpush.msra.mxu0 0.0
        %3953 = vmatpush.msra.mxu0 0.0
        %3954 = vmatpush.msra.mxu0 0.0
        %3955 = vmatpush.msra.mxu0 0.0
        %3956 = vmatpush.msra.mxu0 0.0
        %3957 = vmatpush.msra.mxu0 0.0
        %3958 = vmatpush.msra.mxu0 0.0
        %3959 = vmatpush.msra.mxu0 0.0
        %3960 = vmatpush.msra.mxu0 0.0
        %3961 = vmatpush.msra.mxu0 %v3947
        %3962 = vmatpush.msra.mxu0 %v3929
        %3963 = vmatpush.msra.mxu0 %v3927
        %3964 = vmatpush.msra.mxu0 %v3925
        %3965 = vmatmul.f32.gmra.mxu0 %v3936
        %v3966 = vpop.f32.mrf.mxu0
        %v3967 = vadd.f32 0.0, %v3966
        %3968 = vmatmul.f32.gmra.mxu0 %v3939
        %v3969 = vpop.f32.mrf.mxu0
        %v3970 = vadd.f32 0.0, %v3969
        %3971 = vmatmul.f32.gmra.mxu0 %v3942
        %v3972 = vpop.f32.mrf.mxu0
        %v3973 = vadd.f32 0.0, %v3972
        %3974 = vmatmul.f32.gmra.mxu0 %v3945
        %v3975 = vpop.f32.mrf.mxu0
        %v3976 = vadd.f32 0.0, %v3975
        %3977 = vdwg.mxu0
        %3982 = vrot.lane.b32.xlu0 %v3967, 96
        %v3983 = vpop.permute.xlu0 %3982
        %3984 = vrot.lane.b32.xlu0 %v3970, 96
        %v3985 = vpop.permute.xlu0 %3984
        %3986 = vrot.lane.b32.xlu0 %v3973, 96
        %v3987 = vpop.permute.xlu0 %3986
        %3988 = vrot.lane.b32.xlu0 %v3976, 96
        %v3989 = vpop.permute.xlu0 %3988
        %3994 = vst.msk [vmem:[#allocation3] sm:$0xff] %vm2233, %v3983
        %3995 = vst.msk [vmem:[#allocation3 + $0x8] sm:$0xff] %vm2233, %v3985
        %3996 = vst.msk [vmem:[#allocation3 + $0x10] sm:$0xff] %vm2233, %v3987
        %3997 = vst.msk [vmem:[#allocation3 + $0x18] sm:$0x1] %vm2237, %v3989
        %3998 = vrot.lane.b32.xlu0 %v2606, 16
        %v3999 = vpop.permute.xlu0 %3998
        %4000 = vrot.lane.b32.xlu0 %v2609, 16
        %v4001 = vpop.permute.xlu0 %4000
        %4002 = vrot.lane.b32.xlu0 %v2612, 16
        %v4003 = vpop.permute.xlu0 %4002
        %4004 = vrot.lane.b32.xlu0 %v2615, 16
        %v4005 = vpop.permute.xlu0 %4004
        %4006 = vrot.lane.b32.xlu0 %v2655, 16
        %v4007 = vpop.permute.xlu0 %4006
        %4008 = vrot.lane.b32.xlu0 %v2658, 16
        %v4009 = vpop.permute.xlu0 %4008
        %4010 = vrot.lane.b32.xlu0 %v2661, 16
        %v4011 = vpop.permute.xlu0 %4010
        %4012 = vrot.lane.b32.xlu0 %v2664, 16
        %v4013 = vpop.permute.xlu0 %4012
        %v4014 = vsel %vm942, %v3999, 0
        %v4016 = vsel %vm942, %v4001, 0
        %v4018 = vsel %vm942, %v4003, 0
        %v4020 = vsel %vm942, %v4005, 0
        %v4022 = vsel %vm942, %v4007, 0
        %v4024 = vsel %vm942, %v4009, 0
        %v4026 = vsel %vm942, %v4011, 0
        %v4028 = vsel %vm942, %v4013, 0
        %4030 = vmatpush.xpose.msra.mxu0 0.0
        %4031 = vmatpush.xpose.msra.mxu0 0.0
        %4032 = vmatpush.xpose.msra.mxu0 0.0
        %4033 = vmatpush.xpose.msra.mxu0 0.0
        %4034 = vmatpush.xpose.msra.mxu0 0.0
        %4035 = vmatpush.xpose.msra.mxu0 0.0
        %4036 = vmatpush.xpose.msra.mxu0 0.0
        %4037 = vmatpush.xpose.msra.mxu0 0.0
        %4038 = vmatpush.xpose.msra.mxu0 0.0
        %4039 = vmatpush.xpose.msra.mxu0 0.0
        %4040 = vmatpush.xpose.msra.mxu0 0.0
        %4041 = vmatpush.xpose.msra.mxu0 0.0
        %4042 = vmatpush.xpose.msra.mxu0 %v4028
        %4043 = vmatpush.xpose.msra.mxu0 %v4026
        %4044 = vmatpush.xpose.msra.mxu0 %v4024
        %4045 = vmatpush.xpose.msra.mxu0 %v4022
        %4046 = vmatmul.f32.gmra.mxu0 %v4014
        %v4047 = vpop.f32.mrf.mxu0
        %v4048 = vadd.f32 0.0, %v4047
        %4049 = vmatmul.f32.gmra.mxu0 %v4016
        %v4050 = vpop.f32.mrf.mxu0
        %v4051 = vadd.f32 0.0, %v4050
        %4052 = vmatmul.f32.gmra.mxu0 %v4018
        %v4053 = vpop.f32.mrf.mxu0
        %v4054 = vadd.f32 0.0, %v4053
        %4055 = vmatmul.f32.gmra.mxu0 %v4020
        %v4056 = vpop.f32.mrf.mxu0
        %v4057 = vadd.f32 0.0, %v4056
        %4058 = vdwg.mxu0
        %v4059 = vmul.f32 %v4048, 0.25
        %v4060 = vmul.f32 %v4051, 0.25
        %v4061 = vmul.f32 %v4054, 0.25
        %v4062 = vmul.f32 %v4057, 0.25
        %v4063 = vadd.f32 %v4059, %v2775
        %v4064 = vadd.f32 %v4060, %v2775
        %v4065 = vadd.f32 %v4061, %v2775
        %v4066 = vadd.f32 %v4062, %v2775
        %v4067 = vsel %vm1007, %v4063, -inf
        %4068 = vmax.xlane.f32.xlu0 %v4067
        %v4069 = vpop.xlane.xlu0 %4068
        %v4070 = vsel %vm1007, %v4064, -inf
        %4071 = vmax.xlane.f32.xlu0 %v4070
        %v4072 = vpop.xlane.xlu0 %4071
        %v4073 = vsel %vm1007, %v4065, -inf
        %4074 = vmax.xlane.f32.xlu0 %v4073
        %v4075 = vpop.xlane.xlu0 %4074
        %v4076 = vsel %vm1017, %v4066, -inf
        %4077 = vmax.xlane.f32.xlu0 %v4076
        %v4078 = vpop.xlane.xlu0 %4077
        %v4079 = vsub.f32 %v4063, %v4069
        %v4080 = vsub.f32 %v4064, %v4072
        %v4081 = vsub.f32 %v4065, %v4075
        %v4082 = vsub.f32 %v4066, %v4078
        %v4083 = vmul.f32 %v4079, 1.442695
        %v4084 = vpow.pop %v4083
        %v4085 = vmul.f32 %v4080, 1.442695
        %v4086 = vpow.pop %v4085
        %v4087 = vmul.f32 %v4081, 1.442695
        %v4088 = vpow.pop %v4087
        %v4089 = vmul.f32 %v4082, 1.442695
        %v4090 = vpow.pop %v4089
        %v4091 = vsel %vm1007, %v4084, 0.0
        %4092 = vadd.xlane.f32.xlu0 %v4091
        %v4093 = vpop.xlane.xlu0 %4092
        %v4094 = vsel %vm1007, %v4086, 0.0
        %4095 = vadd.xlane.f32.xlu0 %v4094
        %v4096 = vpop.xlane.xlu0 %4095
        %v4097 = vsel %vm1007, %v4088, 0.0
        %4098 = vadd.xlane.f32.xlu0 %v4097
        %v4099 = vpop.xlane.xlu0 %4098
        %v4100 = vsel %vm1017, %v4090, 0.0
        %4101 = vadd.xlane.f32.xlu0 %v4100
        %v4102 = vpop.xlane.xlu0 %4101
        %v4103 = vrcp.pop %v4093
        %v4104 = vrcp.pop %v4096
        %v4105 = vrcp.pop %v4099
        %v4106 = vrcp.pop %v4102
        %v4107 = vmul.f32 %v4084, %v4103
        %v4108 = vmul.f32 %v4086, %v4104
        %v4109 = vmul.f32 %v4088, %v4105
        %v4110 = vmul.f32 %v4090, %v4106
        %4111 = vrot.lane.b32.xlu0 %v2704, 16
        %v4112 = vpop.permute.xlu0 %4111
        %4113 = vrot.lane.b32.xlu0 %v2707, 16
        %v4114 = vpop.permute.xlu0 %4113
        %4115 = vrot.lane.b32.xlu0 %v2710, 16
        %v4116 = vpop.permute.xlu0 %4115
        %4117 = vrot.lane.b32.xlu0 %v2713, 16
        %v4118 = vpop.permute.xlu0 %4117
        %v4123 = vsel %vm1007, %v4107, 0
        %v4126 = vsel %vm1007, %v4108, 0
        %v4129 = vsel %vm1007, %v4109, 0
        %v4132 = vsel %vm1007, %v4110, 0
        %v4134 = vsel %vm710, %v4118, 0
        %4136 = vmatpush.msra.mxu0 0.0
        %4137 = vmatpush.msra.mxu0 0.0
        %4138 = vmatpush.msra.mxu0 0.0
        %4139 = vmatpush.msra.mxu0 0.0
        %4140 = vmatpush.msra.mxu0 0.0
        %4141 = vmatpush.msra.mxu0 0.0
        %4142 = vmatpush.msra.mxu0 0.0
        %4143 = vmatpush.msra.mxu0 0.0
        %4144 = vmatpush.msra.mxu0 0.0
        %4145 = vmatpush.msra.mxu0 0.0
        %4146 = vmatpush.msra.mxu0 0.0
        %4147 = vmatpush.msra.mxu0 0.0
        %4148 = vmatpush.msra.mxu0 %v4134
        %4149 = vmatpush.msra.mxu0 %v4116
        %4150 = vmatpush.msra.mxu0 %v4114
        %4151 = vmatpush.msra.mxu0 %v4112
        %4152 = vmatmul.f32.gmra.mxu0 %v4123
        %v4153 = vpop.f32.mrf.mxu0
        %v4154 = vadd.f32 0.0, %v4153
        %4155 = vmatmul.f32.gmra.mxu0 %v4126
        %v4156 = vpop.f32.mrf.mxu0
        %v4157 = vadd.f32 0.0, %v4156
        %4158 = vmatmul.f32.gmra.mxu0 %v4129
        %v4159 = vpop.f32.mrf.mxu0
        %v4160 = vadd.f32 0.0, %v4159
        %4161 = vmatmul.f32.gmra.mxu0 %v4132
        %v4162 = vpop.f32.mrf.mxu0
        %v4163 = vadd.f32 0.0, %v4162
        %4164 = vdwg.mxu0
        %4169 = vrot.lane.b32.xlu0 %v4154, 112
        %v4170 = vpop.permute.xlu0 %4169
        %4171 = vrot.lane.b32.xlu0 %v4157, 112
        %v4172 = vpop.permute.xlu0 %4171
        %4173 = vrot.lane.b32.xlu0 %v4160, 112
        %v4174 = vpop.permute.xlu0 %4173
        %4175 = vrot.lane.b32.xlu0 %v4163, 112
        %v4176 = vpop.permute.xlu0 %4175
        %4181 = vst.msk [vmem:[#allocation3] sm:$0xff] %vm2422, %v4170
        %4182 = vst.msk [vmem:[#allocation3 + $0x8] sm:$0xff] %vm2422, %v4172
        %4183 = vst.msk [vmem:[#allocation3 + $0x10] sm:$0xff] %vm2422, %v4174
        %4184 = vst.msk [vmem:[#allocation3 + $0x18] sm:$0x1] %vm2426, %v4176
        %v4185 = vld [vmem:[#allocation3] sm:$0xff]
        %v4186 = vld [vmem:[#allocation3 + $0x8] sm:$0xff]
        %v4187 = vld [vmem:[#allocation3 + $0x10] sm:$0xff]
        %v4188 = vld [vmem:[#allocation3 + $0x18] sm:$0x1]
        %v4189 = vld [vmem:[%s15] sm:$0x1]
        %v4191 = vperm.slane %v4189, 0
        %4193 = vmatpush.msra.mxu0 %v689
        %4194 = vmatpush.msra.mxu0 %v688
        %4195 = vmatpush.msra.mxu0 %v687
        %4196 = vmatpush.msra.mxu0 %v686
        %4197 = vmatpush.msra.mxu0 %v685
        %4198 = vmatpush.msra.mxu0 %v684
        %4199 = vmatpush.msra.mxu0 %v683
        %4200 = vmatpush.msra.mxu0 %v682
        %4201 = vmatpush.msra.mxu0 %v681
        %4202 = vmatpush.msra.mxu0 %v680
        %4203 = vmatpush.msra.mxu0 %v679
        %4204 = vmatpush.msra.mxu0 %v678
        %4205 = vmatpush.msra.mxu0 %v677
        %4206 = vmatpush.msra.mxu0 %v676
        %4207 = vmatpush.msra.mxu0 %v675
        %4208 = vmatpush.msra.mxu0 %v674
        %4209 = vmatmul.f32.gmra.mxu0 %v4185
        %v4210 = vpop.f32.mrf.mxu0
        %v4211 = vadd.f32 %v4191, %v4210
        %4212 = vmatmul.f32.gmra.mxu0 %v4186
        %v4213 = vpop.f32.mrf.mxu0
        %v4214 = vadd.f32 %v4191, %v4213
        %4215 = vmatmul.f32.gmra.mxu0 %v4187
        %v4216 = vpop.f32.mrf.mxu0
        %v4217 = vadd.f32 %v4191, %v4216
        %4218 = vmatmul.f32.gmra.mxu0 %v4188
        %v4219 = vpop.f32.mrf.mxu0
        %v4220 = vadd.f32 %v4191, %v4219
        %4221 = vdwg.mxu0
        %v4222 = vadd.f32 %v2482, %v4211
        %v4223 = vadd.f32 %v2483, %v4214
        %v4224 = vadd.f32 %v2484, %v4217
        %v4225 = vadd.f32 %v2485, %v4220
        %s4226 = scalar_lea.vmem %s597, 32
        %4227 = vst [vmem:[%s4226] sm:$0xff] %v4222
        %4228 = vst [vmem:[%s4226 + $0x8] sm:$0xff] %v4223
        %4229 = vst [vmem:[%s4226 + $0x10] sm:$0xff] %v4224
        %4230 = vst [vmem:[%s4226 + $0x18] sm:$0x1] %v4225
        %s4231 = smul.u32 2, %s29
        %p4232 = scmp.lt.s32.totalorder %s4231, 3
        %s4233 = scalar_select %p4232, %s4231, 3
        %s4234 = smul.addr %s4233, 4
        %s4235 = smul.addr %s4234, 8
        %s4236 = scalar_lea.vmem %s16, %s4235
        // Predicated region
        $region97: #{tpu_custom_call.1} parent=83 // pred_check
          %p4237 = pneg %p393
        $region98: #{tpu_custom_call.1} parent=83 // pred_check_branch
          %4239 = sbr.rel (%p4237) target = $region100
        $region99: #{tpu_custom_call.1} parent=83 // pred_region
          %s4240 = smul.u32 2, %s29
        $region100: #{tpu_custom_call.1} parent=83 // pred_fallthru
          _
      $region84: #{tpu_custom_call.1} parent=5 // pred_fallthru
        _
      %p4241 = scmp.le.s32.totalorder 2, %s24
      // Predicated region
      $region101: #{tpu_custom_call.1} parent=5 // pred_check
        %p4242 = pneg %p4241
      $region102: #{tpu_custom_call.1} parent=5 // pred_check_branch
        %4244 = sbr.rel (%p4242) target = $region104
      $region103: #{tpu_custom_call.1} parent=5 // pred_region
        %s4245 = ssub.s32 %s24, 2
        // Predicated region
        $region105: #{tpu_custom_call.1} parent=103 // pred_check
          %p4246 = pneg %p399
        $region106: #{tpu_custom_call.1} parent=103 // pred_check_branch
          %4248 = sbr.rel (%p4246) target = $region108
        $region107: #{tpu_custom_call.1} parent=103 // pred_region
          %s4249 = smul.u32 2, %s30
          %p4250 = scmp.lt.s32.totalorder %s4249, 3
          %s4251 = scalar_select %p4250, %s4249, 3
          %s4252 = smul.addr %s4251, 4
          %s4253 = smul.addr %s4252, 8
          %s4254 = scalar_lea.vmem %s16, %s4253
        $region108: #{tpu_custom_call.1} parent=103 // pred_fallthru
          _
      $region104: #{tpu_custom_call.1} parent=5 // pred_fallthru
        _
    $region6: #{tpu_custom_call.1} parent=1 // loop_footer
      %s28 = sadd.s32 1, %s24
    $region7: #{tpu_custom_call.1} parent=1 // loop_footer_branch
      %23 = sbr.rel target = $region3
    $region8: #{tpu_custom_call.1} parent=1 // loop_exit
      _
    %4255 = vsyncpa [#allocation5], 1
    %s4256 = scalar_lea.sflag [#allocation5], 1
    %4257 = vsyncpa %s4256, 1
    %4258 = vsyncpa [#allocation7], 1

</llo_original>
